<compile_context>
chip_gen: v5e
topology: v5e:2x2
jax: 0.10.0
libtpu: 0.0.40
codegen_flags: <defaults>
</compile_context>

<pallas_src>
import functools

import jax
import jax.numpy as jnp
from jax import lax
from jax.experimental import pallas as pl
from jax.experimental.pallas import tpu as pltpu


_VGG_MEAN_BGR = (103.939, 116.779, 123.680)
_LANES = 128
_EPS = 1e-5


# ---------------------------------------------------------------------------
# Fused kernel: folded 1x1 conv (+bias via ones row) + ReLU + moment partials
# ---------------------------------------------------------------------------
def _fused_moments_kernel(xi_ref, xt_ref, w_ref, out_ref, *, cout, cchunk, tile):
    """Per grid step: conv+ReLU both image tiles, accumulate lane-resident
    per-channel moment partials into the (5*cout, 128) output block."""
    t = pl.program_id(2)

    @pl.when(t == 0)
    def _init():
        out_ref[...] = jnp.zeros_like(out_ref)

    n_groups = tile // _LANES
    n_chunks = cout // cchunk

    # Both image tiles side by side -> one MXU pass per channel chunk.
    rhs = jnp.concatenate([xi_ref[0], xt_ref[0]], axis=-1)       # (4, 2*tile) bf16

    for ci in range(n_chunks):
        c0 = ci * cchunk
        wck = w_ref[c0:c0 + cchunk, :]                           # (cchunk, 4) bf16
        f = jnp.dot(wck, rhs, preferred_element_type=jnp.float32)
        f = jnp.maximum(f, 0.0)                                  # bias already folded in

        # Lane-resident partial moments: static lane-group slices + VPU adds,
        # no cross-lane (XLU) reduction inside the spatial loop.
        z = jnp.zeros((cchunk, _LANES), jnp.float32)
        sa, sb, sa2, sb2, sab = z, z, z, z, z
        for g in range(n_groups):
            a = f[:, g * _LANES:(g + 1) * _LANES]
            b = f[:, (n_groups + g) * _LANES:(n_groups + g + 1) * _LANES]
            sa = sa + a
            sb = sb + b
            sa2 = sa2 + a * a
            sb2 = sb2 + b * b
            sab = sab + a * b

        out_ref[0, 0, 0 * cout + c0:0 * cout + c0 + cchunk, :] += sa
        out_ref[0, 0, 1 * cout + c0:1 * cout + c0 + cchunk, :] += sa2
        out_ref[0, 0, 2 * cout + c0:2 * cout + c0 + cchunk, :] += sb
        out_ref[0, 0, 3 * cout + c0:3 * cout + c0 + cchunk, :] += sb2
        out_ref[0, 0, 4 * cout + c0:4 * cout + c0 + cchunk, :] += sab


# ---------------------------------------------------------------------------
# Wrapper glue
# ---------------------------------------------------------------------------
def _round_up(x, m):
    return ((x + m - 1) // m) * m


def _fold_preprocess_into_conv(vgg_w, vgg_b):
    """Fold vgg_preprocess (RGB->BGR, (x+1)*127.5 - mean_bgr) AND the conv bias
    into one (cout, 4) matrix acting on [raw RGB in [-1,1]; ones]."""
    mean = jnp.asarray(_VGG_MEAN_BGR, jnp.float32)
    w = vgg_w.astype(jnp.float32)                        # (3, cout), rows in BGR order
    b = vgg_b.astype(jnp.float32)                        # (cout,)
    w_rgb = 127.5 * w[::-1, :].T                         # (cout, 3) on raw RGB
    b_eff = b + jnp.sum((127.5 - mean)[:, None] * w, axis=0)
    return jnp.concatenate([w_rgb, b_eff[:, None]], axis=1)   # (cout, 4)


def perceptual_loss(img, target, vgg_w, vgg_b, *,
                    spatial_tile=2048, channel_chunk=64):
    """mean((IN(vgg(prep(img))) - IN(vgg(prep(target))))**2), fused on TPU."""
    n, c_in, h, w_sp = img.shape
    assert c_in == 3 and target.shape == img.shape
    hw = h * w_sp
    cout = vgg_w.shape[1]
    assert cout % 8 == 0

    # Channel chunk (multiple of 8 dividing cout).
    cchunk = max(8, min(channel_chunk, cout) // 8 * 8)
    while cout % cchunk:
        cchunk -= 8

    # Spatial tile (multiple of 128); pad HW up to a tile multiple.  Padded
    # columns are all-zero (including the ones row), so they contribute exactly
    # zero to every moment -> padding is numerically neutral.
    tile = min(max(128, (spatial_tile // 128) * 128), _round_up(hw, 128))
    hw_pad = _round_up(hw, tile)
    num_tiles = hw_pad // tile
    # v7x has 2 TensorCores: guarantee a >=2-extent parallel axis even for n==1.
    splits = 2 if (n < 2 and num_tiles >= 2 and num_tiles % 2 == 0) else 1
    tps = num_tiles // splits

    w_eff = _fold_preprocess_into_conv(vgg_w, vgg_b).astype(jnp.bfloat16)

    def to_slab(x):
        x = x.reshape(n, 3, hw)
        ones = jnp.ones((n, 1, hw), x.dtype)
        x = jnp.concatenate([x, ones], axis=1).astype(jnp.bfloat16)   # (n, 4, hw)
        if hw_pad != hw:
            x = jnp.pad(x, ((0, 0), (0, 0), (0, hw_pad - hw)))
        return x

    xi = to_slab(img)
    xt = to_slab(target)

    kernel = functools.partial(_fused_moments_kernel,
                               cout=cout, cchunk=cchunk, tile=tile)
    parts = pl.pallas_call(
        kernel,
        out_shape=jax.ShapeDtypeStruct((n, splits, 5 * cout, _LANES), jnp.float32),
        grid=(n, splits, tps),
        in_specs=[
            pl.BlockSpec((1, 4, tile), lambda i, s, t: (i, 0, s * tps + t)),   # img slab
            pl.BlockSpec((1, 4, tile), lambda i, s, t: (i, 0, s * tps + t)),   # target slab
            pl.BlockSpec((cout, 4), lambda i, s, t: (0, 0)),                   # folded W (resident)
        ],
        out_specs=pl.BlockSpec((1, 1, 5 * cout, _LANES),
                               lambda i, s, t: (i, s, 0, 0)),
        compiler_params=pltpu.CompilerParams(
            dimension_semantics=("parallel", "parallel", "arbitrary"),
            vmem_limit_bytes=32 * 1024 * 1024,
        ),
    )(xi, xt, w_eff)

    # Tiny finalize in XLA: cross-lane/split reduce + algebraic IN-MSE:
    #   mean_sp((IN(A)-IN(B))^2) = var_A/(var_A+eps) + var_B/(var_B+eps)
    #                              - 2*cov_AB / sqrt((var_A+eps)(var_B+eps))
    sums = parts.reshape(n, splits, 5, cout, _LANES).sum(axis=(1, 4))   # (n, 5, cout)
    inv_hw = 1.0 / hw
    sa, sa2, sb, sb2, sab = (sums[:, k] for k in range(5))
    ma = sa * inv_hw
    mb = sb * inv_hw
    var_a = jnp.maximum(sa2 * inv_hw - ma * ma, 0.0)
    var_b = jnp.maximum(sb2 * inv_hw - mb * mb, 0.0)
    cov = sab * inv_hw - ma * mb
    da = var_a + _EPS
    db = var_b + _EPS
    per_c = var_a / da + var_b / db - 2.0 * cov * lax.rsqrt(da * db)
    return jnp.sum(per_c) / (n * cout)


# ---------------------------------------------------------------------------
# Pure-JAX reference (mirrors the PyTorch module: preprocess -> vgg -> IN -> MSE)
# ---------------------------------------------------------------------------
def _reference_loss(img, target, vgg_w, vgg_b, eps=1e-5):
    mean = jnp.asarray(_VGG_MEAN_BGR, jnp.float32).reshape(1, 3, 1, 1)

    def prep(x):
        return (x[:, ::-1, :, :] + 1.0) * 255.0 * 0.5 - mean

    def vgg(x):
        y = jnp.einsum("nchw,cd->ndhw", x, vgg_w,
                       precision=jax.lax.Precision.HIGHEST)
        return jnp.maximum(y + vgg_b.reshape(1, -1, 1, 1), 0.0)

    def instnorm(f):
        m = jnp.mean(f, axis=(2, 3), keepdims=True)
        v = jnp.mean((f - m) ** 2, axis=(2, 3), keepdims=True)
        return (f - m) * lax.rsqrt(v + eps)

    fa = vgg(prep(img))
    fb = vgg(prep(target))
    return jnp.mean((instnorm(fa) - instnorm(fb)) ** 2)


if __name__ == "__main__":
    key = jax.random.PRNGKey(0)
    k1, k2, k3, k4 = jax.random.split(key, 4)

    N, H, W = 2, 16, 16
    C_FEAT = 512   # InstanceNorm2d(512) in the module implies 512-channel features

    img = jax.random.uniform(k1, (N, 3, H, W), jnp.float32, minval=-1.0, maxval=1.0)
    target = jax.random.uniform(k2, (N, 3, H, W), jnp.float32, minval=-1.0, maxval=1.0)

    # Deterministic synthetic "VGG" parameters (1x1 conv 3 -> 512 + ReLU) acting
    # on vgg_preprocess'ed (BGR, mean-subtracted) input, as in the original script.
    vgg_w = jax.random.normal(k3, (3, C_FEAT), jnp.float32) * 0.05
    vgg_b = jax.random.normal(k4, (C_FEAT,), jnp.float32) * 0.01

    loss = perceptual_loss(img, target, vgg_w, vgg_b)
    jax.block_until_ready(loss)

    ref = _reference_loss(img, target, vgg_w, vgg_b)
    if not jnp.allclose(loss, ref, rtol=2e-2, atol=1e-3):
        raise AssertionError(f"mismatch: kernel={float(loss)} ref={float(ref)}")

    print("KERNEL_OK")
</pallas_src>

<mosaic_0001>
module attributes {stable_mosaic.version = 11 : i64} {
  func.func @_fused_moments_kernel(%arg0: i32, %arg1: i32, %arg2: i32, %arg3: memref<1x4x256xbf16, #tpu.memory_space<vmem>>, %arg4: memref<1x4x256xbf16, #tpu.memory_space<vmem>>, %arg5: memref<512x4xbf16, #tpu.memory_space<vmem>>, %arg6: memref<1x1x2560x128xf32, #tpu.memory_space<vmem>>) attributes {dimension_semantics = [#tpu.dimension_semantics<parallel>, #tpu.dimension_semantics<parallel>, #tpu.dimension_semantics<arbitrary>], iteration_bounds = array<i64: 2, 1, 1>, scalar_prefetch = 0 : i64, scratch_operands = 0 : i64, tpu.core_type = #tpu.core_type<tc>, window_params = [{transform_indices = @transform_0, window_bounds = array<i64: 1, 4, 256>}, {transform_indices = @transform_1, window_bounds = array<i64: 1, 4, 256>}, {pipeline_mode = #tpu.pipeline_mode<synchronous>, transform_indices = @transform_2, window_bounds = array<i64: 512, 4>}, {transform_indices = @transform_3, window_bounds = array<i64: 1, 1, 2560, 128>}]} {
    %c0_i32 = arith.constant 0 : i32
    %0 = arith.cmpi eq, %arg2, %c0_i32 : i32
    %1 = arith.extui %0 : i1 to i32
    %c0_i32_0 = arith.constant 0 : i32
    %2 = arith.cmpi ne, %1, %c0_i32_0 : i32
    scf.if %2 {
      %cst_326 = arith.constant 0.000000e+00 : f32
      %448 = vector.broadcast %cst_326 : f32 to vector<1x1x2560x128xf32>
      %c0_327 = arith.constant 0 : index
      %c0_328 = arith.constant 0 : index
      %c0_329 = arith.constant 0 : index
      %c0_330 = arith.constant 0 : index
      %449 = vector.load %arg6[%c0_327, %c0_328, %c0_329, %c0_330] : memref<1x1x2560x128xf32, #tpu.memory_space<vmem>>, vector<1x1x2560x128xf32>
      tpu.vector_store %arg6[%c0_327, %c0_328, %c0_329, %c0_330], %448 {strides = array<i32>} : memref<1x1x2560x128xf32, #tpu.memory_space<vmem>>, vector<1x1x2560x128xf32>,
    } else {
    }
    %c0 = arith.constant 0 : index
    %c0_1 = arith.constant 0 : index
    %c0_2 = arith.constant 0 : index
    %3 = vector.load %arg3[%c0, %c0_1, %c0_2] : memref<1x4x256xbf16, #tpu.memory_space<vmem>>, vector<1x4x256xbf16>
    %4 = vector.shape_cast %3 : vector<1x4x256xbf16> to vector<4x256xbf16>
    %c0_3 = arith.constant 0 : index
    %c0_4 = arith.constant 0 : index
    %c0_5 = arith.constant 0 : index
    %5 = vector.load %arg4[%c0_3, %c0_4, %c0_5] : memref<1x4x256xbf16, #tpu.memory_space<vmem>>, vector<1x4x256xbf16>
    %6 = vector.shape_cast %5 : vector<1x4x256xbf16> to vector<4x256xbf16>
    %7 = tpu.concatenate %4, %6 in 1 : vector<4x256xbf16>, vector<4x256xbf16> -> vector<4x512xbf16>
    %c0_6 = arith.constant 0 : index
    %c0_7 = arith.constant 0 : index
    %8 = vector.load %arg5[%c0_6, %c0_7] : memref<512x4xbf16, #tpu.memory_space<vmem>>, vector<64x4xbf16>
    %cst = arith.constant dense<0.000000e+00> : vector<64x512xf32>
    %9 = tpu.matmul %8, %7, %cst {dimension_numbers = #tpu.dot_dimension_numbers<[1], [0], [0], [1], [0, 0, 1, 1], [], []>} : vector<64x4xbf16>, vector<4x512xbf16>, vector<64x512xf32> -> vector<64x512xf32>
    %cst_8 = arith.constant 0.000000e+00 : f32
    %10 = vector.broadcast %cst_8 : f32 to vector<64x512xf32>
    %11 = arith.maximumf %9, %10 : vector<64x512xf32>
    %cst_9 = arith.constant 0.000000e+00 : f32
    %12 = vector.broadcast %cst_9 : f32 to vector<64x128xf32>
    %13 = vector.extract_strided_slice %11 {offsets = [0, 0], sizes = [64, 128], strides = [1, 1]} : vector<64x512xf32> to vector<64x128xf32>
    %14 = vector.extract_strided_slice %11 {offsets = [0, 256], sizes = [64, 128], strides = [1, 1]} : vector<64x512xf32> to vector<64x128xf32>
    %15 = arith.addf %12, %13 : vector<64x128xf32>
    %16 = arith.addf %12, %14 : vector<64x128xf32>
    %17 = arith.mulf %13, %13 : vector<64x128xf32>
    %18 = arith.addf %12, %17 : vector<64x128xf32>
    %19 = arith.mulf %14, %14 : vector<64x128xf32>
    %20 = arith.addf %12, %19 : vector<64x128xf32>
    %21 = arith.mulf %13, %14 : vector<64x128xf32>
    %22 = arith.addf %12, %21 : vector<64x128xf32>
    %23 = vector.extract_strided_slice %11 {offsets = [0, 128], sizes = [64, 128], strides = [1, 1]} : vector<64x512xf32> to vector<64x128xf32>
    %24 = vector.extract_strided_slice %11 {offsets = [0, 384], sizes = [64, 128], strides = [1, 1]} : vector<64x512xf32> to vector<64x128xf32>
    %25 = arith.addf %15, %23 : vector<64x128xf32>
    %26 = arith.addf %16, %24 : vector<64x128xf32>
    %27 = arith.mulf %23, %23 : vector<64x128xf32>
    %28 = arith.addf %18, %27 : vector<64x128xf32>
    %29 = arith.mulf %24, %24 : vector<64x128xf32>
    %30 = arith.addf %20, %29 : vector<64x128xf32>
    %31 = arith.mulf %23, %24 : vector<64x128xf32>
    %32 = arith.addf %22, %31 : vector<64x128xf32>
    %c0_10 = arith.constant 0 : index
    %c0_11 = arith.constant 0 : index
    %c0_12 = arith.constant 0 : index
    %c0_13 = arith.constant 0 : index
    %33 = vector.load %arg6[%c0_10, %c0_11, %c0_12, %c0_13] : memref<1x1x2560x128xf32, #tpu.memory_space<vmem>>, vector<1x1x64x128xf32>
    %34 = vector.shape_cast %33 : vector<1x1x64x128xf32> to vector<64x128xf32>
    %35 = arith.addf %34, %25 : vector<64x128xf32>
    %c0_14 = arith.constant 0 : index
    %c0_15 = arith.constant 0 : index
    %c0_16 = arith.constant 0 : index
    %c0_17 = arith.constant 0 : index
    %36 = vector.load %arg6[%c0_14, %c0_15, %c0_16, %c0_17] : memref<1x1x2560x128xf32, #tpu.memory_space<vmem>>, vector<1x1x64x128xf32>
    %37 = vector.shape_cast %36 : vector<1x1x64x128xf32> to vector<64x128xf32>
    %38 = vector.shape_cast %35 : vector<64x128xf32> to vector<1x1x64x128xf32>
    tpu.vector_store %arg6[%c0_14, %c0_15, %c0_16, %c0_17], %38 {strides = array<i32>} : memref<1x1x2560x128xf32, #tpu.memory_space<vmem>>, vector<1x1x64x128xf32>,
    %c0_18 = arith.constant 0 : index
    %c0_19 = arith.constant 0 : index
    %c512 = arith.constant 512 : index
    %c0_20 = arith.constant 0 : index
    %39 = vector.load %arg6[%c0_18, %c0_19, %c512, %c0_20] : memref<1x1x2560x128xf32, #tpu.memory_space<vmem>>, vector<1x1x64x128xf32>
    %40 = vector.shape_cast %39 : vector<1x1x64x128xf32> to vector<64x128xf32>
    %41 = arith.addf %40, %28 : vector<64x128xf32>
    %c0_21 = arith.constant 0 : index
    %c0_22 = arith.constant 0 : index
    %c512_23 = arith.constant 512 : index
    %c0_24 = arith.constant 0 : index
    %42 = vector.load %arg6[%c0_21, %c0_22, %c512_23, %c0_24] : memref<1x1x2560x128xf32, #tpu.memory_space<vmem>>, vector<1x1x64x128xf32>
    %43 = vector.shape_cast %42 : vector<1x1x64x128xf32> to vector<64x128xf32>
    %44 = vector.shape_cast %41 : vector<64x128xf32> to vector<1x1x64x128xf32>
    tpu.vector_store %arg6[%c0_21, %c0_22, %c512_23, %c0_24], %44 {strides = array<i32>} : memref<1x1x2560x128xf32, #tpu.memory_space<vmem>>, vector<1x1x64x128xf32>,
    %c0_25 = arith.constant 0 : index
    %c0_26 = arith.constant 0 : index
    %c1024 = arith.constant 1024 : index
    %c0_27 = arith.constant 0 : index
    %45 = vector.load %arg6[%c0_25, %c0_26, %c1024, %c0_27] : memref<1x1x2560x128xf32, #tpu.memory_space<vmem>>, vector<1x1x64x128xf32>
    %46 = vector.shape_cast %45 : vector<1x1x64x128xf32> to vector<64x128xf32>
    %47 = arith.addf %46, %26 : vector<64x128xf32>
    %c0_28 = arith.constant 0 : index
    %c0_29 = arith.constant 0 : index
    %c1024_30 = arith.constant 1024 : index
    %c0_31 = arith.constant 0 : index
    %48 = vector.load %arg6[%c0_28, %c0_29, %c1024_30, %c0_31] : memref<1x1x2560x128xf32, #tpu.memory_space<vmem>>, vector<1x1x64x128xf32>
    %49 = vector.shape_cast %48 : vector<1x1x64x128xf32> to vector<64x128xf32>
    %50 = vector.shape_cast %47 : vector<64x128xf32> to vector<1x1x64x128xf32>
    tpu.vector_store %arg6[%c0_28, %c0_29, %c1024_30, %c0_31], %50 {strides = array<i32>} : memref<1x1x2560x128xf32, #tpu.memory_space<vmem>>, vector<1x1x64x128xf32>,
    %c0_32 = arith.constant 0 : index
    %c0_33 = arith.constant 0 : index
    %c1536 = arith.constant 1536 : index
    %c0_34 = arith.constant 0 : index
    %51 = vector.load %arg6[%c0_32, %c0_33, %c1536, %c0_34] : memref<1x1x2560x128xf32, #tpu.memory_space<vmem>>, vector<1x1x64x128xf32>
    %52 = vector.shape_cast %51 : vector<1x1x64x128xf32> to vector<64x128xf32>
    %53 = arith.addf %52, %30 : vector<64x128xf32>
    %c0_35 = arith.constant 0 : index
    %c0_36 = arith.constant 0 : index
    %c1536_37 = arith.constant 1536 : index
    %c0_38 = arith.constant 0 : index
    %54 = vector.load %arg6[%c0_35, %c0_36, %c1536_37, %c0_38] : memref<1x1x2560x128xf32, #tpu.memory_space<vmem>>, vector<1x1x64x128xf32>
    %55 = vector.shape_cast %54 : vector<1x1x64x128xf32> to vector<64x128xf32>
    %56 = vector.shape_cast %53 : vector<64x128xf32> to vector<1x1x64x128xf32>
    tpu.vector_store %arg6[%c0_35, %c0_36, %c1536_37, %c0_38], %56 {strides = array<i32>} : memref<1x1x2560x128xf32, #tpu.memory_space<vmem>>, vector<1x1x64x128xf32>,
    %c0_39 = arith.constant 0 : index
    %c0_40 = arith.constant 0 : index
    %c2048 = arith.constant 2048 : index
    %c0_41 = arith.constant 0 : index
    %57 = vector.load %arg6[%c0_39, %c0_40, %c2048, %c0_41] : memref<1x1x2560x128xf32, #tpu.memory_space<vmem>>, vector<1x1x64x128xf32>
    %58 = vector.shape_cast %57 : vector<1x1x64x128xf32> to vector<64x128xf32>
    %59 = arith.addf %58, %32 : vector<64x128xf32>
    %c0_42 = arith.constant 0 : index
    %c0_43 = arith.constant 0 : index
    %c2048_44 = arith.constant 2048 : index
    %c0_45 = arith.constant 0 : index
    %60 = vector.load %arg6[%c0_42, %c0_43, %c2048_44, %c0_45] : memref<1x1x2560x128xf32, #tpu.memory_space<vmem>>, vector<1x1x64x128xf32>
    %61 = vector.shape_cast %60 : vector<1x1x64x128xf32> to vector<64x128xf32>
    %62 = vector.shape_cast %59 : vector<64x128xf32> to vector<1x1x64x128xf32>
    tpu.vector_store %arg6[%c0_42, %c0_43, %c2048_44, %c0_45], %62 {strides = array<i32>} : memref<1x1x2560x128xf32, #tpu.memory_space<vmem>>, vector<1x1x64x128xf32>,
    %c64 = arith.constant 64 : index
    %c0_46 = arith.constant 0 : index
    %63 = vector.load %arg5[%c64, %c0_46] : memref<512x4xbf16, #tpu.memory_space<vmem>>, vector<64x4xbf16>
    %cst_47 = arith.constant dense<0.000000e+00> : vector<64x512xf32>
    %64 = tpu.matmul %63, %7, %cst_47 {dimension_numbers = #tpu.dot_dimension_numbers<[1], [0], [0], [1], [0, 0, 1, 1], [], []>} : vector<64x4xbf16>, vector<4x512xbf16>, vector<64x512xf32> -> vector<64x512xf32>
    %cst_48 = arith.constant 0.000000e+00 : f32
    %65 = vector.broadcast %cst_48 : f32 to vector<64x512xf32>
    %66 = arith.maximumf %64, %65 : vector<64x512xf32>
    %cst_49 = arith.constant 0.000000e+00 : f32
    %67 = vector.broadcast %cst_49 : f32 to vector<64x128xf32>
    %68 = vector.extract_strided_slice %66 {offsets = [0, 0], sizes = [64, 128], strides = [1, 1]} : vector<64x512xf32> to vector<64x128xf32>
    %69 = vector.extract_strided_slice %66 {offsets = [0, 256], sizes = [64, 128], strides = [1, 1]} : vector<64x512xf32> to vector<64x128xf32>
    %70 = arith.addf %67, %68 : vector<64x128xf32>
    %71 = arith.addf %67, %69 : vector<64x128xf32>
    %72 = arith.mulf %68, %68 : vector<64x128xf32>
    %73 = arith.addf %67, %72 : vector<64x128xf32>
    %74 = arith.mulf %69, %69 : vector<64x128xf32>
    %75 = arith.addf %67, %74 : vector<64x128xf32>
    %76 = arith.mulf %68, %69 : vector<64x128xf32>
    %77 = arith.addf %67, %76 : vector<64x128xf32>
    %78 = vector.extract_strided_slice %66 {offsets = [0, 128], sizes = [64, 128], strides = [1, 1]} : vector<64x512xf32> to vector<64x128xf32>
    %79 = vector.extract_strided_slice %66 {offsets = [0, 384], sizes = [64, 128], strides = [1, 1]} : vector<64x512xf32> to vector<64x128xf32>
    %80 = arith.addf %70, %78 : vector<64x128xf32>
    %81 = arith.addf %71, %79 : vector<64x128xf32>
    %82 = arith.mulf %78, %78 : vector<64x128xf32>
    %83 = arith.addf %73, %82 : vector<64x128xf32>
    %84 = arith.mulf %79, %79 : vector<64x128xf32>
    %85 = arith.addf %75, %84 : vector<64x128xf32>
    %86 = arith.mulf %78, %79 : vector<64x128xf32>
    %87 = arith.addf %77, %86 : vector<64x128xf32>
    %c0_50 = arith.constant 0 : index
    %c0_51 = arith.constant 0 : index
    %c64_52 = arith.constant 64 : index
    %c0_53 = arith.constant 0 : index
    %88 = vector.load %arg6[%c0_50, %c0_51, %c64_52, %c0_53] : memref<1x1x2560x128xf32, #tpu.memory_space<vmem>>, vector<1x1x64x128xf32>
    %89 = vector.shape_cast %88 : vector<1x1x64x128xf32> to vector<64x128xf32>
    %90 = arith.addf %89, %80 : vector<64x128xf32>
    %c0_54 = arith.constant 0 : index
    %c0_55 = arith.constant 0 : index
    %c64_56 = arith.constant 64 : index
    %c0_57 = arith.constant 0 : index
    %91 = vector.load %arg6[%c0_54, %c0_55, %c64_56, %c0_57] : memref<1x1x2560x128xf32, #tpu.memory_space<vmem>>, vector<1x1x64x128xf32>
    %92 = vector.shape_cast %91 : vector<1x1x64x128xf32> to vector<64x128xf32>
    %93 = vector.shape_cast %90 : vector<64x128xf32> to vector<1x1x64x128xf32>
    tpu.vector_store %arg6[%c0_54, %c0_55, %c64_56, %c0_57], %93 {strides = array<i32>} : memref<1x1x2560x128xf32, #tpu.memory_space<vmem>>, vector<1x1x64x128xf32>,
    %c0_58 = arith.constant 0 : index
    %c0_59 = arith.constant 0 : index
    %c576 = arith.constant 576 : index
    %c0_60 = arith.constant 0 : index
    %94 = vector.load %arg6[%c0_58, %c0_59, %c576, %c0_60] : memref<1x1x2560x128xf32, #tpu.memory_space<vmem>>, vector<1x1x64x128xf32>
    %95 = vector.shape_cast %94 : vector<1x1x64x128xf32> to vector<64x128xf32>
    %96 = arith.addf %95, %83 : vector<64x128xf32>
    %c0_61 = arith.constant 0 : index
    %c0_62 = arith.constant 0 : index
    %c576_63 = arith.constant 576 : index
    %c0_64 = arith.constant 0 : index
    %97 = vector.load %arg6[%c0_61, %c0_62, %c576_63, %c0_64] : memref<1x1x2560x128xf32, #tpu.memory_space<vmem>>, vector<1x1x64x128xf32>
    %98 = vector.shape_cast %97 : vector<1x1x64x128xf32> to vector<64x128xf32>
    %99 = vector.shape_cast %96 : vector<64x128xf32> to vector<1x1x64x128xf32>
    tpu.vector_store %arg6[%c0_61, %c0_62, %c576_63, %c0_64], %99 {strides = array<i32>} : memref<1x1x2560x128xf32, #tpu.memory_space<vmem>>, vector<1x1x64x128xf32>,
    %c0_65 = arith.constant 0 : index
    %c0_66 = arith.constant 0 : index
    %c1088 = arith.constant 1088 : index
    %c0_67 = arith.constant 0 : index
    %100 = vector.load %arg6[%c0_65, %c0_66, %c1088, %c0_67] : memref<1x1x2560x128xf32, #tpu.memory_space<vmem>>, vector<1x1x64x128xf32>
    %101 = vector.shape_cast %100 : vector<1x1x64x128xf32> to vector<64x128xf32>
    %102 = arith.addf %101, %81 : vector<64x128xf32>
    %c0_68 = arith.constant 0 : index
    %c0_69 = arith.constant 0 : index
    %c1088_70 = arith.constant 1088 : index
    %c0_71 = arith.constant 0 : index
    %103 = vector.load %arg6[%c0_68, %c0_69, %c1088_70, %c0_71] : memref<1x1x2560x128xf32, #tpu.memory_space<vmem>>, vector<1x1x64x128xf32>
    %104 = vector.shape_cast %103 : vector<1x1x64x128xf32> to vector<64x128xf32>
    %105 = vector.shape_cast %102 : vector<64x128xf32> to vector<1x1x64x128xf32>
    tpu.vector_store %arg6[%c0_68, %c0_69, %c1088_70, %c0_71], %105 {strides = array<i32>} : memref<1x1x2560x128xf32, #tpu.memory_space<vmem>>, vector<1x1x64x128xf32>,
    %c0_72 = arith.constant 0 : index
    %c0_73 = arith.constant 0 : index
    %c1600 = arith.constant 1600 : index
    %c0_74 = arith.constant 0 : index
    %106 = vector.load %arg6[%c0_72, %c0_73, %c1600, %c0_74] : memref<1x1x2560x128xf32, #tpu.memory_space<vmem>>, vector<1x1x64x128xf32>
    %107 = vector.shape_cast %106 : vector<1x1x64x128xf32> to vector<64x128xf32>
    %108 = arith.addf %107, %85 : vector<64x128xf32>
    %c0_75 = arith.constant 0 : index
    %c0_76 = arith.constant 0 : index
    %c1600_77 = arith.constant 1600 : index
    %c0_78 = arith.constant 0 : index
    %109 = vector.load %arg6[%c0_75, %c0_76, %c1600_77, %c0_78] : memref<1x1x2560x128xf32, #tpu.memory_space<vmem>>, vector<1x1x64x128xf32>
    %110 = vector.shape_cast %109 : vector<1x1x64x128xf32> to vector<64x128xf32>
    %111 = vector.shape_cast %108 : vector<64x128xf32> to vector<1x1x64x128xf32>
    tpu.vector_store %arg6[%c0_75, %c0_76, %c1600_77, %c0_78], %111 {strides = array<i32>} : memref<1x1x2560x128xf32, #tpu.memory_space<vmem>>, vector<1x1x64x128xf32>,
    %c0_79 = arith.constant 0 : index
    %c0_80 = arith.constant 0 : index
    %c2112 = arith.constant 2112 : index
    %c0_81 = arith.constant 0 : index
    %112 = vector.load %arg6[%c0_79, %c0_80, %c2112, %c0_81] : memref<1x1x2560x128xf32, #tpu.memory_space<vmem>>, vector<1x1x64x128xf32>
    %113 = vector.shape_cast %112 : vector<1x1x64x128xf32> to vector<64x128xf32>
    %114 = arith.addf %113, %87 : vector<64x128xf32>
    %c0_82 = arith.constant 0 : index
    %c0_83 = arith.constant 0 : index
    %c2112_84 = arith.constant 2112 : index
    %c0_85 = arith.constant 0 : index
    %115 = vector.load %arg6[%c0_82, %c0_83, %c2112_84, %c0_85] : memref<1x1x2560x128xf32, #tpu.memory_space<vmem>>, vector<1x1x64x128xf32>
    %116 = vector.shape_cast %115 : vector<1x1x64x128xf32> to vector<64x128xf32>
    %117 = vector.shape_cast %114 : vector<64x128xf32> to vector<1x1x64x128xf32>
    tpu.vector_store %arg6[%c0_82, %c0_83, %c2112_84, %c0_85], %117 {strides = array<i32>} : memref<1x1x2560x128xf32, #tpu.memory_space<vmem>>, vector<1x1x64x128xf32>,
    %c128 = arith.constant 128 : index
    %c0_86 = arith.constant 0 : index
    %118 = vector.load %arg5[%c128, %c0_86] : memref<512x4xbf16, #tpu.memory_space<vmem>>, vector<64x4xbf16>
    %cst_87 = arith.constant dense<0.000000e+00> : vector<64x512xf32>
    %119 = tpu.matmul %118, %7, %cst_87 {dimension_numbers = #tpu.dot_dimension_numbers<[1], [0], [0], [1], [0, 0, 1, 1], [], []>} : vector<64x4xbf16>, vector<4x512xbf16>, vector<64x512xf32> -> vector<64x512xf32>
    %cst_88 = arith.constant 0.000000e+00 : f32
    %120 = vector.broadcast %cst_88 : f32 to vector<64x512xf32>
    %121 = arith.maximumf %119, %120 : vector<64x512xf32>
    %cst_89 = arith.constant 0.000000e+00 : f32
    %122 = vector.broadcast %cst_89 : f32 to vector<64x128xf32>
    %123 = vector.extract_strided_slice %121 {offsets = [0, 0], sizes = [64, 128], strides = [1, 1]} : vector<64x512xf32> to vector<64x128xf32>
    %124 = vector.extract_strided_slice %121 {offsets = [0, 256], sizes = [64, 128], strides = [1, 1]} : vector<64x512xf32> to vector<64x128xf32>
    %125 = arith.addf %122, %123 : vector<64x128xf32>
    %126 = arith.addf %122, %124 : vector<64x128xf32>
    %127 = arith.mulf %123, %123 : vector<64x128xf32>
    %128 = arith.addf %122, %127 : vector<64x128xf32>
    %129 = arith.mulf %124, %124 : vector<64x128xf32>
    %130 = arith.addf %122, %129 : vector<64x128xf32>
    %131 = arith.mulf %123, %124 : vector<64x128xf32>
    %132 = arith.addf %122, %131 : vector<64x128xf32>
    %133 = vector.extract_strided_slice %121 {offsets = [0, 128], sizes = [64, 128], strides = [1, 1]} : vector<64x512xf32> to vector<64x128xf32>
    %134 = vector.extract_strided_slice %121 {offsets = [0, 384], sizes = [64, 128], strides = [1, 1]} : vector<64x512xf32> to vector<64x128xf32>
    %135 = arith.addf %125, %133 : vector<64x128xf32>
    %136 = arith.addf %126, %134 : vector<64x128xf32>
    %137 = arith.mulf %133, %133 : vector<64x128xf32>
    %138 = arith.addf %128, %137 : vector<64x128xf32>
    %139 = arith.mulf %134, %134 : vector<64x128xf32>
    %140 = arith.addf %130, %139 : vector<64x128xf32>
    %141 = arith.mulf %133, %134 : vector<64x128xf32>
    %142 = arith.addf %132, %141 : vector<64x128xf32>
    %c0_90 = arith.constant 0 : index
    %c0_91 = arith.constant 0 : index
    %c128_92 = arith.constant 128 : index
    %c0_93 = arith.constant 0 : index
    %143 = vector.load %arg6[%c0_90, %c0_91, %c128_92, %c0_93] : memref<1x1x2560x128xf32, #tpu.memory_space<vmem>>, vector<1x1x64x128xf32>
    %144 = vector.shape_cast %143 : vector<1x1x64x128xf32> to vector<64x128xf32>
    %145 = arith.addf %144, %135 : vector<64x128xf32>
    %c0_94 = arith.constant 0 : index
    %c0_95 = arith.constant 0 : index
    %c128_96 = arith.constant 128 : index
    %c0_97 = arith.constant 0 : index
    %146 = vector.load %arg6[%c0_94, %c0_95, %c128_96, %c0_97] : memref<1x1x2560x128xf32, #tpu.memory_space<vmem>>, vector<1x1x64x128xf32>
    %147 = vector.shape_cast %146 : vector<1x1x64x128xf32> to vector<64x128xf32>
    %148 = vector.shape_cast %145 : vector<64x128xf32> to vector<1x1x64x128xf32>
    tpu.vector_store %arg6[%c0_94, %c0_95, %c128_96, %c0_97], %148 {strides = array<i32>} : memref<1x1x2560x128xf32, #tpu.memory_space<vmem>>, vector<1x1x64x128xf32>,
    %c0_98 = arith.constant 0 : index
    %c0_99 = arith.constant 0 : index
    %c640 = arith.constant 640 : index
    %c0_100 = arith.constant 0 : index
    %149 = vector.load %arg6[%c0_98, %c0_99, %c640, %c0_100] : memref<1x1x2560x128xf32, #tpu.memory_space<vmem>>, vector<1x1x64x128xf32>
    %150 = vector.shape_cast %149 : vector<1x1x64x128xf32> to vector<64x128xf32>
    %151 = arith.addf %150, %138 : vector<64x128xf32>
    %c0_101 = arith.constant 0 : index
    %c0_102 = arith.constant 0 : index
    %c640_103 = arith.constant 640 : index
    %c0_104 = arith.constant 0 : index
    %152 = vector.load %arg6[%c0_101, %c0_102, %c640_103, %c0_104] : memref<1x1x2560x128xf32, #tpu.memory_space<vmem>>, vector<1x1x64x128xf32>
    %153 = vector.shape_cast %152 : vector<1x1x64x128xf32> to vector<64x128xf32>
    %154 = vector.shape_cast %151 : vector<64x128xf32> to vector<1x1x64x128xf32>
    tpu.vector_store %arg6[%c0_101, %c0_102, %c640_103, %c0_104], %154 {strides = array<i32>} : memref<1x1x2560x128xf32, #tpu.memory_space<vmem>>, vector<1x1x64x128xf32>,
    %c0_105 = arith.constant 0 : index
    %c0_106 = arith.constant 0 : index
    %c1152 = arith.constant 1152 : index
    %c0_107 = arith.constant 0 : index
    %155 = vector.load %arg6[%c0_105, %c0_106, %c1152, %c0_107] : memref<1x1x2560x128xf32, #tpu.memory_space<vmem>>, vector<1x1x64x128xf32>
    %156 = vector.shape_cast %155 : vector<1x1x64x128xf32> to vector<64x128xf32>
    %157 = arith.addf %156, %136 : vector<64x128xf32>
    %c0_108 = arith.constant 0 : index
    %c0_109 = arith.constant 0 : index
    %c1152_110 = arith.constant 1152 : index
    %c0_111 = arith.constant 0 : index
    %158 = vector.load %arg6[%c0_108, %c0_109, %c1152_110, %c0_111] : memref<1x1x2560x128xf32, #tpu.memory_space<vmem>>, vector<1x1x64x128xf32>
    %159 = vector.shape_cast %158 : vector<1x1x64x128xf32> to vector<64x128xf32>
    %160 = vector.shape_cast %157 : vector<64x128xf32> to vector<1x1x64x128xf32>
    tpu.vector_store %arg6[%c0_108, %c0_109, %c1152_110, %c0_111], %160 {strides = array<i32>} : memref<1x1x2560x128xf32, #tpu.memory_space<vmem>>, vector<1x1x64x128xf32>,
    %c0_112 = arith.constant 0 : index
    %c0_113 = arith.constant 0 : index
    %c1664 = arith.constant 1664 : index
    %c0_114 = arith.constant 0 : index
    %161 = vector.load %arg6[%c0_112, %c0_113, %c1664, %c0_114] : memref<1x1x2560x128xf32, #tpu.memory_space<vmem>>, vector<1x1x64x128xf32>
    %162 = vector.shape_cast %161 : vector<1x1x64x128xf32> to vector<64x128xf32>
    %163 = arith.addf %162, %140 : vector<64x128xf32>
    %c0_115 = arith.constant 0 : index
    %c0_116 = arith.constant 0 : index
    %c1664_117 = arith.constant 1664 : index
    %c0_118 = arith.constant 0 : index
    %164 = vector.load %arg6[%c0_115, %c0_116, %c1664_117, %c0_118] : memref<1x1x2560x128xf32, #tpu.memory_space<vmem>>, vector<1x1x64x128xf32>
    %165 = vector.shape_cast %164 : vector<1x1x64x128xf32> to vector<64x128xf32>
    %166 = vector.shape_cast %163 : vector<64x128xf32> to vector<1x1x64x128xf32>
    tpu.vector_store %arg6[%c0_115, %c0_116, %c1664_117, %c0_118], %166 {strides = array<i32>} : memref<1x1x2560x128xf32, #tpu.memory_space<vmem>>, vector<1x1x64x128xf32>,
    %c0_119 = arith.constant 0 : index
    %c0_120 = arith.constant 0 : index
    %c2176 = arith.constant 2176 : index
    %c0_121 = arith.constant 0 : index
    %167 = vector.load %arg6[%c0_119, %c0_120, %c2176, %c0_121] : memref<1x1x2560x128xf32, #tpu.memory_space<vmem>>, vector<1x1x64x128xf32>
    %168 = vector.shape_cast %167 : vector<1x1x64x128xf32> to vector<64x128xf32>
    %169 = arith.addf %168, %142 : vector<64x128xf32>
    %c0_122 = arith.constant 0 : index
    %c0_123 = arith.constant 0 : index
    %c2176_124 = arith.constant 2176 : index
    %c0_125 = arith.constant 0 : index
    %170 = vector.load %arg6[%c0_122, %c0_123, %c2176_124, %c0_125] : memref<1x1x2560x128xf32, #tpu.memory_space<vmem>>, vector<1x1x64x128xf32>
    %171 = vector.shape_cast %170 : vector<1x1x64x128xf32> to vector<64x128xf32>
    %172 = vector.shape_cast %169 : vector<64x128xf32> to vector<1x1x64x128xf32>
    tpu.vector_store %arg6[%c0_122, %c0_123, %c2176_124, %c0_125], %172 {strides = array<i32>} : memref<1x1x2560x128xf32, #tpu.memory_space<vmem>>, vector<1x1x64x128xf32>,
    %c192 = arith.constant 192 : index
    %c0_126 = arith.constant 0 : index
    %173 = vector.load %arg5[%c192, %c0_126] : memref<512x4xbf16, #tpu.memory_space<vmem>>, vector<64x4xbf16>
    %cst_127 = arith.constant dense<0.000000e+00> : vector<64x512xf32>
    %174 = tpu.matmul %173, %7, %cst_127 {dimension_numbers = #tpu.dot_dimension_numbers<[1], [0], [0], [1], [0, 0, 1, 1], [], []>} : vector<64x4xbf16>, vector<4x512xbf16>, vector<64x512xf32> -> vector<64x512xf32>
    %cst_128 = arith.constant 0.000000e+00 : f32
    %175 = vector.broadcast %cst_128 : f32 to vector<64x512xf32>
    %176 = arith.maximumf %174, %175 : vector<64x512xf32>
    %cst_129 = arith.constant 0.000000e+00 : f32
    %177 = vector.broadcast %cst_129 : f32 to vector<64x128xf32>
    %178 = vector.extract_strided_slice %176 {offsets = [0, 0], sizes = [64, 128], strides = [1, 1]} : vector<64x512xf32> to vector<64x128xf32>
    %179 = vector.extract_strided_slice %176 {offsets = [0, 256], sizes = [64, 128], strides = [1, 1]} : vector<64x512xf32> to vector<64x128xf32>
    %180 = arith.addf %177, %178 : vector<64x128xf32>
    %181 = arith.addf %177, %179 : vector<64x128xf32>
    %182 = arith.mulf %178, %178 : vector<64x128xf32>
    %183 = arith.addf %177, %182 : vector<64x128xf32>
    %184 = arith.mulf %179, %179 : vector<64x128xf32>
    %185 = arith.addf %177, %184 : vector<64x128xf32>
    %186 = arith.mulf %178, %179 : vector<64x128xf32>
    %187 = arith.addf %177, %186 : vector<64x128xf32>
    %188 = vector.extract_strided_slice %176 {offsets = [0, 128], sizes = [64, 128], strides = [1, 1]} : vector<64x512xf32> to vector<64x128xf32>
    %189 = vector.extract_strided_slice %176 {offsets = [0, 384], sizes = [64, 128], strides = [1, 1]} : vector<64x512xf32> to vector<64x128xf32>
    %190 = arith.addf %180, %188 : vector<64x128xf32>
    %191 = arith.addf %181, %189 : vector<64x128xf32>
    %192 = arith.mulf %188, %188 : vector<64x128xf32>
    %193 = arith.addf %183, %192 : vector<64x128xf32>
    %194 = arith.mulf %189, %189 : vector<64x128xf32>
    %195 = arith.addf %185, %194 : vector<64x128xf32>
    %196 = arith.mulf %188, %189 : vector<64x128xf32>
    %197 = arith.addf %187, %196 : vector<64x128xf32>
    %c0_130 = arith.constant 0 : index
    %c0_131 = arith.constant 0 : index
    %c192_132 = arith.constant 192 : index
    %c0_133 = arith.constant 0 : index
    %198 = vector.load %arg6[%c0_130, %c0_131, %c192_132, %c0_133] : memref<1x1x2560x128xf32, #tpu.memory_space<vmem>>, vector<1x1x64x128xf32>
    %199 = vector.shape_cast %198 : vector<1x1x64x128xf32> to vector<64x128xf32>
    %200 = arith.addf %199, %190 : vector<64x128xf32>
    %c0_134 = arith.constant 0 : index
    %c0_135 = arith.constant 0 : index
    %c192_136 = arith.constant 192 : index
    %c0_137 = arith.constant 0 : index
    %201 = vector.load %arg6[%c0_134, %c0_135, %c192_136, %c0_137] : memref<1x1x2560x128xf32, #tpu.memory_space<vmem>>, vector<1x1x64x128xf32>
    %202 = vector.shape_cast %201 : vector<1x1x64x128xf32> to vector<64x128xf32>
    %203 = vector.shape_cast %200 : vector<64x128xf32> to vector<1x1x64x128xf32>
    tpu.vector_store %arg6[%c0_134, %c0_135, %c192_136, %c0_137], %203 {strides = array<i32>} : memref<1x1x2560x128xf32, #tpu.memory_space<vmem>>, vector<1x1x64x128xf32>,
    %c0_138 = arith.constant 0 : index
    %c0_139 = arith.constant 0 : index
    %c704 = arith.constant 704 : index
    %c0_140 = arith.constant 0 : index
    %204 = vector.load %arg6[%c0_138, %c0_139, %c704, %c0_140] : memref<1x1x2560x128xf32, #tpu.memory_space<vmem>>, vector<1x1x64x128xf32>
    %205 = vector.shape_cast %204 : vector<1x1x64x128xf32> to vector<64x128xf32>
    %206 = arith.addf %205, %193 : vector<64x128xf32>
    %c0_141 = arith.constant 0 : index
    %c0_142 = arith.constant 0 : index
    %c704_143 = arith.constant 704 : index
    %c0_144 = arith.constant 0 : index
    %207 = vector.load %arg6[%c0_141, %c0_142, %c704_143, %c0_144] : memref<1x1x2560x128xf32, #tpu.memory_space<vmem>>, vector<1x1x64x128xf32>
    %208 = vector.shape_cast %207 : vector<1x1x64x128xf32> to vector<64x128xf32>
    %209 = vector.shape_cast %206 : vector<64x128xf32> to vector<1x1x64x128xf32>
    tpu.vector_store %arg6[%c0_141, %c0_142, %c704_143, %c0_144], %209 {strides = array<i32>} : memref<1x1x2560x128xf32, #tpu.memory_space<vmem>>, vector<1x1x64x128xf32>,
    %c0_145 = arith.constant 0 : index
    %c0_146 = arith.constant 0 : index
    %c1216 = arith.constant 1216 : index
    %c0_147 = arith.constant 0 : index
    %210 = vector.load %arg6[%c0_145, %c0_146, %c1216, %c0_147] : memref<1x1x2560x128xf32, #tpu.memory_space<vmem>>, vector<1x1x64x128xf32>
    %211 = vector.shape_cast %210 : vector<1x1x64x128xf32> to vector<64x128xf32>
    %212 = arith.addf %211, %191 : vector<64x128xf32>
    %c0_148 = arith.constant 0 : index
    %c0_149 = arith.constant 0 : index
    %c1216_150 = arith.constant 1216 : index
    %c0_151 = arith.constant 0 : index
    %213 = vector.load %arg6[%c0_148, %c0_149, %c1216_150, %c0_151] : memref<1x1x2560x128xf32, #tpu.memory_space<vmem>>, vector<1x1x64x128xf32>
    %214 = vector.shape_cast %213 : vector<1x1x64x128xf32> to vector<64x128xf32>
    %215 = vector.shape_cast %212 : vector<64x128xf32> to vector<1x1x64x128xf32>
    tpu.vector_store %arg6[%c0_148, %c0_149, %c1216_150, %c0_151], %215 {strides = array<i32>} : memref<1x1x2560x128xf32, #tpu.memory_space<vmem>>, vector<1x1x64x128xf32>,
    %c0_152 = arith.constant 0 : index
    %c0_153 = arith.constant 0 : index
    %c1728 = arith.constant 1728 : index
    %c0_154 = arith.constant 0 : index
    %216 = vector.load %arg6[%c0_152, %c0_153, %c1728, %c0_154] : memref<1x1x2560x128xf32, #tpu.memory_space<vmem>>, vector<1x1x64x128xf32>
    %217 = vector.shape_cast %216 : vector<1x1x64x128xf32> to vector<64x128xf32>
    %218 = arith.addf %217, %195 : vector<64x128xf32>
    %c0_155 = arith.constant 0 : index
    %c0_156 = arith.constant 0 : index
    %c1728_157 = arith.constant 1728 : index
    %c0_158 = arith.constant 0 : index
    %219 = vector.load %arg6[%c0_155, %c0_156, %c1728_157, %c0_158] : memref<1x1x2560x128xf32, #tpu.memory_space<vmem>>, vector<1x1x64x128xf32>
    %220 = vector.shape_cast %219 : vector<1x1x64x128xf32> to vector<64x128xf32>
    %221 = vector.shape_cast %218 : vector<64x128xf32> to vector<1x1x64x128xf32>
    tpu.vector_store %arg6[%c0_155, %c0_156, %c1728_157, %c0_158], %221 {strides = array<i32>} : memref<1x1x2560x128xf32, #tpu.memory_space<vmem>>, vector<1x1x64x128xf32>,
    %c0_159 = arith.constant 0 : index
    %c0_160 = arith.constant 0 : index
    %c2240 = arith.constant 2240 : index
    %c0_161 = arith.constant 0 : index
    %222 = vector.load %arg6[%c0_159, %c0_160, %c2240, %c0_161] : memref<1x1x2560x128xf32, #tpu.memory_space<vmem>>, vector<1x1x64x128xf32>
    %223 = vector.shape_cast %222 : vector<1x1x64x128xf32> to vector<64x128xf32>
    %224 = arith.addf %223, %197 : vector<64x128xf32>
    %c0_162 = arith.constant 0 : index
    %c0_163 = arith.constant 0 : index
    %c2240_164 = arith.constant 2240 : index
    %c0_165 = arith.constant 0 : index
    %225 = vector.load %arg6[%c0_162, %c0_163, %c2240_164, %c0_165] : memref<1x1x2560x128xf32, #tpu.memory_space<vmem>>, vector<1x1x64x128xf32>
    %226 = vector.shape_cast %225 : vector<1x1x64x128xf32> to vector<64x128xf32>
    %227 = vector.shape_cast %224 : vector<64x128xf32> to vector<1x1x64x128xf32>
    tpu.vector_store %arg6[%c0_162, %c0_163, %c2240_164, %c0_165], %227 {strides = array<i32>} : memref<1x1x2560x128xf32, #tpu.memory_space<vmem>>, vector<1x1x64x128xf32>,
    %c256 = arith.constant 256 : index
    %c0_166 = arith.constant 0 : index
    %228 = vector.load %arg5[%c256, %c0_166] : memref<512x4xbf16, #tpu.memory_space<vmem>>, vector<64x4xbf16>
    %cst_167 = arith.constant dense<0.000000e+00> : vector<64x512xf32>
    %229 = tpu.matmul %228, %7, %cst_167 {dimension_numbers = #tpu.dot_dimension_numbers<[1], [0], [0], [1], [0, 0, 1, 1], [], []>} : vector<64x4xbf16>, vector<4x512xbf16>, vector<64x512xf32> -> vector<64x512xf32>
    %cst_168 = arith.constant 0.000000e+00 : f32
    %230 = vector.broadcast %cst_168 : f32 to vector<64x512xf32>
    %231 = arith.maximumf %229, %230 : vector<64x512xf32>
    %cst_169 = arith.constant 0.000000e+00 : f32
    %232 = vector.broadcast %cst_169 : f32 to vector<64x128xf32>
    %233 = vector.extract_strided_slice %231 {offsets = [0, 0], sizes = [64, 128], strides = [1, 1]} : vector<64x512xf32> to vector<64x128xf32>
    %234 = vector.extract_strided_slice %231 {offsets = [0, 256], sizes = [64, 128], strides = [1, 1]} : vector<64x512xf32> to vector<64x128xf32>
    %235 = arith.addf %232, %233 : vector<64x128xf32>
    %236 = arith.addf %232, %234 : vector<64x128xf32>
    %237 = arith.mulf %233, %233 : vector<64x128xf32>
    %238 = arith.addf %232, %237 : vector<64x128xf32>
    %239 = arith.mulf %234, %234 : vector<64x128xf32>
    %240 = arith.addf %232, %239 : vector<64x128xf32>
    %241 = arith.mulf %233, %234 : vector<64x128xf32>
    %242 = arith.addf %232, %241 : vector<64x128xf32>
    %243 = vector.extract_strided_slice %231 {offsets = [0, 128], sizes = [64, 128], strides = [1, 1]} : vector<64x512xf32> to vector<64x128xf32>
    %244 = vector.extract_strided_slice %231 {offsets = [0, 384], sizes = [64, 128], strides = [1, 1]} : vector<64x512xf32> to vector<64x128xf32>
    %245 = arith.addf %235, %243 : vector<64x128xf32>
    %246 = arith.addf %236, %244 : vector<64x128xf32>
    %247 = arith.mulf %243, %243 : vector<64x128xf32>
    %248 = arith.addf %238, %247 : vector<64x128xf32>
    %249 = arith.mulf %244, %244 : vector<64x128xf32>
    %250 = arith.addf %240, %249 : vector<64x128xf32>
    %251 = arith.mulf %243, %244 : vector<64x128xf32>
    %252 = arith.addf %242, %251 : vector<64x128xf32>
    %c0_170 = arith.constant 0 : index
    %c0_171 = arith.constant 0 : index
    %c256_172 = arith.constant 256 : index
    %c0_173 = arith.constant 0 : index
    %253 = vector.load %arg6[%c0_170, %c0_171, %c256_172, %c0_173] : memref<1x1x2560x128xf32, #tpu.memory_space<vmem>>, vector<1x1x64x128xf32>
    %254 = vector.shape_cast %253 : vector<1x1x64x128xf32> to vector<64x128xf32>
    %255 = arith.addf %254, %245 : vector<64x128xf32>
    %c0_174 = arith.constant 0 : index
    %c0_175 = arith.constant 0 : index
    %c256_176 = arith.constant 256 : index
    %c0_177 = arith.constant 0 : index
    %256 = vector.load %arg6[%c0_174, %c0_175, %c256_176, %c0_177] : memref<1x1x2560x128xf32, #tpu.memory_space<vmem>>, vector<1x1x64x128xf32>
    %257 = vector.shape_cast %256 : vector<1x1x64x128xf32> to vector<64x128xf32>
    %258 = vector.shape_cast %255 : vector<64x128xf32> to vector<1x1x64x128xf32>
    tpu.vector_store %arg6[%c0_174, %c0_175, %c256_176, %c0_177], %258 {strides = array<i32>} : memref<1x1x2560x128xf32, #tpu.memory_space<vmem>>, vector<1x1x64x128xf32>,
    %c0_178 = arith.constant 0 : index
    %c0_179 = arith.constant 0 : index
    %c768 = arith.constant 768 : index
    %c0_180 = arith.constant 0 : index
    %259 = vector.load %arg6[%c0_178, %c0_179, %c768, %c0_180] : memref<1x1x2560x128xf32, #tpu.memory_space<vmem>>, vector<1x1x64x128xf32>
    %260 = vector.shape_cast %259 : vector<1x1x64x128xf32> to vector<64x128xf32>
    %261 = arith.addf %260, %248 : vector<64x128xf32>
    %c0_181 = arith.constant 0 : index
    %c0_182 = arith.constant 0 : index
    %c768_183 = arith.constant 768 : index
    %c0_184 = arith.constant 0 : index
    %262 = vector.load %arg6[%c0_181, %c0_182, %c768_183, %c0_184] : memref<1x1x2560x128xf32, #tpu.memory_space<vmem>>, vector<1x1x64x128xf32>
    %263 = vector.shape_cast %262 : vector<1x1x64x128xf32> to vector<64x128xf32>
    %264 = vector.shape_cast %261 : vector<64x128xf32> to vector<1x1x64x128xf32>
    tpu.vector_store %arg6[%c0_181, %c0_182, %c768_183, %c0_184], %264 {strides = array<i32>} : memref<1x1x2560x128xf32, #tpu.memory_space<vmem>>, vector<1x1x64x128xf32>,
    %c0_185 = arith.constant 0 : index
    %c0_186 = arith.constant 0 : index
    %c1280 = arith.constant 1280 : index
    %c0_187 = arith.constant 0 : index
    %265 = vector.load %arg6[%c0_185, %c0_186, %c1280, %c0_187] : memref<1x1x2560x128xf32, #tpu.memory_space<vmem>>, vector<1x1x64x128xf32>
    %266 = vector.shape_cast %265 : vector<1x1x64x128xf32> to vector<64x128xf32>
    %267 = arith.addf %266, %246 : vector<64x128xf32>
    %c0_188 = arith.constant 0 : index
    %c0_189 = arith.constant 0 : index
    %c1280_190 = arith.constant 1280 : index
    %c0_191 = arith.constant 0 : index
    %268 = vector.load %arg6[%c0_188, %c0_189, %c1280_190, %c0_191] : memref<1x1x2560x128xf32, #tpu.memory_space<vmem>>, vector<1x1x64x128xf32>
    %269 = vector.shape_cast %268 : vector<1x1x64x128xf32> to vector<64x128xf32>
    %270 = vector.shape_cast %267 : vector<64x128xf32> to vector<1x1x64x128xf32>
    tpu.vector_store %arg6[%c0_188, %c0_189, %c1280_190, %c0_191], %270 {strides = array<i32>} : memref<1x1x2560x128xf32, #tpu.memory_space<vmem>>, vector<1x1x64x128xf32>,
    %c0_192 = arith.constant 0 : index
    %c0_193 = arith.constant 0 : index
    %c1792 = arith.constant 1792 : index
    %c0_194 = arith.constant 0 : index
    %271 = vector.load %arg6[%c0_192, %c0_193, %c1792, %c0_194] : memref<1x1x2560x128xf32, #tpu.memory_space<vmem>>, vector<1x1x64x128xf32>
    %272 = vector.shape_cast %271 : vector<1x1x64x128xf32> to vector<64x128xf32>
    %273 = arith.addf %272, %250 : vector<64x128xf32>
    %c0_195 = arith.constant 0 : index
    %c0_196 = arith.constant 0 : index
    %c1792_197 = arith.constant 1792 : index
    %c0_198 = arith.constant 0 : index
    %274 = vector.load %arg6[%c0_195, %c0_196, %c1792_197, %c0_198] : memref<1x1x2560x128xf32, #tpu.memory_space<vmem>>, vector<1x1x64x128xf32>
    %275 = vector.shape_cast %274 : vector<1x1x64x128xf32> to vector<64x128xf32>
    %276 = vector.shape_cast %273 : vector<64x128xf32> to vector<1x1x64x128xf32>
    tpu.vector_store %arg6[%c0_195, %c0_196, %c1792_197, %c0_198], %276 {strides = array<i32>} : memref<1x1x2560x128xf32, #tpu.memory_space<vmem>>, vector<1x1x64x128xf32>,
    %c0_199 = arith.constant 0 : index
    %c0_200 = arith.constant 0 : index
    %c2304 = arith.constant 2304 : index
    %c0_201 = arith.constant 0 : index
    %277 = vector.load %arg6[%c0_199, %c0_200, %c2304, %c0_201] : memref<1x1x2560x128xf32, #tpu.memory_space<vmem>>, vector<1x1x64x128xf32>
    %278 = vector.shape_cast %277 : vector<1x1x64x128xf32> to vector<64x128xf32>
    %279 = arith.addf %278, %252 : vector<64x128xf32>
    %c0_202 = arith.constant 0 : index
    %c0_203 = arith.constant 0 : index
    %c2304_204 = arith.constant 2304 : index
    %c0_205 = arith.constant 0 : index
    %280 = vector.load %arg6[%c0_202, %c0_203, %c2304_204, %c0_205] : memref<1x1x2560x128xf32, #tpu.memory_space<vmem>>, vector<1x1x64x128xf32>
    %281 = vector.shape_cast %280 : vector<1x1x64x128xf32> to vector<64x128xf32>
    %282 = vector.shape_cast %279 : vector<64x128xf32> to vector<1x1x64x128xf32>
    tpu.vector_store %arg6[%c0_202, %c0_203, %c2304_204, %c0_205], %282 {strides = array<i32>} : memref<1x1x2560x128xf32, #tpu.memory_space<vmem>>, vector<1x1x64x128xf32>,
    %c320 = arith.constant 320 : index
    %c0_206 = arith.constant 0 : index
    %283 = vector.load %arg5[%c320, %c0_206] : memref<512x4xbf16, #tpu.memory_space<vmem>>, vector<64x4xbf16>
    %cst_207 = arith.constant dense<0.000000e+00> : vector<64x512xf32>
    %284 = tpu.matmul %283, %7, %cst_207 {dimension_numbers = #tpu.dot_dimension_numbers<[1], [0], [0], [1], [0, 0, 1, 1], [], []>} : vector<64x4xbf16>, vector<4x512xbf16>, vector<64x512xf32> -> vector<64x512xf32>
    %cst_208 = arith.constant 0.000000e+00 : f32
    %285 = vector.broadcast %cst_208 : f32 to vector<64x512xf32>
    %286 = arith.maximumf %284, %285 : vector<64x512xf32>
    %cst_209 = arith.constant 0.000000e+00 : f32
    %287 = vector.broadcast %cst_209 : f32 to vector<64x128xf32>
    %288 = vector.extract_strided_slice %286 {offsets = [0, 0], sizes = [64, 128], strides = [1, 1]} : vector<64x512xf32> to vector<64x128xf32>
    %289 = vector.extract_strided_slice %286 {offsets = [0, 256], sizes = [64, 128], strides = [1, 1]} : vector<64x512xf32> to vector<64x128xf32>
    %290 = arith.addf %287, %288 : vector<64x128xf32>
    %291 = arith.addf %287, %289 : vector<64x128xf32>
    %292 = arith.mulf %288, %288 : vector<64x128xf32>
    %293 = arith.addf %287, %292 : vector<64x128xf32>
    %294 = arith.mulf %289, %289 : vector<64x128xf32>
    %295 = arith.addf %287, %294 : vector<64x128xf32>
    %296 = arith.mulf %288, %289 : vector<64x128xf32>
    %297 = arith.addf %287, %296 : vector<64x128xf32>
    %298 = vector.extract_strided_slice %286 {offsets = [0, 128], sizes = [64, 128], strides = [1, 1]} : vector<64x512xf32> to vector<64x128xf32>
    %299 = vector.extract_strided_slice %286 {offsets = [0, 384], sizes = [64, 128], strides = [1, 1]} : vector<64x512xf32> to vector<64x128xf32>
    %300 = arith.addf %290, %298 : vector<64x128xf32>
    %301 = arith.addf %291, %299 : vector<64x128xf32>
    %302 = arith.mulf %298, %298 : vector<64x128xf32>
    %303 = arith.addf %293, %302 : vector<64x128xf32>
    %304 = arith.mulf %299, %299 : vector<64x128xf32>
    %305 = arith.addf %295, %304 : vector<64x128xf32>
    %306 = arith.mulf %298, %299 : vector<64x128xf32>
    %307 = arith.addf %297, %306 : vector<64x128xf32>
    %c0_210 = arith.constant 0 : index
    %c0_211 = arith.constant 0 : index
    %c320_212 = arith.constant 320 : index
    %c0_213 = arith.constant 0 : index
    %308 = vector.load %arg6[%c0_210, %c0_211, %c320_212, %c0_213] : memref<1x1x2560x128xf32, #tpu.memory_space<vmem>>, vector<1x1x64x128xf32>
    %309 = vector.shape_cast %308 : vector<1x1x64x128xf32> to vector<64x128xf32>
    %310 = arith.addf %309, %300 : vector<64x128xf32>
    %c0_214 = arith.constant 0 : index
    %c0_215 = arith.constant 0 : index
    %c320_216 = arith.constant 320 : index
    %c0_217 = arith.constant 0 : index
    %311 = vector.load %arg6[%c0_214, %c0_215, %c320_216, %c0_217] : memref<1x1x2560x128xf32, #tpu.memory_space<vmem>>, vector<1x1x64x128xf32>
    %312 = vector.shape_cast %311 : vector<1x1x64x128xf32> to vector<64x128xf32>
    %313 = vector.shape_cast %310 : vector<64x128xf32> to vector<1x1x64x128xf32>
    tpu.vector_store %arg6[%c0_214, %c0_215, %c320_216, %c0_217], %313 {strides = array<i32>} : memref<1x1x2560x128xf32, #tpu.memory_space<vmem>>, vector<1x1x64x128xf32>,
    %c0_218 = arith.constant 0 : index
    %c0_219 = arith.constant 0 : index
    %c832 = arith.constant 832 : index
    %c0_220 = arith.constant 0 : index
    %314 = vector.load %arg6[%c0_218, %c0_219, %c832, %c0_220] : memref<1x1x2560x128xf32, #tpu.memory_space<vmem>>, vector<1x1x64x128xf32>
    %315 = vector.shape_cast %314 : vector<1x1x64x128xf32> to vector<64x128xf32>
    %316 = arith.addf %315, %303 : vector<64x128xf32>
    %c0_221 = arith.constant 0 : index
    %c0_222 = arith.constant 0 : index
    %c832_223 = arith.constant 832 : index
    %c0_224 = arith.constant 0 : index
    %317 = vector.load %arg6[%c0_221, %c0_222, %c832_223, %c0_224] : memref<1x1x2560x128xf32, #tpu.memory_space<vmem>>, vector<1x1x64x128xf32>
    %318 = vector.shape_cast %317 : vector<1x1x64x128xf32> to vector<64x128xf32>
    %319 = vector.shape_cast %316 : vector<64x128xf32> to vector<1x1x64x128xf32>
    tpu.vector_store %arg6[%c0_221, %c0_222, %c832_223, %c0_224], %319 {strides = array<i32>} : memref<1x1x2560x128xf32, #tpu.memory_space<vmem>>, vector<1x1x64x128xf32>,
    %c0_225 = arith.constant 0 : index
    %c0_226 = arith.constant 0 : index
    %c1344 = arith.constant 1344 : index
    %c0_227 = arith.constant 0 : index
    %320 = vector.load %arg6[%c0_225, %c0_226, %c1344, %c0_227] : memref<1x1x2560x128xf32, #tpu.memory_space<vmem>>, vector<1x1x64x128xf32>
    %321 = vector.shape_cast %320 : vector<1x1x64x128xf32> to vector<64x128xf32>
    %322 = arith.addf %321, %301 : vector<64x128xf32>
    %c0_228 = arith.constant 0 : index
    %c0_229 = arith.constant 0 : index
    %c1344_230 = arith.constant 1344 : index
    %c0_231 = arith.constant 0 : index
    %323 = vector.load %arg6[%c0_228, %c0_229, %c1344_230, %c0_231] : memref<1x1x2560x128xf32, #tpu.memory_space<vmem>>, vector<1x1x64x128xf32>
    %324 = vector.shape_cast %323 : vector<1x1x64x128xf32> to vector<64x128xf32>
    %325 = vector.shape_cast %322 : vector<64x128xf32> to vector<1x1x64x128xf32>
    tpu.vector_store %arg6[%c0_228, %c0_229, %c1344_230, %c0_231], %325 {strides = array<i32>} : memref<1x1x2560x128xf32, #tpu.memory_space<vmem>>, vector<1x1x64x128xf32>,
    %c0_232 = arith.constant 0 : index
    %c0_233 = arith.constant 0 : index
    %c1856 = arith.constant 1856 : index
    %c0_234 = arith.constant 0 : index
    %326 = vector.load %arg6[%c0_232, %c0_233, %c1856, %c0_234] : memref<1x1x2560x128xf32, #tpu.memory_space<vmem>>, vector<1x1x64x128xf32>
    %327 = vector.shape_cast %326 : vector<1x1x64x128xf32> to vector<64x128xf32>
    %328 = arith.addf %327, %305 : vector<64x128xf32>
    %c0_235 = arith.constant 0 : index
    %c0_236 = arith.constant 0 : index
    %c1856_237 = arith.constant 1856 : index
    %c0_238 = arith.constant 0 : index
    %329 = vector.load %arg6[%c0_235, %c0_236, %c1856_237, %c0_238] : memref<1x1x2560x128xf32, #tpu.memory_space<vmem>>, vector<1x1x64x128xf32>
    %330 = vector.shape_cast %329 : vector<1x1x64x128xf32> to vector<64x128xf32>
    %331 = vector.shape_cast %328 : vector<64x128xf32> to vector<1x1x64x128xf32>
    tpu.vector_store %arg6[%c0_235, %c0_236, %c1856_237, %c0_238], %331 {strides = array<i32>} : memref<1x1x2560x128xf32, #tpu.memory_space<vmem>>, vector<1x1x64x128xf32>,
    %c0_239 = arith.constant 0 : index
    %c0_240 = arith.constant 0 : index
    %c2368 = arith.constant 2368 : index
    %c0_241 = arith.constant 0 : index
    %332 = vector.load %arg6[%c0_239, %c0_240, %c2368, %c0_241] : memref<1x1x2560x128xf32, #tpu.memory_space<vmem>>, vector<1x1x64x128xf32>
    %333 = vector.shape_cast %332 : vector<1x1x64x128xf32> to vector<64x128xf32>
    %334 = arith.addf %333, %307 : vector<64x128xf32>
    %c0_242 = arith.constant 0 : index
    %c0_243 = arith.constant 0 : index
    %c2368_244 = arith.constant 2368 : index
    %c0_245 = arith.constant 0 : index
    %335 = vector.load %arg6[%c0_242, %c0_243, %c2368_244, %c0_245] : memref<1x1x2560x128xf32, #tpu.memory_space<vmem>>, vector<1x1x64x128xf32>
    %336 = vector.shape_cast %335 : vector<1x1x64x128xf32> to vector<64x128xf32>
    %337 = vector.shape_cast %334 : vector<64x128xf32> to vector<1x1x64x128xf32>
    tpu.vector_store %arg6[%c0_242, %c0_243, %c2368_244, %c0_245], %337 {strides = array<i32>} : memref<1x1x2560x128xf32, #tpu.memory_space<vmem>>, vector<1x1x64x128xf32>,
    %c384 = arith.constant 384 : index
    %c0_246 = arith.constant 0 : index
    %338 = vector.load %arg5[%c384, %c0_246] : memref<512x4xbf16, #tpu.memory_space<vmem>>, vector<64x4xbf16>
    %cst_247 = arith.constant dense<0.000000e+00> : vector<64x512xf32>
    %339 = tpu.matmul %338, %7, %cst_247 {dimension_numbers = #tpu.dot_dimension_numbers<[1], [0], [0], [1], [0, 0, 1, 1], [], []>} : vector<64x4xbf16>, vector<4x512xbf16>, vector<64x512xf32> -> vector<64x512xf32>
    %cst_248 = arith.constant 0.000000e+00 : f32
    %340 = vector.broadcast %cst_248 : f32 to vector<64x512xf32>
    %341 = arith.maximumf %339, %340 : vector<64x512xf32>
    %cst_249 = arith.constant 0.000000e+00 : f32
    %342 = vector.broadcast %cst_249 : f32 to vector<64x128xf32>
    %343 = vector.extract_strided_slice %341 {offsets = [0, 0], sizes = [64, 128], strides = [1, 1]} : vector<64x512xf32> to vector<64x128xf32>
    %344 = vector.extract_strided_slice %341 {offsets = [0, 256], sizes = [64, 128], strides = [1, 1]} : vector<64x512xf32> to vector<64x128xf32>
    %345 = arith.addf %342, %343 : vector<64x128xf32>
    %346 = arith.addf %342, %344 : vector<64x128xf32>
    %347 = arith.mulf %343, %343 : vector<64x128xf32>
    %348 = arith.addf %342, %347 : vector<64x128xf32>
    %349 = arith.mulf %344, %344 : vector<64x128xf32>
    %350 = arith.addf %342, %349 : vector<64x128xf32>
    %351 = arith.mulf %343, %344 : vector<64x128xf32>
    %352 = arith.addf %342, %351 : vector<64x128xf32>
    %353 = vector.extract_strided_slice %341 {offsets = [0, 128], sizes = [64, 128], strides = [1, 1]} : vector<64x512xf32> to vector<64x128xf32>
    %354 = vector.extract_strided_slice %341 {offsets = [0, 384], sizes = [64, 128], strides = [1, 1]} : vector<64x512xf32> to vector<64x128xf32>
    %355 = arith.addf %345, %353 : vector<64x128xf32>
    %356 = arith.addf %346, %354 : vector<64x128xf32>
    %357 = arith.mulf %353, %353 : vector<64x128xf32>
    %358 = arith.addf %348, %357 : vector<64x128xf32>
    %359 = arith.mulf %354, %354 : vector<64x128xf32>
    %360 = arith.addf %350, %359 : vector<64x128xf32>
    %361 = arith.mulf %353, %354 : vector<64x128xf32>
    %362 = arith.addf %352, %361 : vector<64x128xf32>
    %c0_250 = arith.constant 0 : index
    %c0_251 = arith.constant 0 : index
    %c384_252 = arith.constant 384 : index
    %c0_253 = arith.constant 0 : index
    %363 = vector.load %arg6[%c0_250, %c0_251, %c384_252, %c0_253] : memref<1x1x2560x128xf32, #tpu.memory_space<vmem>>, vector<1x1x64x128xf32>
    %364 = vector.shape_cast %363 : vector<1x1x64x128xf32> to vector<64x128xf32>
    %365 = arith.addf %364, %355 : vector<64x128xf32>
    %c0_254 = arith.constant 0 : index
    %c0_255 = arith.constant 0 : index
    %c384_256 = arith.constant 384 : index
    %c0_257 = arith.constant 0 : index
    %366 = vector.load %arg6[%c0_254, %c0_255, %c384_256, %c0_257] : memref<1x1x2560x128xf32, #tpu.memory_space<vmem>>, vector<1x1x64x128xf32>
    %367 = vector.shape_cast %366 : vector<1x1x64x128xf32> to vector<64x128xf32>
    %368 = vector.shape_cast %365 : vector<64x128xf32> to vector<1x1x64x128xf32>
    tpu.vector_store %arg6[%c0_254, %c0_255, %c384_256, %c0_257], %368 {strides = array<i32>} : memref<1x1x2560x128xf32, #tpu.memory_space<vmem>>, vector<1x1x64x128xf32>,
    %c0_258 = arith.constant 0 : index
    %c0_259 = arith.constant 0 : index
    %c896 = arith.constant 896 : index
    %c0_260 = arith.constant 0 : index
    %369 = vector.load %arg6[%c0_258, %c0_259, %c896, %c0_260] : memref<1x1x2560x128xf32, #tpu.memory_space<vmem>>, vector<1x1x64x128xf32>
    %370 = vector.shape_cast %369 : vector<1x1x64x128xf32> to vector<64x128xf32>
    %371 = arith.addf %370, %358 : vector<64x128xf32>
    %c0_261 = arith.constant 0 : index
    %c0_262 = arith.constant 0 : index
    %c896_263 = arith.constant 896 : index
    %c0_264 = arith.constant 0 : index
    %372 = vector.load %arg6[%c0_261, %c0_262, %c896_263, %c0_264] : memref<1x1x2560x128xf32, #tpu.memory_space<vmem>>, vector<1x1x64x128xf32>
    %373 = vector.shape_cast %372 : vector<1x1x64x128xf32> to vector<64x128xf32>
    %374 = vector.shape_cast %371 : vector<64x128xf32> to vector<1x1x64x128xf32>
    tpu.vector_store %arg6[%c0_261, %c0_262, %c896_263, %c0_264], %374 {strides = array<i32>} : memref<1x1x2560x128xf32, #tpu.memory_space<vmem>>, vector<1x1x64x128xf32>,
    %c0_265 = arith.constant 0 : index
    %c0_266 = arith.constant 0 : index
    %c1408 = arith.constant 1408 : index
    %c0_267 = arith.constant 0 : index
    %375 = vector.load %arg6[%c0_265, %c0_266, %c1408, %c0_267] : memref<1x1x2560x128xf32, #tpu.memory_space<vmem>>, vector<1x1x64x128xf32>
    %376 = vector.shape_cast %375 : vector<1x1x64x128xf32> to vector<64x128xf32>
    %377 = arith.addf %376, %356 : vector<64x128xf32>
    %c0_268 = arith.constant 0 : index
    %c0_269 = arith.constant 0 : index
    %c1408_270 = arith.constant 1408 : index
    %c0_271 = arith.constant 0 : index
    %378 = vector.load %arg6[%c0_268, %c0_269, %c1408_270, %c0_271] : memref<1x1x2560x128xf32, #tpu.memory_space<vmem>>, vector<1x1x64x128xf32>
    %379 = vector.shape_cast %378 : vector<1x1x64x128xf32> to vector<64x128xf32>
    %380 = vector.shape_cast %377 : vector<64x128xf32> to vector<1x1x64x128xf32>
    tpu.vector_store %arg6[%c0_268, %c0_269, %c1408_270, %c0_271], %380 {strides = array<i32>} : memref<1x1x2560x128xf32, #tpu.memory_space<vmem>>, vector<1x1x64x128xf32>,
    %c0_272 = arith.constant 0 : index
    %c0_273 = arith.constant 0 : index
    %c1920 = arith.constant 1920 : index
    %c0_274 = arith.constant 0 : index
    %381 = vector.load %arg6[%c0_272, %c0_273, %c1920, %c0_274] : memref<1x1x2560x128xf32, #tpu.memory_space<vmem>>, vector<1x1x64x128xf32>
    %382 = vector.shape_cast %381 : vector<1x1x64x128xf32> to vector<64x128xf32>
    %383 = arith.addf %382, %360 : vector<64x128xf32>
    %c0_275 = arith.constant 0 : index
    %c0_276 = arith.constant 0 : index
    %c1920_277 = arith.constant 1920 : index
    %c0_278 = arith.constant 0 : index
    %384 = vector.load %arg6[%c0_275, %c0_276, %c1920_277, %c0_278] : memref<1x1x2560x128xf32, #tpu.memory_space<vmem>>, vector<1x1x64x128xf32>
    %385 = vector.shape_cast %384 : vector<1x1x64x128xf32> to vector<64x128xf32>
    %386 = vector.shape_cast %383 : vector<64x128xf32> to vector<1x1x64x128xf32>
    tpu.vector_store %arg6[%c0_275, %c0_276, %c1920_277, %c0_278], %386 {strides = array<i32>} : memref<1x1x2560x128xf32, #tpu.memory_space<vmem>>, vector<1x1x64x128xf32>,
    %c0_279 = arith.constant 0 : index
    %c0_280 = arith.constant 0 : index
    %c2432 = arith.constant 2432 : index
    %c0_281 = arith.constant 0 : index
    %387 = vector.load %arg6[%c0_279, %c0_280, %c2432, %c0_281] : memref<1x1x2560x128xf32, #tpu.memory_space<vmem>>, vector<1x1x64x128xf32>
    %388 = vector.shape_cast %387 : vector<1x1x64x128xf32> to vector<64x128xf32>
    %389 = arith.addf %388, %362 : vector<64x128xf32>
    %c0_282 = arith.constant 0 : index
    %c0_283 = arith.constant 0 : index
    %c2432_284 = arith.constant 2432 : index
    %c0_285 = arith.constant 0 : index
    %390 = vector.load %arg6[%c0_282, %c0_283, %c2432_284, %c0_285] : memref<1x1x2560x128xf32, #tpu.memory_space<vmem>>, vector<1x1x64x128xf32>
    %391 = vector.shape_cast %390 : vector<1x1x64x128xf32> to vector<64x128xf32>
    %392 = vector.shape_cast %389 : vector<64x128xf32> to vector<1x1x64x128xf32>
    tpu.vector_store %arg6[%c0_282, %c0_283, %c2432_284, %c0_285], %392 {strides = array<i32>} : memref<1x1x2560x128xf32, #tpu.memory_space<vmem>>, vector<1x1x64x128xf32>,
    %c448 = arith.constant 448 : index
    %c0_286 = arith.constant 0 : index
    %393 = vector.load %arg5[%c448, %c0_286] : memref<512x4xbf16, #tpu.memory_space<vmem>>, vector<64x4xbf16>
    %cst_287 = arith.constant dense<0.000000e+00> : vector<64x512xf32>
    %394 = tpu.matmul %393, %7, %cst_287 {dimension_numbers = #tpu.dot_dimension_numbers<[1], [0], [0], [1], [0, 0, 1, 1], [], []>} : vector<64x4xbf16>, vector<4x512xbf16>, vector<64x512xf32> -> vector<64x512xf32>
    %cst_288 = arith.constant 0.000000e+00 : f32
    %395 = vector.broadcast %cst_288 : f32 to vector<64x512xf32>
    %396 = arith.maximumf %394, %395 : vector<64x512xf32>
    %cst_289 = arith.constant 0.000000e+00 : f32
    %397 = vector.broadcast %cst_289 : f32 to vector<64x128xf32>
    %398 = vector.extract_strided_slice %396 {offsets = [0, 0], sizes = [64, 128], strides = [1, 1]} : vector<64x512xf32> to vector<64x128xf32>
    %399 = vector.extract_strided_slice %396 {offsets = [0, 256], sizes = [64, 128], strides = [1, 1]} : vector<64x512xf32> to vector<64x128xf32>
    %400 = arith.addf %397, %398 : vector<64x128xf32>
    %401 = arith.addf %397, %399 : vector<64x128xf32>
    %402 = arith.mulf %398, %398 : vector<64x128xf32>
    %403 = arith.addf %397, %402 : vector<64x128xf32>
    %404 = arith.mulf %399, %399 : vector<64x128xf32>
    %405 = arith.addf %397, %404 : vector<64x128xf32>
    %406 = arith.mulf %398, %399 : vector<64x128xf32>
    %407 = arith.addf %397, %406 : vector<64x128xf32>
    %408 = vector.extract_strided_slice %396 {offsets = [0, 128], sizes = [64, 128], strides = [1, 1]} : vector<64x512xf32> to vector<64x128xf32>
    %409 = vector.extract_strided_slice %396 {offsets = [0, 384], sizes = [64, 128], strides = [1, 1]} : vector<64x512xf32> to vector<64x128xf32>
    %410 = arith.addf %400, %408 : vector<64x128xf32>
    %411 = arith.addf %401, %409 : vector<64x128xf32>
    %412 = arith.mulf %408, %408 : vector<64x128xf32>
    %413 = arith.addf %403, %412 : vector<64x128xf32>
    %414 = arith.mulf %409, %409 : vector<64x128xf32>
    %415 = arith.addf %405, %414 : vector<64x128xf32>
    %416 = arith.mulf %408, %409 : vector<64x128xf32>
    %417 = arith.addf %407, %416 : vector<64x128xf32>
    %c0_290 = arith.constant 0 : index
    %c0_291 = arith.constant 0 : index
    %c448_292 = arith.constant 448 : index
    %c0_293 = arith.constant 0 : index
    %418 = vector.load %arg6[%c0_290, %c0_291, %c448_292, %c0_293] : memref<1x1x2560x128xf32, #tpu.memory_space<vmem>>, vector<1x1x64x128xf32>
    %419 = vector.shape_cast %418 : vector<1x1x64x128xf32> to vector<64x128xf32>
    %420 = arith.addf %419, %410 : vector<64x128xf32>
    %c0_294 = arith.constant 0 : index
    %c0_295 = arith.constant 0 : index
    %c448_296 = arith.constant 448 : index
    %c0_297 = arith.constant 0 : index
    %421 = vector.load %arg6[%c0_294, %c0_295, %c448_296, %c0_297] : memref<1x1x2560x128xf32, #tpu.memory_space<vmem>>, vector<1x1x64x128xf32>
    %422 = vector.shape_cast %421 : vector<1x1x64x128xf32> to vector<64x128xf32>
    %423 = vector.shape_cast %420 : vector<64x128xf32> to vector<1x1x64x128xf32>
    tpu.vector_store %arg6[%c0_294, %c0_295, %c448_296, %c0_297], %423 {strides = array<i32>} : memref<1x1x2560x128xf32, #tpu.memory_space<vmem>>, vector<1x1x64x128xf32>,
    %c0_298 = arith.constant 0 : index
    %c0_299 = arith.constant 0 : index
    %c960 = arith.constant 960 : index
    %c0_300 = arith.constant 0 : index
    %424 = vector.load %arg6[%c0_298, %c0_299, %c960, %c0_300] : memref<1x1x2560x128xf32, #tpu.memory_space<vmem>>, vector<1x1x64x128xf32>
    %425 = vector.shape_cast %424 : vector<1x1x64x128xf32> to vector<64x128xf32>
    %426 = arith.addf %425, %413 : vector<64x128xf32>
    %c0_301 = arith.constant 0 : index
    %c0_302 = arith.constant 0 : index
    %c960_303 = arith.constant 960 : index
    %c0_304 = arith.constant 0 : index
    %427 = vector.load %arg6[%c0_301, %c0_302, %c960_303, %c0_304] : memref<1x1x2560x128xf32, #tpu.memory_space<vmem>>, vector<1x1x64x128xf32>
    %428 = vector.shape_cast %427 : vector<1x1x64x128xf32> to vector<64x128xf32>
    %429 = vector.shape_cast %426 : vector<64x128xf32> to vector<1x1x64x128xf32>
    tpu.vector_store %arg6[%c0_301, %c0_302, %c960_303, %c0_304], %429 {strides = array<i32>} : memref<1x1x2560x128xf32, #tpu.memory_space<vmem>>, vector<1x1x64x128xf32>,
    %c0_305 = arith.constant 0 : index
    %c0_306 = arith.constant 0 : index
    %c1472 = arith.constant 1472 : index
    %c0_307 = arith.constant 0 : index
    %430 = vector.load %arg6[%c0_305, %c0_306, %c1472, %c0_307] : memref<1x1x2560x128xf32, #tpu.memory_space<vmem>>, vector<1x1x64x128xf32>
    %431 = vector.shape_cast %430 : vector<1x1x64x128xf32> to vector<64x128xf32>
    %432 = arith.addf %431, %411 : vector<64x128xf32>
    %c0_308 = arith.constant 0 : index
    %c0_309 = arith.constant 0 : index
    %c1472_310 = arith.constant 1472 : index
    %c0_311 = arith.constant 0 : index
    %433 = vector.load %arg6[%c0_308, %c0_309, %c1472_310, %c0_311] : memref<1x1x2560x128xf32, #tpu.memory_space<vmem>>, vector<1x1x64x128xf32>
    %434 = vector.shape_cast %433 : vector<1x1x64x128xf32> to vector<64x128xf32>
    %435 = vector.shape_cast %432 : vector<64x128xf32> to vector<1x1x64x128xf32>
    tpu.vector_store %arg6[%c0_308, %c0_309, %c1472_310, %c0_311], %435 {strides = array<i32>} : memref<1x1x2560x128xf32, #tpu.memory_space<vmem>>, vector<1x1x64x128xf32>,
    %c0_312 = arith.constant 0 : index
    %c0_313 = arith.constant 0 : index
    %c1984 = arith.constant 1984 : index
    %c0_314 = arith.constant 0 : index
    %436 = vector.load %arg6[%c0_312, %c0_313, %c1984, %c0_314] : memref<1x1x2560x128xf32, #tpu.memory_space<vmem>>, vector<1x1x64x128xf32>
    %437 = vector.shape_cast %436 : vector<1x1x64x128xf32> to vector<64x128xf32>
    %438 = arith.addf %437, %415 : vector<64x128xf32>
    %c0_315 = arith.constant 0 : index
    %c0_316 = arith.constant 0 : index
    %c1984_317 = arith.constant 1984 : index
    %c0_318 = arith.constant 0 : index
    %439 = vector.load %arg6[%c0_315, %c0_316, %c1984_317, %c0_318] : memref<1x1x2560x128xf32, #tpu.memory_space<vmem>>, vector<1x1x64x128xf32>
    %440 = vector.shape_cast %439 : vector<1x1x64x128xf32> to vector<64x128xf32>
    %441 = vector.shape_cast %438 : vector<64x128xf32> to vector<1x1x64x128xf32>
    tpu.vector_store %arg6[%c0_315, %c0_316, %c1984_317, %c0_318], %441 {strides = array<i32>} : memref<1x1x2560x128xf32, #tpu.memory_space<vmem>>, vector<1x1x64x128xf32>,
    %c0_319 = arith.constant 0 : index
    %c0_320 = arith.constant 0 : index
    %c2496 = arith.constant 2496 : index
    %c0_321 = arith.constant 0 : index
    %442 = vector.load %arg6[%c0_319, %c0_320, %c2496, %c0_321] : memref<1x1x2560x128xf32, #tpu.memory_space<vmem>>, vector<1x1x64x128xf32>
    %443 = vector.shape_cast %442 : vector<1x1x64x128xf32> to vector<64x128xf32>
    %444 = arith.addf %443, %417 : vector<64x128xf32>
    %c0_322 = arith.constant 0 : index
    %c0_323 = arith.constant 0 : index
    %c2496_324 = arith.constant 2496 : index
    %c0_325 = arith.constant 0 : index
    %445 = vector.load %arg6[%c0_322, %c0_323, %c2496_324, %c0_325] : memref<1x1x2560x128xf32, #tpu.memory_space<vmem>>, vector<1x1x64x128xf32>
    %446 = vector.shape_cast %445 : vector<1x1x64x128xf32> to vector<64x128xf32>
    %447 = vector.shape_cast %444 : vector<64x128xf32> to vector<1x1x64x128xf32>
    tpu.vector_store %arg6[%c0_322, %c0_323, %c2496_324, %c0_325], %447 {strides = array<i32>} : memref<1x1x2560x128xf32, #tpu.memory_space<vmem>>, vector<1x1x64x128xf32>,
    return
  }
  func.func @transform_0(%arg0: i32, %arg1: i32, %arg2: i32) -> (i32, i32, i32) {
    %c1_i32 = arith.constant 1 : i32
    %0 = arith.muli %arg1, %c1_i32 : i32
    %1 = arith.addi %0, %arg2 : i32
    %c0_i32 = arith.constant 0 : i32
    %c0_i32_0 = arith.constant 0 : i32
    return %arg0, %c0_i32, %1 : i32, i32, i32
  }
  func.func @transform_1(%arg0: i32, %arg1: i32, %arg2: i32) -> (i32, i32, i32) {
    %c1_i32 = arith.constant 1 : i32
    %0 = arith.muli %arg1, %c1_i32 : i32
    %1 = arith.addi %0, %arg2 : i32
    %c0_i32 = arith.constant 0 : i32
    %c0_i32_0 = arith.constant 0 : i32
    return %arg0, %c0_i32, %1 : i32, i32, i32
  }
  func.func @transform_2(%arg0: i32, %arg1: i32, %arg2: i32) -> (i32, i32) {
    %c0_i32 = arith.constant 0 : i32
    %c0_i32_0 = arith.constant 0 : i32
    %c0_i32_1 = arith.constant 0 : i32
    return %c0_i32, %c0_i32_0 : i32, i32
  }
  func.func @transform_3(%arg0: i32, %arg1: i32, %arg2: i32) -> (i32, i32, i32, i32) {
    %c0_i32 = arith.constant 0 : i32
    %c0_i32_0 = arith.constant 0 : i32
    %c0_i32_1 = arith.constant 0 : i32
    return %arg0, %arg1, %c0_i32, %c0_i32_0 : i32, i32, i32, i32
  }
}

</mosaic_0001>

<llo_original>
// kernel: tpu_custom_call.1
$region0: #{tpu_custom_call.1}
  #allocation0 [shape = 'u32[]', space=smem, size = 0x4, offset = 0x4, fixed_abs, tag = 'smem constant byte address 0x4 - core index']
  #allocation1 [shape = 'u32[72,128]{1,0:T(1,128)}', space=vmem, size = 0x9000, scoped, tag = 'internal scratch']
  %s0 = inlined_call_operand.hbm [shape: bf16[2,4,256], index: 0, kind: input, shape index: {}]
  %s1 = inlined_call_operand.hbm [shape: bf16[2,4,256], index: 1, kind: input, shape index: {}]
  %s2 = inlined_call_operand.vmem [shape: bf16[512,4], index: 2, kind: input, shape index: {}]
  %s3 = inlined_call_operand.hbm [shape: f32[2,1,2560,128], index: 3, kind: output, shape index: {}]
  %s4 = sld [smem:[#allocation0]]
  $region57: #{tpu_custom_call.1} parent=0
    _
  %s6 = ssub.s32 1, %s4
  %s7 = scalar_select 0, %s6, %s4
  $region1: #{tpu_custom_call.1} parent=0
    #allocation2 [shape = 'u8[4096]{0}', space=vmem, size = 0x1000, scoped, tag = 'input window, operand 0']
    #allocation3 [shape = 's32[2]{0}', space=sflag, size = 0x8, scoped, tag = 'scoped memory for tpu_custom_call.1']
    #allocation4 [shape = 's32[2]{0}', space=sflag, size = 0x8, scoped, tag = 'scoped memory for tpu_custom_call.1']
    #allocation5 [shape = 'u8[4096]{0}', space=vmem, size = 0x1000, scoped, tag = 'input window, operand 1']
    #allocation6 [shape = 's32[2]{0}', space=sflag, size = 0x8, scoped, tag = 'scoped memory for tpu_custom_call.1']
    #allocation7 [shape = 'u8[2621440]{0}', space=vmem, size = 0x280000, scoped, tag = 'output window, operand 0']
    %8 = vsyncpa [#allocation3], 0
    %s9 = scalar_lea.sflag [#allocation3], 1
    %10 = vsyncpa %s9, 0
    %11 = vsyncpa [#allocation6], 0
    %s12 = scalar_lea.sflag [#allocation6], 1
    %13 = vsyncpa %s12, 0
    %14 = vsyncpa [#allocation4], 0
    %s15 = scalar_lea.sflag [#allocation4], 1
    %16 = vsyncpa %s15, 0
    loop: start=0, step=1, limit=4
    $region2: #{tpu_custom_call.1} parent=1 // loop_pre_header
      _
    $region3: #{tpu_custom_call.1} parent=1 // loop_header
      %s18 = sphi 0, %s22
      %p19 = scmp.ge.s32.totalorder %s18, 4
      %s25 = sphi 0, %s44
      %s26 = sphi 0, %s40
      %s27 = sphi 0, %s36
      %s28 = sphi 0, %s25
      %s29 = sphi 0, %s26
      %s30 = sphi 0, %s27
      %s31 = sphi 0, %s28
      %s32 = sphi 0, %s29
      %s33 = sphi 0, %s30
      %s51 = sphi 0, %s53
      %s54 = sphi 0, %s51
      %s55 = sphi 0, %s54
      %s71 = sphi 0, %s55
      %s81 = sphi 0, %s83
      %s84 = sphi 0, %s81
      %s85 = sphi 0, %s84
      %s101 = sphi 0, %s85
      %s105 = sphi 0, %s105
      %s107 = sphi 0, %s105
      %s108 = sphi 0, %s107
      %s122 = sphi 0, %s108
      %s130 = sphi 0, %s132
      %s133 = sphi 0, %s130
      %s134 = sphi 0, %s133
      %s150 = sphi 0, %s134
    $region4: #{tpu_custom_call.1} parent=1 // loop_header_branch
      %21 = sbr.rel (%p19) target = $region8
    $region5: #{tpu_custom_call.1} parent=1 // loop_body
      %s23 = ssub.s32 %s18, 1
      %s24 = ssub.s32 %s18, 2
      %s34 = sadd.s32 1, %s27
      %p35 = scmp.ge.s32.totalorder %s34, 1
      %s36 = scalar_select %p35, 0, %s34
      %s37 = sadd.s32 1, %s26
      %s38 = scalar_select %p35, %s37, %s26
      %p39 = scmp.ge.s32.totalorder %s38, 1
      %s40 = scalar_select %p39, 0, %s38
      %s41 = sadd.s32 1, %s25
      %s42 = scalar_select %p39, %s41, %s25
      %p43 = scmp.ge.s32.totalorder %s42, 2
      %s44 = scalar_select %p43, 0, %s42
      %s45 = sadd.s32 %s26, %s27
      %s46 = sadd.s32 %s40, %s36
      %s47 = ssub.s32 %s25, %s44
      %s48 = ssub.s32 %s45, %s46
      %s49 = sor.u32 %s47, %s48
      %p50 = scmp.eq.s32.totalorder %s49, 0
      %s52 = sadd.s32 %s51, 1
      %s53 = scalar_select %p50, %s51, %s52
      %p56 = pneg %p50
      %p57 = scmp.eq.s32.totalorder %s18, 1
      %p58 = por %p56, %p57
      %p59 = scmp.ne.s32.totalorder %s51, %s54
      %p60 = scmp.eq.s32.totalorder %s18, 0
      %p61 = por %p59, %p60
      %p62 = scmp.ne.s32.totalorder %s51, %s54
      %p63 = scmp.eq.s32.totalorder %s23, 1
      %p64 = por %p62, %p63
      %p65 = scmp.ne.s32.totalorder %s54, %s55
      %p66 = scmp.eq.s32.totalorder %s23, 0
      %p67 = por %p65, %p66
      %p68 = scmp.ne.s32.totalorder %s54, %s55
      %p69 = scmp.eq.s32.totalorder %s24, 1
      %p70 = por %p68, %p69
      %p72 = scmp.ne.s32.totalorder %s55, %s71
      %p73 = scmp.eq.s32.totalorder %s24, 0
      %p74 = por %p72, %p73
      %s75 = sadd.s32 %s26, %s27
      %s76 = sadd.s32 %s40, %s36
      %s77 = ssub.s32 %s25, %s44
      %s78 = ssub.s32 %s75, %s76
      %s79 = sor.u32 %s77, %s78
      %p80 = scmp.eq.s32.totalorder %s79, 0
      %s82 = sadd.s32 %s81, 1
      %s83 = scalar_select %p80, %s81, %s82
      %p86 = pneg %p80
      %p87 = scmp.eq.s32.totalorder %s18, 1
      %p88 = por %p86, %p87
      %p89 = scmp.ne.s32.totalorder %s81, %s84
      %p90 = scmp.eq.s32.totalorder %s18, 0
      %p91 = por %p89, %p90
      %p92 = scmp.ne.s32.totalorder %s81, %s84
      %p93 = scmp.eq.s32.totalorder %s23, 1
      %p94 = por %p92, %p93
      %p95 = scmp.ne.s32.totalorder %s84, %s85
      %p96 = scmp.eq.s32.totalorder %s23, 0
      %p97 = por %p95, %p96
      %p98 = scmp.ne.s32.totalorder %s84, %s85
      %p99 = scmp.eq.s32.totalorder %s24, 1
      %p100 = por %p98, %p99
      %p102 = scmp.ne.s32.totalorder %s85, %s101
      %p103 = scmp.eq.s32.totalorder %s24, 0
      %p104 = por %p102, %p103
      %s106 = sadd.s32 %s105, 1
      %p109 = scmp.eq.s32.totalorder %s18, 1
      %p110 = scmp.ne.s32.totalorder %s105, %s107
      %p111 = scmp.eq.s32.totalorder %s18, 0
      %p112 = por %p110, %p111
      %p113 = scmp.ne.s32.totalorder %s105, %s107
      %p114 = scmp.eq.s32.totalorder %s23, 1
      %p115 = por %p113, %p114
      %p116 = scmp.ne.s32.totalorder %s107, %s108
      %p117 = scmp.eq.s32.totalorder %s23, 0
      %p118 = por %p116, %p117
      %p119 = scmp.ne.s32.totalorder %s107, %s108
      %p120 = scmp.eq.s32.totalorder %s24, 1
      %p121 = por %p119, %p120
      %p123 = scmp.ne.s32.totalorder %s108, %s122
      %p124 = scmp.eq.s32.totalorder %s24, 0
      %p125 = por %p123, %p124
      %s126 = ssub.s32 %s25, %s44
      %s127 = ssub.s32 %s26, %s40
      %s128 = sor.u32 %s126, %s127
      %p129 = scmp.eq.s32.totalorder %s128, 0
      %s131 = sadd.s32 %s130, 1
      %s132 = scalar_select %p129, %s130, %s131
      %p135 = pneg %p129
      %p136 = scmp.eq.s32.totalorder %s18, 1
      %p137 = por %p135, %p136
      %p138 = scmp.ne.s32.totalorder %s130, %s133
      %p139 = scmp.eq.s32.totalorder %s18, 0
      %p140 = por %p138, %p139
      %p141 = scmp.ne.s32.totalorder %s130, %s133
      %p142 = scmp.eq.s32.totalorder %s23, 1
      %p143 = por %p141, %p142
      %p144 = scmp.ne.s32.totalorder %s133, %s134
      %p145 = scmp.eq.s32.totalorder %s23, 0
      %p146 = por %p144, %p145
      %p147 = scmp.ne.s32.totalorder %s133, %s134
      %p148 = scmp.eq.s32.totalorder %s24, 1
      %p149 = por %p147, %p148
      %p151 = scmp.ne.s32.totalorder %s134, %s150
      %p152 = scmp.eq.s32.totalorder %s24, 0
      %p153 = por %p151, %p152
      %p154 = scmp.le.s32.totalorder 1, %s18
      %p155 = scmp.lt.s32.totalorder %s18, 3
      %p156 = pnand %p154, %p155
      %p157 = pneg %p156
      // Predicated region
      $region9: #{tpu_custom_call.1} parent=5 // pred_check
        _
      $region10: #{tpu_custom_call.1} parent=5 // pred_check_branch
        %159 = sbr.rel (%p156) target = $region12
      $region11: #{tpu_custom_call.1} parent=5 // pred_region
        %s160 = ssub.s32 %s18, 1
        // Predicated region
        $region13: #{tpu_custom_call.1} parent=11 // pred_check
          %p161 = pneg %p118
        $region14: #{tpu_custom_call.1} parent=11 // pred_check_branch
          %163 = sbr.rel (%p161) target = $region16
        $region15: #{tpu_custom_call.1} parent=11 // pred_region
          _
        $region16: #{tpu_custom_call.1} parent=11 // pred_fallthru
          _
      $region12: #{tpu_custom_call.1} parent=5 // pred_fallthru
        _
      %p164 = scmp.lt.s32.totalorder %s18, 2
      // Predicated region
      $region17: #{tpu_custom_call.1} parent=5 // pred_check
        %p165 = pneg %p164
      $region18: #{tpu_custom_call.1} parent=5 // pred_check_branch
        %167 = sbr.rel (%p165) target = $region20
      $region19: #{tpu_custom_call.1} parent=5 // pred_region
        // Predicated region
        $region21: #{tpu_custom_call.1} parent=19 // pred_check
          %p168 = pneg %p61
        $region22: #{tpu_custom_call.1} parent=19 // pred_check_branch
          %170 = sbr.rel (%p168) target = $region24
        $region23: #{tpu_custom_call.1} parent=19 // pred_region
          %s171 = sand.u32 %s51, 1
          %s172 = scalar_lea.sflag [#allocation3], %s171
          %s173 = sand.u32 %s51, 1
          %s174 = smul.addr %s173, 4
          %s175 = scalar_lea.vmem [#allocation2], %s174
          %s176 = sadd.s32 %s26, %s27
          %s177 = smul.u32 2, %s176
          %179 = vsyncadd %s172, 0
          %s180 = smul.addr %s25, 2
          %s181 = sadd.s32 %s177, %s180
          %s182 = smul.addr %s181, 2
          %s183 = scalar_lea.hbm %s0, %s182
          %s185 = sshll.u32 %s183, 4
          %s186 = int_to_ptr.hbm [resolvable:$true] %s185
          %s187 = sshll.u32 %s175, 4
          %s188 = int_to_ptr.vmem [resolvable:$true] %s187
          %190 = dma.hbm_to_vmem [thread:$0]  %s186, 64, %s188, %s172
        $region24: #{tpu_custom_call.1} parent=19 // pred_fallthru
          _
        // Predicated region
        $region25: #{tpu_custom_call.1} parent=19 // pred_check
          %p191 = pneg %p91
        $region26: #{tpu_custom_call.1} parent=19 // pred_check_branch
          %193 = sbr.rel (%p191) target = $region28
        $region27: #{tpu_custom_call.1} parent=19 // pred_region
          %s194 = sand.u32 %s81, 1
          %s195 = scalar_lea.sflag [#allocation6], %s194
          %s196 = sand.u32 %s81, 1
          %s197 = smul.addr %s196, 4
          %s198 = scalar_lea.vmem [#allocation5], %s197
          %s199 = sadd.s32 %s26, %s27
          %s200 = smul.u32 2, %s199
          %202 = vsyncadd %s195, 0
          %s203 = smul.addr %s25, 2
          %s204 = sadd.s32 %s200, %s203
          %s205 = smul.addr %s204, 2
          %s206 = scalar_lea.hbm %s1, %s205
          %s208 = sshll.u32 %s206, 4
          %s209 = int_to_ptr.hbm [resolvable:$true] %s208
          %s210 = sshll.u32 %s198, 4
          %s211 = int_to_ptr.vmem [resolvable:$true] %s210
          %213 = dma.hbm_to_vmem [thread:$0]  %s209, 64, %s211, %s195
        $region28: #{tpu_custom_call.1} parent=19 // pred_fallthru
          _
      $region20: #{tpu_custom_call.1} parent=5 // pred_fallthru
        _
      %p214 = scmp.le.s32.totalorder 1, %s18
      %p215 = scmp.lt.s32.totalorder %s18, 3
      %p216 = pnand %p214, %p215
      %p217 = pneg %p216
      // Predicated region
      $region29: #{tpu_custom_call.1} parent=5 // pred_check
        _
      $region30: #{tpu_custom_call.1} parent=5 // pred_check_branch
        %219 = sbr.rel (%p216) target = $region32
      $region31: #{tpu_custom_call.1} parent=5 // pred_region
        %s220 = ssub.s32 %s18, 1
        %s221 = sand.u32 %s54, 1
        %s222 = scalar_lea.sflag [#allocation3], %s221
        %s223 = sand.u32 %s54, 1
        %s224 = smul.addr %s223, 4
        %s225 = scalar_lea.vmem [#allocation2], %s224
        // Predicated region
        $region33: #{tpu_custom_call.1} parent=31 // pred_check
          %p226 = pneg %p67
        $region34: #{tpu_custom_call.1} parent=31 // pred_check_branch
          %228 = sbr.rel (%p226) target = $region36
        $region35: #{tpu_custom_call.1} parent=31 // pred_region
          %230 = dma.done %s222, 64
        $region36: #{tpu_custom_call.1} parent=31 // pred_fallthru
          _
        %s231 = sand.u32 %s84, 1
        %s232 = scalar_lea.sflag [#allocation6], %s231
        %s233 = sand.u32 %s84, 1
        %s234 = smul.addr %s233, 4
        %s235 = scalar_lea.vmem [#allocation5], %s234
        // Predicated region
        $region37: #{tpu_custom_call.1} parent=31 // pred_check
          %p236 = pneg %p97
        $region38: #{tpu_custom_call.1} parent=31 // pred_check_branch
          %238 = sbr.rel (%p236) target = $region40
        $region39: #{tpu_custom_call.1} parent=31 // pred_region
          %240 = dma.done %s232, 64
        $region40: #{tpu_custom_call.1} parent=31 // pred_fallthru
          _
        %s241 = sand.u32 %s54, 1
        %s242 = scalar_lea.sflag [#allocation3], %s241
        %s243 = sand.u32 %s54, 1
        %s244 = smul.addr %s243, 4
        %s245 = scalar_lea.vmem [#allocation2], %s244
        %p246 = pneg %p67
        %p247 = pneg %p64
        %s248 = sand.u32 %s84, 1
        %s249 = scalar_lea.sflag [#allocation6], %s248
        %s250 = sand.u32 %s84, 1
        %s251 = smul.addr %s250, 4
        %s252 = scalar_lea.vmem [#allocation5], %s251
        %p253 = pneg %p97
        %p254 = pneg %p94
        %p255 = pneg %p118
        %p256 = pneg %p115
        %p257 = pneg %p146
        %p258 = pneg %p143
        %s259 = sand.u32 %s133, 1
        %s260 = scalar_lea.sflag [#allocation4], %s259
        %s261 = sand.u32 %s133, 1
        %s262 = smul.addr %s261, 2560
        %s263 = scalar_lea.vmem [#allocation7], %s262
        %s264 = sadd.s32 %s29, %s30
        %s265 = smul.u32 2, %s264
        %s266 = sadd.s32 %s29, %s30
        %s267 = smul.u32 2, %s266
        %p269 = scmp.eq.s32.totalorder %s30, 0
        // Predicated region
        $region41: #{tpu_custom_call.1} parent=31 // pred_check
          %p270 = pneg %p269
        $region42: #{tpu_custom_call.1} parent=31 // pred_check_branch
          %272 = sbr.rel (%p270) target = $region44
        $region43: #{tpu_custom_call.1} parent=31 // pred_region
          %273 = vst [vmem:[%s263] sm:$0xff] 0.0
          %274 = vst [vmem:[%s263 + $0x8] sm:$0xff] 0.0
          %275 = vst [vmem:[%s263 + $0x10] sm:$0xff] 0.0
          %276 = vst [vmem:[%s263 + $0x18] sm:$0xff] 0.0
          %277 = vst [vmem:[%s263 + $0x20] sm:$0xff] 0.0
          %278 = vst [vmem:[%s263 + $0x28] sm:$0xff] 0.0
          %279 = vst [vmem:[%s263 + $0x30] sm:$0xff] 0.0
          %280 = vst [vmem:[%s263 + $0x38] sm:$0xff] 0.0
          %281 = vst [vmem:[%s263 + $0x40] sm:$0xff] 0.0
          %282 = vst [vmem:[%s263 + $0x48] sm:$0xff] 0.0
          %283 = vst [vmem:[%s263 + $0x50] sm:$0xff] 0.0
          %284 = vst [vmem:[%s263 + $0x58] sm:$0xff] 0.0
          %285 = vst [vmem:[%s263 + $0x60] sm:$0xff] 0.0
          %286 = vst [vmem:[%s263 + $0x68] sm:$0xff] 0.0
          %287 = vst [vmem:[%s263 + $0x70] sm:$0xff] 0.0
          %288 = vst [vmem:[%s263 + $0x78] sm:$0xff] 0.0
          %289 = vst [vmem:[%s263 + $0x80] sm:$0xff] 0.0
          %290 = vst [vmem:[%s263 + $0x88] sm:$0xff] 0.0
          %291 = vst [vmem:[%s263 + $0x90] sm:$0xff] 0.0
          %292 = vst [vmem:[%s263 + $0x98] sm:$0xff] 0.0
          %293 = vst [vmem:[%s263 + $0xa0] sm:$0xff] 0.0
          %294 = vst [vmem:[%s263 + $0xa8] sm:$0xff] 0.0
          %295 = vst [vmem:[%s263 + $0xb0] sm:$0xff] 0.0
          %296 = vst [vmem:[%s263 + $0xb8] sm:$0xff] 0.0
          %297 = vst [vmem:[%s263 + $0xc0] sm:$0xff] 0.0
          %298 = vst [vmem:[%s263 + $0xc8] sm:$0xff] 0.0
          %299 = vst [vmem:[%s263 + $0xd0] sm:$0xff] 0.0
          %300 = vst [vmem:[%s263 + $0xd8] sm:$0xff] 0.0
          %301 = vst [vmem:[%s263 + $0xe0] sm:$0xff] 0.0
          %302 = vst [vmem:[%s263 + $0xe8] sm:$0xff] 0.0
          %303 = vst [vmem:[%s263 + $0xf0] sm:$0xff] 0.0
          %304 = vst [vmem:[%s263 + $0xf8] sm:$0xff] 0.0
          %305 = vst [vmem:[%s263 + $0x100] sm:$0xff] 0.0
          %306 = vst [vmem:[%s263 + $0x108] sm:$0xff] 0.0
          %307 = vst [vmem:[%s263 + $0x110] sm:$0xff] 0.0
          %308 = vst [vmem:[%s263 + $0x118] sm:$0xff] 0.0
          %309 = vst [vmem:[%s263 + $0x120] sm:$0xff] 0.0
          %310 = vst [vmem:[%s263 + $0x128] sm:$0xff] 0.0
          %311 = vst [vmem:[%s263 + $0x130] sm:$0xff] 0.0
          %312 = vst [vmem:[%s263 + $0x138] sm:$0xff] 0.0
          %313 = vst [vmem:[%s263 + $0x140] sm:$0xff] 0.0
          %314 = vst [vmem:[%s263 + $0x148] sm:$0xff] 0.0
          %315 = vst [vmem:[%s263 + $0x150] sm:$0xff] 0.0
          %316 = vst [vmem:[%s263 + $0x158] sm:$0xff] 0.0
          %317 = vst [vmem:[%s263 + $0x160] sm:$0xff] 0.0
          %318 = vst [vmem:[%s263 + $0x168] sm:$0xff] 0.0
          %319 = vst [vmem:[%s263 + $0x170] sm:$0xff] 0.0
          %320 = vst [vmem:[%s263 + $0x178] sm:$0xff] 0.0
          %321 = vst [vmem:[%s263 + $0x180] sm:$0xff] 0.0
          %322 = vst [vmem:[%s263 + $0x188] sm:$0xff] 0.0
          %323 = vst [vmem:[%s263 + $0x190] sm:$0xff] 0.0
          %324 = vst [vmem:[%s263 + $0x198] sm:$0xff] 0.0
          %325 = vst [vmem:[%s263 + $0x1a0] sm:$0xff] 0.0
          %326 = vst [vmem:[%s263 + $0x1a8] sm:$0xff] 0.0
          %327 = vst [vmem:[%s263 + $0x1b0] sm:$0xff] 0.0
          %328 = vst [vmem:[%s263 + $0x1b8] sm:$0xff] 0.0
          %329 = vst [vmem:[%s263 + $0x1c0] sm:$0xff] 0.0
          %330 = vst [vmem:[%s263 + $0x1c8] sm:$0xff] 0.0
          %331 = vst [vmem:[%s263 + $0x1d0] sm:$0xff] 0.0
          %332 = vst [vmem:[%s263 + $0x1d8] sm:$0xff] 0.0
          %333 = vst [vmem:[%s263 + $0x1e0] sm:$0xff] 0.0
          %334 = vst [vmem:[%s263 + $0x1e8] sm:$0xff] 0.0
          %335 = vst [vmem:[%s263 + $0x1f0] sm:$0xff] 0.0
          %336 = vst [vmem:[%s263 + $0x1f8] sm:$0xff] 0.0
          %337 = vst [vmem:[%s263 + $0x200] sm:$0xff] 0.0
          %338 = vst [vmem:[%s263 + $0x208] sm:$0xff] 0.0
          %339 = vst [vmem:[%s263 + $0x210] sm:$0xff] 0.0
          %340 = vst [vmem:[%s263 + $0x218] sm:$0xff] 0.0
          %341 = vst [vmem:[%s263 + $0x220] sm:$0xff] 0.0
          %342 = vst [vmem:[%s263 + $0x228] sm:$0xff] 0.0
          %343 = vst [vmem:[%s263 + $0x230] sm:$0xff] 0.0
          %344 = vst [vmem:[%s263 + $0x238] sm:$0xff] 0.0
          %345 = vst [vmem:[%s263 + $0x240] sm:$0xff] 0.0
          %346 = vst [vmem:[%s263 + $0x248] sm:$0xff] 0.0
          %347 = vst [vmem:[%s263 + $0x250] sm:$0xff] 0.0
          %348 = vst [vmem:[%s263 + $0x258] sm:$0xff] 0.0
          %349 = vst [vmem:[%s263 + $0x260] sm:$0xff] 0.0
          %350 = vst [vmem:[%s263 + $0x268] sm:$0xff] 0.0
          %351 = vst [vmem:[%s263 + $0x270] sm:$0xff] 0.0
          %352 = vst [vmem:[%s263 + $0x278] sm:$0xff] 0.0
          %353 = vst [vmem:[%s263 + $0x280] sm:$0xff] 0.0
          %354 = vst [vmem:[%s263 + $0x288] sm:$0xff] 0.0
          %355 = vst [vmem:[%s263 + $0x290] sm:$0xff] 0.0
          %356 = vst [vmem:[%s263 + $0x298] sm:$0xff] 0.0
          %357 = vst [vmem:[%s263 + $0x2a0] sm:$0xff] 0.0
          %358 = vst [vmem:[%s263 + $0x2a8] sm:$0xff] 0.0
          %359 = vst [vmem:[%s263 + $0x2b0] sm:$0xff] 0.0
          %360 = vst [vmem:[%s263 + $0x2b8] sm:$0xff] 0.0
          %361 = vst [vmem:[%s263 + $0x2c0] sm:$0xff] 0.0
          %362 = vst [vmem:[%s263 + $0x2c8] sm:$0xff] 0.0
          %363 = vst [vmem:[%s263 + $0x2d0] sm:$0xff] 0.0
          %364 = vst [vmem:[%s263 + $0x2d8] sm:$0xff] 0.0
          %365 = vst [vmem:[%s263 + $0x2e0] sm:$0xff] 0.0
          %366 = vst [vmem:[%s263 + $0x2e8] sm:$0xff] 0.0
          %367 = vst [vmem:[%s263 + $0x2f0] sm:$0xff] 0.0
          %368 = vst [vmem:[%s263 + $0x2f8] sm:$0xff] 0.0
          %369 = vst [vmem:[%s263 + $0x300] sm:$0xff] 0.0
          %370 = vst [vmem:[%s263 + $0x308] sm:$0xff] 0.0
          %371 = vst [vmem:[%s263 + $0x310] sm:$0xff] 0.0
          %372 = vst [vmem:[%s263 + $0x318] sm:$0xff] 0.0
          %373 = vst [vmem:[%s263 + $0x320] sm:$0xff] 0.0
          %374 = vst [vmem:[%s263 + $0x328] sm:$0xff] 0.0
          %375 = vst [vmem:[%s263 + $0x330] sm:$0xff] 0.0
          %376 = vst [vmem:[%s263 + $0x338] sm:$0xff] 0.0
          %377 = vst [vmem:[%s263 + $0x340] sm:$0xff] 0.0
          %378 = vst [vmem:[%s263 + $0x348] sm:$0xff] 0.0
          %379 = vst [vmem:[%s263 + $0x350] sm:$0xff] 0.0
          %380 = vst [vmem:[%s263 + $0x358] sm:$0xff] 0.0
          %381 = vst [vmem:[%s263 + $0x360] sm:$0xff] 0.0
          %382 = vst [vmem:[%s263 + $0x368] sm:$0xff] 0.0
          %383 = vst [vmem:[%s263 + $0x370] sm:$0xff] 0.0
          %384 = vst [vmem:[%s263 + $0x378] sm:$0xff] 0.0
          %385 = vst [vmem:[%s263 + $0x380] sm:$0xff] 0.0
          %386 = vst [vmem:[%s263 + $0x388] sm:$0xff] 0.0
          %387 = vst [vmem:[%s263 + $0x390] sm:$0xff] 0.0
          %388 = vst [vmem:[%s263 + $0x398] sm:$0xff] 0.0
          %389 = vst [vmem:[%s263 + $0x3a0] sm:$0xff] 0.0
          %390 = vst [vmem:[%s263 + $0x3a8] sm:$0xff] 0.0
          %391 = vst [vmem:[%s263 + $0x3b0] sm:$0xff] 0.0
          %392 = vst [vmem:[%s263 + $0x3b8] sm:$0xff] 0.0
          %393 = vst [vmem:[%s263 + $0x3c0] sm:$0xff] 0.0
          %394 = vst [vmem:[%s263 + $0x3c8] sm:$0xff] 0.0
          %395 = vst [vmem:[%s263 + $0x3d0] sm:$0xff] 0.0
          %396 = vst [vmem:[%s263 + $0x3d8] sm:$0xff] 0.0
          %397 = vst [vmem:[%s263 + $0x3e0] sm:$0xff] 0.0
          %398 = vst [vmem:[%s263 + $0x3e8] sm:$0xff] 0.0
          %399 = vst [vmem:[%s263 + $0x3f0] sm:$0xff] 0.0
          %400 = vst [vmem:[%s263 + $0x3f8] sm:$0xff] 0.0
          %401 = vst [vmem:[%s263 + $0x400] sm:$0xff] 0.0
          %402 = vst [vmem:[%s263 + $0x408] sm:$0xff] 0.0
          %403 = vst [vmem:[%s263 + $0x410] sm:$0xff] 0.0
          %404 = vst [vmem:[%s263 + $0x418] sm:$0xff] 0.0
          %405 = vst [vmem:[%s263 + $0x420] sm:$0xff] 0.0
          %406 = vst [vmem:[%s263 + $0x428] sm:$0xff] 0.0
          %407 = vst [vmem:[%s263 + $0x430] sm:$0xff] 0.0
          %408 = vst [vmem:[%s263 + $0x438] sm:$0xff] 0.0
          %409 = vst [vmem:[%s263 + $0x440] sm:$0xff] 0.0
          %410 = vst [vmem:[%s263 + $0x448] sm:$0xff] 0.0
          %411 = vst [vmem:[%s263 + $0x450] sm:$0xff] 0.0
          %412 = vst [vmem:[%s263 + $0x458] sm:$0xff] 0.0
          %413 = vst [vmem:[%s263 + $0x460] sm:$0xff] 0.0
          %414 = vst [vmem:[%s263 + $0x468] sm:$0xff] 0.0
          %415 = vst [vmem:[%s263 + $0x470] sm:$0xff] 0.0
          %416 = vst [vmem:[%s263 + $0x478] sm:$0xff] 0.0
          %417 = vst [vmem:[%s263 + $0x480] sm:$0xff] 0.0
          %418 = vst [vmem:[%s263 + $0x488] sm:$0xff] 0.0
          %419 = vst [vmem:[%s263 + $0x490] sm:$0xff] 0.0
          %420 = vst [vmem:[%s263 + $0x498] sm:$0xff] 0.0
          %421 = vst [vmem:[%s263 + $0x4a0] sm:$0xff] 0.0
          %422 = vst [vmem:[%s263 + $0x4a8] sm:$0xff] 0.0
          %423 = vst [vmem:[%s263 + $0x4b0] sm:$0xff] 0.0
          %424 = vst [vmem:[%s263 + $0x4b8] sm:$0xff] 0.0
          %425 = vst [vmem:[%s263 + $0x4c0] sm:$0xff] 0.0
          %426 = vst [vmem:[%s263 + $0x4c8] sm:$0xff] 0.0
          %427 = vst [vmem:[%s263 + $0x4d0] sm:$0xff] 0.0
          %428 = vst [vmem:[%s263 + $0x4d8] sm:$0xff] 0.0
          %429 = vst [vmem:[%s263 + $0x4e0] sm:$0xff] 0.0
          %430 = vst [vmem:[%s263 + $0x4e8] sm:$0xff] 0.0
          %431 = vst [vmem:[%s263 + $0x4f0] sm:$0xff] 0.0
          %432 = vst [vmem:[%s263 + $0x4f8] sm:$0xff] 0.0
          %433 = vst [vmem:[%s263 + $0x500] sm:$0xff] 0.0
          %434 = vst [vmem:[%s263 + $0x508] sm:$0xff] 0.0
          %435 = vst [vmem:[%s263 + $0x510] sm:$0xff] 0.0
          %436 = vst [vmem:[%s263 + $0x518] sm:$0xff] 0.0
          %437 = vst [vmem:[%s263 + $0x520] sm:$0xff] 0.0
          %438 = vst [vmem:[%s263 + $0x528] sm:$0xff] 0.0
          %439 = vst [vmem:[%s263 + $0x530] sm:$0xff] 0.0
          %440 = vst [vmem:[%s263 + $0x538] sm:$0xff] 0.0
          %441 = vst [vmem:[%s263 + $0x540] sm:$0xff] 0.0
          %442 = vst [vmem:[%s263 + $0x548] sm:$0xff] 0.0
          %443 = vst [vmem:[%s263 + $0x550] sm:$0xff] 0.0
          %444 = vst [vmem:[%s263 + $0x558] sm:$0xff] 0.0
          %445 = vst [vmem:[%s263 + $0x560] sm:$0xff] 0.0
          %446 = vst [vmem:[%s263 + $0x568] sm:$0xff] 0.0
          %447 = vst [vmem:[%s263 + $0x570] sm:$0xff] 0.0
          %448 = vst [vmem:[%s263 + $0x578] sm:$0xff] 0.0
          %449 = vst [vmem:[%s263 + $0x580] sm:$0xff] 0.0
          %450 = vst [vmem:[%s263 + $0x588] sm:$0xff] 0.0
          %451 = vst [vmem:[%s263 + $0x590] sm:$0xff] 0.0
          %452 = vst [vmem:[%s263 + $0x598] sm:$0xff] 0.0
          %453 = vst [vmem:[%s263 + $0x5a0] sm:$0xff] 0.0
          %454 = vst [vmem:[%s263 + $0x5a8] sm:$0xff] 0.0
          %455 = vst [vmem:[%s263 + $0x5b0] sm:$0xff] 0.0
          %456 = vst [vmem:[%s263 + $0x5b8] sm:$0xff] 0.0
          %457 = vst [vmem:[%s263 + $0x5c0] sm:$0xff] 0.0
          %458 = vst [vmem:[%s263 + $0x5c8] sm:$0xff] 0.0
          %459 = vst [vmem:[%s263 + $0x5d0] sm:$0xff] 0.0
          %460 = vst [vmem:[%s263 + $0x5d8] sm:$0xff] 0.0
          %461 = vst [vmem:[%s263 + $0x5e0] sm:$0xff] 0.0
          %462 = vst [vmem:[%s263 + $0x5e8] sm:$0xff] 0.0
          %463 = vst [vmem:[%s263 + $0x5f0] sm:$0xff] 0.0
          %464 = vst [vmem:[%s263 + $0x5f8] sm:$0xff] 0.0
          %465 = vst [vmem:[%s263 + $0x600] sm:$0xff] 0.0
          %466 = vst [vmem:[%s263 + $0x608] sm:$0xff] 0.0
          %467 = vst [vmem:[%s263 + $0x610] sm:$0xff] 0.0
          %468 = vst [vmem:[%s263 + $0x618] sm:$0xff] 0.0
          %469 = vst [vmem:[%s263 + $0x620] sm:$0xff] 0.0
          %470 = vst [vmem:[%s263 + $0x628] sm:$0xff] 0.0
          %471 = vst [vmem:[%s263 + $0x630] sm:$0xff] 0.0
          %472 = vst [vmem:[%s263 + $0x638] sm:$0xff] 0.0
          %473 = vst [vmem:[%s263 + $0x640] sm:$0xff] 0.0
          %474 = vst [vmem:[%s263 + $0x648] sm:$0xff] 0.0
          %475 = vst [vmem:[%s263 + $0x650] sm:$0xff] 0.0
          %476 = vst [vmem:[%s263 + $0x658] sm:$0xff] 0.0
          %477 = vst [vmem:[%s263 + $0x660] sm:$0xff] 0.0
          %478 = vst [vmem:[%s263 + $0x668] sm:$0xff] 0.0
          %479 = vst [vmem:[%s263 + $0x670] sm:$0xff] 0.0
          %480 = vst [vmem:[%s263 + $0x678] sm:$0xff] 0.0
          %481 = vst [vmem:[%s263 + $0x680] sm:$0xff] 0.0
          %482 = vst [vmem:[%s263 + $0x688] sm:$0xff] 0.0
          %483 = vst [vmem:[%s263 + $0x690] sm:$0xff] 0.0
          %484 = vst [vmem:[%s263 + $0x698] sm:$0xff] 0.0
          %485 = vst [vmem:[%s263 + $0x6a0] sm:$0xff] 0.0
          %486 = vst [vmem:[%s263 + $0x6a8] sm:$0xff] 0.0
          %487 = vst [vmem:[%s263 + $0x6b0] sm:$0xff] 0.0
          %488 = vst [vmem:[%s263 + $0x6b8] sm:$0xff] 0.0
          %489 = vst [vmem:[%s263 + $0x6c0] sm:$0xff] 0.0
          %490 = vst [vmem:[%s263 + $0x6c8] sm:$0xff] 0.0
          %491 = vst [vmem:[%s263 + $0x6d0] sm:$0xff] 0.0
          %492 = vst [vmem:[%s263 + $0x6d8] sm:$0xff] 0.0
          %493 = vst [vmem:[%s263 + $0x6e0] sm:$0xff] 0.0
          %494 = vst [vmem:[%s263 + $0x6e8] sm:$0xff] 0.0
          %495 = vst [vmem:[%s263 + $0x6f0] sm:$0xff] 0.0
          %496 = vst [vmem:[%s263 + $0x6f8] sm:$0xff] 0.0
          %497 = vst [vmem:[%s263 + $0x700] sm:$0xff] 0.0
          %498 = vst [vmem:[%s263 + $0x708] sm:$0xff] 0.0
          %499 = vst [vmem:[%s263 + $0x710] sm:$0xff] 0.0
          %500 = vst [vmem:[%s263 + $0x718] sm:$0xff] 0.0
          %501 = vst [vmem:[%s263 + $0x720] sm:$0xff] 0.0
          %502 = vst [vmem:[%s263 + $0x728] sm:$0xff] 0.0
          %503 = vst [vmem:[%s263 + $0x730] sm:$0xff] 0.0
          %504 = vst [vmem:[%s263 + $0x738] sm:$0xff] 0.0
          %505 = vst [vmem:[%s263 + $0x740] sm:$0xff] 0.0
          %506 = vst [vmem:[%s263 + $0x748] sm:$0xff] 0.0
          %507 = vst [vmem:[%s263 + $0x750] sm:$0xff] 0.0
          %508 = vst [vmem:[%s263 + $0x758] sm:$0xff] 0.0
          %509 = vst [vmem:[%s263 + $0x760] sm:$0xff] 0.0
          %510 = vst [vmem:[%s263 + $0x768] sm:$0xff] 0.0
          %511 = vst [vmem:[%s263 + $0x770] sm:$0xff] 0.0
          %512 = vst [vmem:[%s263 + $0x778] sm:$0xff] 0.0
          %513 = vst [vmem:[%s263 + $0x780] sm:$0xff] 0.0
          %514 = vst [vmem:[%s263 + $0x788] sm:$0xff] 0.0
          %515 = vst [vmem:[%s263 + $0x790] sm:$0xff] 0.0
          %516 = vst [vmem:[%s263 + $0x798] sm:$0xff] 0.0
          %517 = vst [vmem:[%s263 + $0x7a0] sm:$0xff] 0.0
          %518 = vst [vmem:[%s263 + $0x7a8] sm:$0xff] 0.0
          %519 = vst [vmem:[%s263 + $0x7b0] sm:$0xff] 0.0
          %520 = vst [vmem:[%s263 + $0x7b8] sm:$0xff] 0.0
          %521 = vst [vmem:[%s263 + $0x7c0] sm:$0xff] 0.0
          %522 = vst [vmem:[%s263 + $0x7c8] sm:$0xff] 0.0
          %523 = vst [vmem:[%s263 + $0x7d0] sm:$0xff] 0.0
          %524 = vst [vmem:[%s263 + $0x7d8] sm:$0xff] 0.0
          %525 = vst [vmem:[%s263 + $0x7e0] sm:$0xff] 0.0
          %526 = vst [vmem:[%s263 + $0x7e8] sm:$0xff] 0.0
          %527 = vst [vmem:[%s263 + $0x7f0] sm:$0xff] 0.0
          %528 = vst [vmem:[%s263 + $0x7f8] sm:$0xff] 0.0
          %529 = vst [vmem:[%s263 + $0x800] sm:$0xff] 0.0
          %530 = vst [vmem:[%s263 + $0x808] sm:$0xff] 0.0
          %531 = vst [vmem:[%s263 + $0x810] sm:$0xff] 0.0
          %532 = vst [vmem:[%s263 + $0x818] sm:$0xff] 0.0
          %533 = vst [vmem:[%s263 + $0x820] sm:$0xff] 0.0
          %534 = vst [vmem:[%s263 + $0x828] sm:$0xff] 0.0
          %535 = vst [vmem:[%s263 + $0x830] sm:$0xff] 0.0
          %536 = vst [vmem:[%s263 + $0x838] sm:$0xff] 0.0
          %537 = vst [vmem:[%s263 + $0x840] sm:$0xff] 0.0
          %538 = vst [vmem:[%s263 + $0x848] sm:$0xff] 0.0
          %539 = vst [vmem:[%s263 + $0x850] sm:$0xff] 0.0
          %540 = vst [vmem:[%s263 + $0x858] sm:$0xff] 0.0
          %541 = vst [vmem:[%s263 + $0x860] sm:$0xff] 0.0
          %542 = vst [vmem:[%s263 + $0x868] sm:$0xff] 0.0
          %543 = vst [vmem:[%s263 + $0x870] sm:$0xff] 0.0
          %544 = vst [vmem:[%s263 + $0x878] sm:$0xff] 0.0
          %545 = vst [vmem:[%s263 + $0x880] sm:$0xff] 0.0
          %546 = vst [vmem:[%s263 + $0x888] sm:$0xff] 0.0
          %547 = vst [vmem:[%s263 + $0x890] sm:$0xff] 0.0
          %548 = vst [vmem:[%s263 + $0x898] sm:$0xff] 0.0
          %549 = vst [vmem:[%s263 + $0x8a0] sm:$0xff] 0.0
          %550 = vst [vmem:[%s263 + $0x8a8] sm:$0xff] 0.0
          %551 = vst [vmem:[%s263 + $0x8b0] sm:$0xff] 0.0
          %552 = vst [vmem:[%s263 + $0x8b8] sm:$0xff] 0.0
          %553 = vst [vmem:[%s263 + $0x8c0] sm:$0xff] 0.0
          %554 = vst [vmem:[%s263 + $0x8c8] sm:$0xff] 0.0
          %555 = vst [vmem:[%s263 + $0x8d0] sm:$0xff] 0.0
          %556 = vst [vmem:[%s263 + $0x8d8] sm:$0xff] 0.0
          %557 = vst [vmem:[%s263 + $0x8e0] sm:$0xff] 0.0
          %558 = vst [vmem:[%s263 + $0x8e8] sm:$0xff] 0.0
          %559 = vst [vmem:[%s263 + $0x8f0] sm:$0xff] 0.0
          %560 = vst [vmem:[%s263 + $0x8f8] sm:$0xff] 0.0
          %561 = vst [vmem:[%s263 + $0x900] sm:$0xff] 0.0
          %562 = vst [vmem:[%s263 + $0x908] sm:$0xff] 0.0
          %563 = vst [vmem:[%s263 + $0x910] sm:$0xff] 0.0
          %564 = vst [vmem:[%s263 + $0x918] sm:$0xff] 0.0
          %565 = vst [vmem:[%s263 + $0x920] sm:$0xff] 0.0
          %566 = vst [vmem:[%s263 + $0x928] sm:$0xff] 0.0
          %567 = vst [vmem:[%s263 + $0x930] sm:$0xff] 0.0
          %568 = vst [vmem:[%s263 + $0x938] sm:$0xff] 0.0
          %569 = vst [vmem:[%s263 + $0x940] sm:$0xff] 0.0
          %570 = vst [vmem:[%s263 + $0x948] sm:$0xff] 0.0
          %571 = vst [vmem:[%s263 + $0x950] sm:$0xff] 0.0
          %572 = vst [vmem:[%s263 + $0x958] sm:$0xff] 0.0
          %573 = vst [vmem:[%s263 + $0x960] sm:$0xff] 0.0
          %574 = vst [vmem:[%s263 + $0x968] sm:$0xff] 0.0
          %575 = vst [vmem:[%s263 + $0x970] sm:$0xff] 0.0
          %576 = vst [vmem:[%s263 + $0x978] sm:$0xff] 0.0
          %577 = vst [vmem:[%s263 + $0x980] sm:$0xff] 0.0
          %578 = vst [vmem:[%s263 + $0x988] sm:$0xff] 0.0
          %579 = vst [vmem:[%s263 + $0x990] sm:$0xff] 0.0
          %580 = vst [vmem:[%s263 + $0x998] sm:$0xff] 0.0
          %581 = vst [vmem:[%s263 + $0x9a0] sm:$0xff] 0.0
          %582 = vst [vmem:[%s263 + $0x9a8] sm:$0xff] 0.0
          %583 = vst [vmem:[%s263 + $0x9b0] sm:$0xff] 0.0
          %584 = vst [vmem:[%s263 + $0x9b8] sm:$0xff] 0.0
          %585 = vst [vmem:[%s263 + $0x9c0] sm:$0xff] 0.0
          %586 = vst [vmem:[%s263 + $0x9c8] sm:$0xff] 0.0
          %587 = vst [vmem:[%s263 + $0x9d0] sm:$0xff] 0.0
          %588 = vst [vmem:[%s263 + $0x9d8] sm:$0xff] 0.0
          %589 = vst [vmem:[%s263 + $0x9e0] sm:$0xff] 0.0
          %590 = vst [vmem:[%s263 + $0x9e8] sm:$0xff] 0.0
          %591 = vst [vmem:[%s263 + $0x9f0] sm:$0xff] 0.0
          %592 = vst [vmem:[%s263 + $0x9f8] sm:$0xff] 0.0
        $region44: #{tpu_custom_call.1} parent=31 // pred_fallthru
          _
        %v593 = vld [vmem:[%s225] sm:$0xf]
        %v594 = vld [vmem:[%s235] sm:$0xf]
        %596 = vst [vmem:[#allocation1] ss:$4 sm:$0xff] %v593
        %v597 = vld.sshfl [vmem:[#allocation1] sm:$0xff pattern:$0x73625140]
        %v598 = vld.sshfl [vmem:[#allocation1 + $0x8] sm:$0xff pattern:$0x73625140]
        %600 = vst [vmem:[#allocation1] ss:$4 sm:$0xff] %v594
        %v601 = vld.sshfl [vmem:[#allocation1] sm:$0xff pattern:$0x73625140]
        %v602 = vld.sshfl [vmem:[#allocation1 + $0x8] sm:$0xff pattern:$0x73625140]
        %v603 = vld [vmem:[%s2] sm:$0xf]
        %v604 = vld [vmem:[%s2 + $0x4] sm:$0xf]
        %v605 = vld [vmem:[%s2 + $0x8] sm:$0xf]
        %v606 = vld [vmem:[%s2 + $0xc] sm:$0xf]
        %v607 = vld [vmem:[%s2 + $0x10] sm:$0xf]
        %v608 = vld [vmem:[%s2 + $0x14] sm:$0xf]
        %v609 = vld [vmem:[%s2 + $0x18] sm:$0xf]
        %v610 = vld [vmem:[%s2 + $0x1c] sm:$0xf]
        %v619 = vunpack.c.l.b16 %v603
        %v620 = vunpack.c.l.b16 %v604
        %v621 = vunpack.c.l.b16 %v605
        %v622 = vunpack.c.l.b16 %v606
        %v623 = vunpack.c.l.b16 %v607
        %v624 = vunpack.c.l.b16 %v608
        %v625 = vunpack.c.l.b16 %v609
        %v626 = vunpack.c.l.b16 %v610
        %v627 = vpack.c.b16 %v620, %v619
        %v628 = vpack.c.b16 %v622, %v621
        %v629 = vpack.c.b16 %v624, %v623
        %v630 = vpack.c.b16 %v626, %v625
        %vm631 = vcmask 31744
        %v633 = vsel %vm631, %v627, 0
        %v636 = vsel %vm631, %v628, 0
        %v639 = vsel %vm631, %v629, 0
        %v642 = vsel %vm631, %v630, 0
        %vm644 = vcmask 1041408
        %v645 = vsel %vm644, %v597, 0
        %v647 = vsel %vm644, %v598, 0
        %v649 = vsel %vm644, %v601, 0
        %v651 = vsel %vm644, %v602, 0
        %653 = vmatpush.bf16.msra.mxu0 0
        %654 = vmatpush.bf16.msra.mxu0 0
        %655 = vmatpush.bf16.msra.mxu0 0
        %656 = vmatpush.bf16.msra.mxu0 0
        %657 = vmatpush.bf16.msra.mxu0 0
        %658 = vmatpush.bf16.msra.mxu0 0
        %659 = vmatpush.bf16.msra.mxu0 0
        %660 = vmatpush.bf16.msra.mxu0 %v645
        %661 = vmatmul.bf16.gmra.mxu0 %v633
        %v662 = vpop.f32.mrf.mxu0
        %v663 = vadd.f32 0.0, %v662
        %v664 = vpop.f32.mrf.mxu0
        %v665 = vadd.f32 0.0, %v664
        %666 = vmatmul.bf16.gmra.mxu0 %v636
        %v667 = vpop.f32.mrf.mxu0
        %v668 = vadd.f32 0.0, %v667
        %v669 = vpop.f32.mrf.mxu0
        %v670 = vadd.f32 0.0, %v669
        %671 = vmatmul.bf16.gmra.mxu0 %v639
        %v672 = vpop.f32.mrf.mxu0
        %v673 = vadd.f32 0.0, %v672
        %v674 = vpop.f32.mrf.mxu0
        %v675 = vadd.f32 0.0, %v674
        %676 = vmatmul.bf16.gmra.mxu0 %v642
        %v677 = vpop.f32.mrf.mxu0
        %v678 = vadd.f32 0.0, %v677
        %v679 = vpop.f32.mrf.mxu0
        %v680 = vadd.f32 0.0, %v679
        %681 = vdwg.mxu0
        %682 = vmatpush.bf16.msra.mxu0 0
        %683 = vmatpush.bf16.msra.mxu0 0
        %684 = vmatpush.bf16.msra.mxu0 0
        %685 = vmatpush.bf16.msra.mxu0 0
        %686 = vmatpush.bf16.msra.mxu0 0
        %687 = vmatpush.bf16.msra.mxu0 0
        %688 = vmatpush.bf16.msra.mxu0 0
        %689 = vmatpush.bf16.msra.mxu0 %v647
        %690 = vmatmul.bf16.gmra.mxu0 %v633
        %v691 = vpop.f32.mrf.mxu0
        %v692 = vadd.f32 0.0, %v691
        %v693 = vpop.f32.mrf.mxu0
        %v694 = vadd.f32 0.0, %v693
        %695 = vmatmul.bf16.gmra.mxu0 %v636
        %v696 = vpop.f32.mrf.mxu0
        %v697 = vadd.f32 0.0, %v696
        %v698 = vpop.f32.mrf.mxu0
        %v699 = vadd.f32 0.0, %v698
        %700 = vmatmul.bf16.gmra.mxu0 %v639
        %v701 = vpop.f32.mrf.mxu0
        %v702 = vadd.f32 0.0, %v701
        %v703 = vpop.f32.mrf.mxu0
        %v704 = vadd.f32 0.0, %v703
        %705 = vmatmul.bf16.gmra.mxu0 %v642
        %v706 = vpop.f32.mrf.mxu0
        %v707 = vadd.f32 0.0, %v706
        %v708 = vpop.f32.mrf.mxu0
        %v709 = vadd.f32 0.0, %v708
        %710 = vdwg.mxu0
        %711 = vmatpush.bf16.msra.mxu0 0
        %712 = vmatpush.bf16.msra.mxu0 0
        %713 = vmatpush.bf16.msra.mxu0 0
        %714 = vmatpush.bf16.msra.mxu0 0
        %715 = vmatpush.bf16.msra.mxu0 0
        %716 = vmatpush.bf16.msra.mxu0 0
        %717 = vmatpush.bf16.msra.mxu0 0
        %718 = vmatpush.bf16.msra.mxu0 %v649
        %719 = vmatmul.bf16.gmra.mxu0 %v633
        %v720 = vpop.f32.mrf.mxu0
        %v721 = vadd.f32 0.0, %v720
        %v722 = vpop.f32.mrf.mxu0
        %v723 = vadd.f32 0.0, %v722
        %724 = vmatmul.bf16.gmra.mxu0 %v636
        %v725 = vpop.f32.mrf.mxu0
        %v726 = vadd.f32 0.0, %v725
        %v727 = vpop.f32.mrf.mxu0
        %v728 = vadd.f32 0.0, %v727
        %729 = vmatmul.bf16.gmra.mxu0 %v639
        %v730 = vpop.f32.mrf.mxu0
        %v731 = vadd.f32 0.0, %v730
        %v732 = vpop.f32.mrf.mxu0
        %v733 = vadd.f32 0.0, %v732
        %734 = vmatmul.bf16.gmra.mxu0 %v642
        %v735 = vpop.f32.mrf.mxu0
        %v736 = vadd.f32 0.0, %v735
        %v737 = vpop.f32.mrf.mxu0
        %v738 = vadd.f32 0.0, %v737
        %739 = vdwg.mxu0
        %740 = vmatpush.bf16.msra.mxu0 0
        %741 = vmatpush.bf16.msra.mxu0 0
        %742 = vmatpush.bf16.msra.mxu0 0
        %743 = vmatpush.bf16.msra.mxu0 0
        %744 = vmatpush.bf16.msra.mxu0 0
        %745 = vmatpush.bf16.msra.mxu0 0
        %746 = vmatpush.bf16.msra.mxu0 0
        %747 = vmatpush.bf16.msra.mxu0 %v651
        %748 = vmatmul.bf16.gmra.mxu0 %v633
        %v749 = vpop.f32.mrf.mxu0
        %v750 = vadd.f32 0.0, %v749
        %v751 = vpop.f32.mrf.mxu0
        %v752 = vadd.f32 0.0, %v751
        %753 = vmatmul.bf16.gmra.mxu0 %v636
        %v754 = vpop.f32.mrf.mxu0
        %v755 = vadd.f32 0.0, %v754
        %v756 = vpop.f32.mrf.mxu0
        %v757 = vadd.f32 0.0, %v756
        %758 = vmatmul.bf16.gmra.mxu0 %v639
        %v759 = vpop.f32.mrf.mxu0
        %v760 = vadd.f32 0.0, %v759
        %v761 = vpop.f32.mrf.mxu0
        %v762 = vadd.f32 0.0, %v761
        %763 = vmatmul.bf16.gmra.mxu0 %v642
        %v764 = vpop.f32.mrf.mxu0
        %v765 = vadd.f32 0.0, %v764
        %v766 = vpop.f32.mrf.mxu0
        %v767 = vadd.f32 0.0, %v766
        %768 = vdwg.mxu0
        %v769 = vmax.f32 %v663, 0.0
        %v770 = vmax.f32 %v692, 0.0
        %v771 = vmax.f32 %v721, 0.0
        %v772 = vmax.f32 %v750, 0.0
        %v773 = vmax.f32 %v665, 0.0
        %v774 = vmax.f32 %v694, 0.0
        %v775 = vmax.f32 %v723, 0.0
        %v776 = vmax.f32 %v752, 0.0
        %v777 = vmax.f32 %v668, 0.0
        %v778 = vmax.f32 %v697, 0.0
        %v779 = vmax.f32 %v726, 0.0
        %v780 = vmax.f32 %v755, 0.0
        %v781 = vmax.f32 %v670, 0.0
        %v782 = vmax.f32 %v699, 0.0
        %v783 = vmax.f32 %v728, 0.0
        %v784 = vmax.f32 %v757, 0.0
        %v785 = vmax.f32 %v673, 0.0
        %v786 = vmax.f32 %v702, 0.0
        %v787 = vmax.f32 %v731, 0.0
        %v788 = vmax.f32 %v760, 0.0
        %v789 = vmax.f32 %v675, 0.0
        %v790 = vmax.f32 %v704, 0.0
        %v791 = vmax.f32 %v733, 0.0
        %v792 = vmax.f32 %v762, 0.0
        %v793 = vmax.f32 %v678, 0.0
        %v794 = vmax.f32 %v707, 0.0
        %v795 = vmax.f32 %v736, 0.0
        %v796 = vmax.f32 %v765, 0.0
        %v797 = vmax.f32 %v680, 0.0
        %v798 = vmax.f32 %v709, 0.0
        %v799 = vmax.f32 %v738, 0.0
        %v800 = vmax.f32 %v767, 0.0
        %v801 = vadd.f32 %v769, 0.0
        %v802 = vadd.f32 %v773, 0.0
        %v803 = vadd.f32 %v777, 0.0
        %v804 = vadd.f32 %v781, 0.0
        %v805 = vadd.f32 %v785, 0.0
        %v806 = vadd.f32 %v789, 0.0
        %v807 = vadd.f32 %v793, 0.0
        %v808 = vadd.f32 %v797, 0.0
        %v809 = vadd.f32 %v771, 0.0
        %v810 = vadd.f32 %v775, 0.0
        %v811 = vadd.f32 %v779, 0.0
        %v812 = vadd.f32 %v783, 0.0
        %v813 = vadd.f32 %v787, 0.0
        %v814 = vadd.f32 %v791, 0.0
        %v815 = vadd.f32 %v795, 0.0
        %v816 = vadd.f32 %v799, 0.0
        %v817 = vmul.f32 %v769, %v769
        %v818 = vmul.f32 %v773, %v773
        %v819 = vmul.f32 %v777, %v777
        %v820 = vmul.f32 %v781, %v781
        %v821 = vmul.f32 %v785, %v785
        %v822 = vmul.f32 %v789, %v789
        %v823 = vmul.f32 %v793, %v793
        %v824 = vmul.f32 %v797, %v797
        %v825 = vadd.f32 %v817, 0.0
        %v826 = vadd.f32 %v818, 0.0
        %v827 = vadd.f32 %v819, 0.0
        %v828 = vadd.f32 %v820, 0.0
        %v829 = vadd.f32 %v821, 0.0
        %v830 = vadd.f32 %v822, 0.0
        %v831 = vadd.f32 %v823, 0.0
        %v832 = vadd.f32 %v824, 0.0
        %v833 = vmul.f32 %v771, %v771
        %v834 = vmul.f32 %v775, %v775
        %v835 = vmul.f32 %v779, %v779
        %v836 = vmul.f32 %v783, %v783
        %v837 = vmul.f32 %v787, %v787
        %v838 = vmul.f32 %v791, %v791
        %v839 = vmul.f32 %v795, %v795
        %v840 = vmul.f32 %v799, %v799
        %v841 = vadd.f32 %v833, 0.0
        %v842 = vadd.f32 %v834, 0.0
        %v843 = vadd.f32 %v835, 0.0
        %v844 = vadd.f32 %v836, 0.0
        %v845 = vadd.f32 %v837, 0.0
        %v846 = vadd.f32 %v838, 0.0
        %v847 = vadd.f32 %v839, 0.0
        %v848 = vadd.f32 %v840, 0.0
        %v849 = vmul.f32 %v769, %v771
        %v850 = vmul.f32 %v773, %v775
        %v851 = vmul.f32 %v777, %v779
        %v852 = vmul.f32 %v781, %v783
        %v853 = vmul.f32 %v785, %v787
        %v854 = vmul.f32 %v789, %v791
        %v855 = vmul.f32 %v793, %v795
        %v856 = vmul.f32 %v797, %v799
        %v857 = vadd.f32 %v849, 0.0
        %v858 = vadd.f32 %v850, 0.0
        %v859 = vadd.f32 %v851, 0.0
        %v860 = vadd.f32 %v852, 0.0
        %v861 = vadd.f32 %v853, 0.0
        %v862 = vadd.f32 %v854, 0.0
        %v863 = vadd.f32 %v855, 0.0
        %v864 = vadd.f32 %v856, 0.0
        %v865 = vadd.f32 %v801, %v770
        %v866 = vadd.f32 %v802, %v774
        %v867 = vadd.f32 %v803, %v778
        %v868 = vadd.f32 %v804, %v782
        %v869 = vadd.f32 %v805, %v786
        %v870 = vadd.f32 %v806, %v790
        %v871 = vadd.f32 %v807, %v794
        %v872 = vadd.f32 %v808, %v798
        %v873 = vadd.f32 %v809, %v772
        %v874 = vadd.f32 %v810, %v776
        %v875 = vadd.f32 %v811, %v780
        %v876 = vadd.f32 %v812, %v784
        %v877 = vadd.f32 %v813, %v788
        %v878 = vadd.f32 %v814, %v792
        %v879 = vadd.f32 %v815, %v796
        %v880 = vadd.f32 %v816, %v800
        %v881 = vmul.f32 %v770, %v770
        %v882 = vmul.f32 %v774, %v774
        %v883 = vmul.f32 %v778, %v778
        %v884 = vmul.f32 %v782, %v782
        %v885 = vmul.f32 %v786, %v786
        %v886 = vmul.f32 %v790, %v790
        %v887 = vmul.f32 %v794, %v794
        %v888 = vmul.f32 %v798, %v798
        %v889 = vadd.f32 %v825, %v881
        %v890 = vadd.f32 %v826, %v882
        %v891 = vadd.f32 %v827, %v883
        %v892 = vadd.f32 %v828, %v884
        %v893 = vadd.f32 %v829, %v885
        %v894 = vadd.f32 %v830, %v886
        %v895 = vadd.f32 %v831, %v887
        %v896 = vadd.f32 %v832, %v888
        %v897 = vmul.f32 %v772, %v772
        %v898 = vmul.f32 %v776, %v776
        %v899 = vmul.f32 %v780, %v780
        %v900 = vmul.f32 %v784, %v784
        %v901 = vmul.f32 %v788, %v788
        %v902 = vmul.f32 %v792, %v792
        %v903 = vmul.f32 %v796, %v796
        %v904 = vmul.f32 %v800, %v800
        %v905 = vadd.f32 %v841, %v897
        %v906 = vadd.f32 %v842, %v898
        %v907 = vadd.f32 %v843, %v899
        %v908 = vadd.f32 %v844, %v900
        %v909 = vadd.f32 %v845, %v901
        %v910 = vadd.f32 %v846, %v902
        %v911 = vadd.f32 %v847, %v903
        %v912 = vadd.f32 %v848, %v904
        %v913 = vmul.f32 %v770, %v772
        %v914 = vmul.f32 %v774, %v776
        %v915 = vmul.f32 %v778, %v780
        %v916 = vmul.f32 %v782, %v784
        %v917 = vmul.f32 %v786, %v788
        %v918 = vmul.f32 %v790, %v792
        %v919 = vmul.f32 %v794, %v796
        %v920 = vmul.f32 %v798, %v800
        %v921 = vadd.f32 %v857, %v913
        %v922 = vadd.f32 %v858, %v914
        %v923 = vadd.f32 %v859, %v915
        %v924 = vadd.f32 %v860, %v916
        %v925 = vadd.f32 %v861, %v917
        %v926 = vadd.f32 %v862, %v918
        %v927 = vadd.f32 %v863, %v919
        %v928 = vadd.f32 %v864, %v920
        %v929 = vld [vmem:[%s263] sm:$0xff]
        %v930 = vld [vmem:[%s263 + $0x8] sm:$0xff]
        %v931 = vld [vmem:[%s263 + $0x10] sm:$0xff]
        %v932 = vld [vmem:[%s263 + $0x18] sm:$0xff]
        %v933 = vld [vmem:[%s263 + $0x20] sm:$0xff]
        %v934 = vld [vmem:[%s263 + $0x28] sm:$0xff]
        %v935 = vld [vmem:[%s263 + $0x30] sm:$0xff]
        %v936 = vld [vmem:[%s263 + $0x38] sm:$0xff]
        %v937 = vadd.f32 %v929, %v865
        %v938 = vadd.f32 %v930, %v866
        %v939 = vadd.f32 %v931, %v867
        %v940 = vadd.f32 %v932, %v868
        %v941 = vadd.f32 %v933, %v869
        %v942 = vadd.f32 %v934, %v870
        %v943 = vadd.f32 %v935, %v871
        %v944 = vadd.f32 %v936, %v872
        %945 = vst [vmem:[%s263] sm:$0xff] %v937
        %946 = vst [vmem:[%s263 + $0x8] sm:$0xff] %v938
        %947 = vst [vmem:[%s263 + $0x10] sm:$0xff] %v939
        %948 = vst [vmem:[%s263 + $0x18] sm:$0xff] %v940
        %949 = vst [vmem:[%s263 + $0x20] sm:$0xff] %v941
        %950 = vst [vmem:[%s263 + $0x28] sm:$0xff] %v942
        %951 = vst [vmem:[%s263 + $0x30] sm:$0xff] %v943
        %952 = vst [vmem:[%s263 + $0x38] sm:$0xff] %v944
        %v953 = vld [vmem:[%s263 + $0x200] sm:$0xff]
        %v954 = vld [vmem:[%s263 + $0x208] sm:$0xff]
        %v955 = vld [vmem:[%s263 + $0x210] sm:$0xff]
        %v956 = vld [vmem:[%s263 + $0x218] sm:$0xff]
        %v957 = vld [vmem:[%s263 + $0x220] sm:$0xff]
        %v958 = vld [vmem:[%s263 + $0x228] sm:$0xff]
        %v959 = vld [vmem:[%s263 + $0x230] sm:$0xff]
        %v960 = vld [vmem:[%s263 + $0x238] sm:$0xff]
        %v961 = vadd.f32 %v953, %v889
        %v962 = vadd.f32 %v954, %v890
        %v963 = vadd.f32 %v955, %v891
        %v964 = vadd.f32 %v956, %v892
        %v965 = vadd.f32 %v957, %v893
        %v966 = vadd.f32 %v958, %v894
        %v967 = vadd.f32 %v959, %v895
        %v968 = vadd.f32 %v960, %v896
        %969 = vst [vmem:[%s263 + $0x200] sm:$0xff] %v961
        %970 = vst [vmem:[%s263 + $0x208] sm:$0xff] %v962
        %971 = vst [vmem:[%s263 + $0x210] sm:$0xff] %v963
        %972 = vst [vmem:[%s263 + $0x218] sm:$0xff] %v964
        %973 = vst [vmem:[%s263 + $0x220] sm:$0xff] %v965
        %974 = vst [vmem:[%s263 + $0x228] sm:$0xff] %v966
        %975 = vst [vmem:[%s263 + $0x230] sm:$0xff] %v967
        %976 = vst [vmem:[%s263 + $0x238] sm:$0xff] %v968
        %v977 = vld [vmem:[%s263 + $0x400] sm:$0xff]
        %v978 = vld [vmem:[%s263 + $0x408] sm:$0xff]
        %v979 = vld [vmem:[%s263 + $0x410] sm:$0xff]
        %v980 = vld [vmem:[%s263 + $0x418] sm:$0xff]
        %v981 = vld [vmem:[%s263 + $0x420] sm:$0xff]
        %v982 = vld [vmem:[%s263 + $0x428] sm:$0xff]
        %v983 = vld [vmem:[%s263 + $0x430] sm:$0xff]
        %v984 = vld [vmem:[%s263 + $0x438] sm:$0xff]
        %v985 = vadd.f32 %v977, %v873
        %v986 = vadd.f32 %v978, %v874
        %v987 = vadd.f32 %v979, %v875
        %v988 = vadd.f32 %v980, %v876
        %v989 = vadd.f32 %v981, %v877
        %v990 = vadd.f32 %v982, %v878
        %v991 = vadd.f32 %v983, %v879
        %v992 = vadd.f32 %v984, %v880
        %993 = vst [vmem:[%s263 + $0x400] sm:$0xff] %v985
        %994 = vst [vmem:[%s263 + $0x408] sm:$0xff] %v986
        %995 = vst [vmem:[%s263 + $0x410] sm:$0xff] %v987
        %996 = vst [vmem:[%s263 + $0x418] sm:$0xff] %v988
        %997 = vst [vmem:[%s263 + $0x420] sm:$0xff] %v989
        %998 = vst [vmem:[%s263 + $0x428] sm:$0xff] %v990
        %999 = vst [vmem:[%s263 + $0x430] sm:$0xff] %v991
        %1000 = vst [vmem:[%s263 + $0x438] sm:$0xff] %v992
        %v1001 = vld [vmem:[%s263 + $0x600] sm:$0xff]
        %v1002 = vld [vmem:[%s263 + $0x608] sm:$0xff]
        %v1003 = vld [vmem:[%s263 + $0x610] sm:$0xff]
        %v1004 = vld [vmem:[%s263 + $0x618] sm:$0xff]
        %v1005 = vld [vmem:[%s263 + $0x620] sm:$0xff]
        %v1006 = vld [vmem:[%s263 + $0x628] sm:$0xff]
        %v1007 = vld [vmem:[%s263 + $0x630] sm:$0xff]
        %v1008 = vld [vmem:[%s263 + $0x638] sm:$0xff]
        %v1009 = vadd.f32 %v1001, %v905
        %v1010 = vadd.f32 %v1002, %v906
        %v1011 = vadd.f32 %v1003, %v907
        %v1012 = vadd.f32 %v1004, %v908
        %v1013 = vadd.f32 %v1005, %v909
        %v1014 = vadd.f32 %v1006, %v910
        %v1015 = vadd.f32 %v1007, %v911
        %v1016 = vadd.f32 %v1008, %v912
        %1017 = vst [vmem:[%s263 + $0x600] sm:$0xff] %v1009
        %1018 = vst [vmem:[%s263 + $0x608] sm:$0xff] %v1010
        %1019 = vst [vmem:[%s263 + $0x610] sm:$0xff] %v1011
        %1020 = vst [vmem:[%s263 + $0x618] sm:$0xff] %v1012
        %1021 = vst [vmem:[%s263 + $0x620] sm:$0xff] %v1013
        %1022 = vst [vmem:[%s263 + $0x628] sm:$0xff] %v1014
        %1023 = vst [vmem:[%s263 + $0x630] sm:$0xff] %v1015
        %1024 = vst [vmem:[%s263 + $0x638] sm:$0xff] %v1016
        %v1025 = vld [vmem:[%s263 + $0x800] sm:$0xff]
        %v1026 = vld [vmem:[%s263 + $0x808] sm:$0xff]
        %v1027 = vld [vmem:[%s263 + $0x810] sm:$0xff]
        %v1028 = vld [vmem:[%s263 + $0x818] sm:$0xff]
        %v1029 = vld [vmem:[%s263 + $0x820] sm:$0xff]
        %v1030 = vld [vmem:[%s263 + $0x828] sm:$0xff]
        %v1031 = vld [vmem:[%s263 + $0x830] sm:$0xff]
        %v1032 = vld [vmem:[%s263 + $0x838] sm:$0xff]
        %v1033 = vadd.f32 %v1025, %v921
        %v1034 = vadd.f32 %v1026, %v922
        %v1035 = vadd.f32 %v1027, %v923
        %v1036 = vadd.f32 %v1028, %v924
        %v1037 = vadd.f32 %v1029, %v925
        %v1038 = vadd.f32 %v1030, %v926
        %v1039 = vadd.f32 %v1031, %v927
        %v1040 = vadd.f32 %v1032, %v928
        %1041 = vst [vmem:[%s263 + $0x800] sm:$0xff] %v1033
        %1042 = vst [vmem:[%s263 + $0x808] sm:$0xff] %v1034
        %1043 = vst [vmem:[%s263 + $0x810] sm:$0xff] %v1035
        %1044 = vst [vmem:[%s263 + $0x818] sm:$0xff] %v1036
        %1045 = vst [vmem:[%s263 + $0x820] sm:$0xff] %v1037
        %1046 = vst [vmem:[%s263 + $0x828] sm:$0xff] %v1038
        %1047 = vst [vmem:[%s263 + $0x830] sm:$0xff] %v1039
        %1048 = vst [vmem:[%s263 + $0x838] sm:$0xff] %v1040
        %v1049 = vld [vmem:[%s2 + $0x20] sm:$0xf]
        %v1050 = vld [vmem:[%s2 + $0x24] sm:$0xf]
        %v1051 = vld [vmem:[%s2 + $0x28] sm:$0xf]
        %v1052 = vld [vmem:[%s2 + $0x2c] sm:$0xf]
        %v1053 = vld [vmem:[%s2 + $0x30] sm:$0xf]
        %v1054 = vld [vmem:[%s2 + $0x34] sm:$0xf]
        %v1055 = vld [vmem:[%s2 + $0x38] sm:$0xf]
        %v1056 = vld [vmem:[%s2 + $0x3c] sm:$0xf]
        %v1065 = vunpack.c.l.b16 %v1049
        %v1066 = vunpack.c.l.b16 %v1050
        %v1067 = vunpack.c.l.b16 %v1051
        %v1068 = vunpack.c.l.b16 %v1052
        %v1069 = vunpack.c.l.b16 %v1053
        %v1070 = vunpack.c.l.b16 %v1054
        %v1071 = vunpack.c.l.b16 %v1055
        %v1072 = vunpack.c.l.b16 %v1056
        %v1073 = vpack.c.b16 %v1066, %v1065
        %v1074 = vpack.c.b16 %v1068, %v1067
        %v1075 = vpack.c.b16 %v1070, %v1069
        %v1076 = vpack.c.b16 %v1072, %v1071
        %v1078 = vsel %vm631, %v1073, 0
        %v1081 = vsel %vm631, %v1074, 0
        %v1084 = vsel %vm631, %v1075, 0
        %v1087 = vsel %vm631, %v1076, 0
        %1089 = vmatpush.bf16.msra.mxu0 0
        %1090 = vmatpush.bf16.msra.mxu0 0
        %1091 = vmatpush.bf16.msra.mxu0 0
        %1092 = vmatpush.bf16.msra.mxu0 0
        %1093 = vmatpush.bf16.msra.mxu0 0
        %1094 = vmatpush.bf16.msra.mxu0 0
        %1095 = vmatpush.bf16.msra.mxu0 0
        %1096 = vmatpush.bf16.msra.mxu0 %v645
        %1097 = vmatmul.bf16.gmra.mxu0 %v1078
        %v1098 = vpop.f32.mrf.mxu0
        %v1099 = vadd.f32 0.0, %v1098
        %v1100 = vpop.f32.mrf.mxu0
        %v1101 = vadd.f32 0.0, %v1100
        %1102 = vmatmul.bf16.gmra.mxu0 %v1081
        %v1103 = vpop.f32.mrf.mxu0
        %v1104 = vadd.f32 0.0, %v1103
        %v1105 = vpop.f32.mrf.mxu0
        %v1106 = vadd.f32 0.0, %v1105
        %1107 = vmatmul.bf16.gmra.mxu0 %v1084
        %v1108 = vpop.f32.mrf.mxu0
        %v1109 = vadd.f32 0.0, %v1108
        %v1110 = vpop.f32.mrf.mxu0
        %v1111 = vadd.f32 0.0, %v1110
        %1112 = vmatmul.bf16.gmra.mxu0 %v1087
        %v1113 = vpop.f32.mrf.mxu0
        %v1114 = vadd.f32 0.0, %v1113
        %v1115 = vpop.f32.mrf.mxu0
        %v1116 = vadd.f32 0.0, %v1115
        %1117 = vdwg.mxu0
        %1118 = vmatpush.bf16.msra.mxu0 0
        %1119 = vmatpush.bf16.msra.mxu0 0
        %1120 = vmatpush.bf16.msra.mxu0 0
        %1121 = vmatpush.bf16.msra.mxu0 0
        %1122 = vmatpush.bf16.msra.mxu0 0
        %1123 = vmatpush.bf16.msra.mxu0 0
        %1124 = vmatpush.bf16.msra.mxu0 0
        %1125 = vmatpush.bf16.msra.mxu0 %v647
        %1126 = vmatmul.bf16.gmra.mxu0 %v1078
        %v1127 = vpop.f32.mrf.mxu0
        %v1128 = vadd.f32 0.0, %v1127
        %v1129 = vpop.f32.mrf.mxu0
        %v1130 = vadd.f32 0.0, %v1129
        %1131 = vmatmul.bf16.gmra.mxu0 %v1081
        %v1132 = vpop.f32.mrf.mxu0
        %v1133 = vadd.f32 0.0, %v1132
        %v1134 = vpop.f32.mrf.mxu0
        %v1135 = vadd.f32 0.0, %v1134
        %1136 = vmatmul.bf16.gmra.mxu0 %v1084
        %v1137 = vpop.f32.mrf.mxu0
        %v1138 = vadd.f32 0.0, %v1137
        %v1139 = vpop.f32.mrf.mxu0
        %v1140 = vadd.f32 0.0, %v1139
        %1141 = vmatmul.bf16.gmra.mxu0 %v1087
        %v1142 = vpop.f32.mrf.mxu0
        %v1143 = vadd.f32 0.0, %v1142
        %v1144 = vpop.f32.mrf.mxu0
        %v1145 = vadd.f32 0.0, %v1144
        %1146 = vdwg.mxu0
        %1147 = vmatpush.bf16.msra.mxu0 0
        %1148 = vmatpush.bf16.msra.mxu0 0
        %1149 = vmatpush.bf16.msra.mxu0 0
        %1150 = vmatpush.bf16.msra.mxu0 0
        %1151 = vmatpush.bf16.msra.mxu0 0
        %1152 = vmatpush.bf16.msra.mxu0 0
        %1153 = vmatpush.bf16.msra.mxu0 0
        %1154 = vmatpush.bf16.msra.mxu0 %v649
        %1155 = vmatmul.bf16.gmra.mxu0 %v1078
        %v1156 = vpop.f32.mrf.mxu0
        %v1157 = vadd.f32 0.0, %v1156
        %v1158 = vpop.f32.mrf.mxu0
        %v1159 = vadd.f32 0.0, %v1158
        %1160 = vmatmul.bf16.gmra.mxu0 %v1081
        %v1161 = vpop.f32.mrf.mxu0
        %v1162 = vadd.f32 0.0, %v1161
        %v1163 = vpop.f32.mrf.mxu0
        %v1164 = vadd.f32 0.0, %v1163
        %1165 = vmatmul.bf16.gmra.mxu0 %v1084
        %v1166 = vpop.f32.mrf.mxu0
        %v1167 = vadd.f32 0.0, %v1166
        %v1168 = vpop.f32.mrf.mxu0
        %v1169 = vadd.f32 0.0, %v1168
        %1170 = vmatmul.bf16.gmra.mxu0 %v1087
        %v1171 = vpop.f32.mrf.mxu0
        %v1172 = vadd.f32 0.0, %v1171
        %v1173 = vpop.f32.mrf.mxu0
        %v1174 = vadd.f32 0.0, %v1173
        %1175 = vdwg.mxu0
        %1176 = vmatpush.bf16.msra.mxu0 0
        %1177 = vmatpush.bf16.msra.mxu0 0
        %1178 = vmatpush.bf16.msra.mxu0 0
        %1179 = vmatpush.bf16.msra.mxu0 0
        %1180 = vmatpush.bf16.msra.mxu0 0
        %1181 = vmatpush.bf16.msra.mxu0 0
        %1182 = vmatpush.bf16.msra.mxu0 0
        %1183 = vmatpush.bf16.msra.mxu0 %v651
        %1184 = vmatmul.bf16.gmra.mxu0 %v1078
        %v1185 = vpop.f32.mrf.mxu0
        %v1186 = vadd.f32 0.0, %v1185
        %v1187 = vpop.f32.mrf.mxu0
        %v1188 = vadd.f32 0.0, %v1187
        %1189 = vmatmul.bf16.gmra.mxu0 %v1081
        %v1190 = vpop.f32.mrf.mxu0
        %v1191 = vadd.f32 0.0, %v1190
        %v1192 = vpop.f32.mrf.mxu0
        %v1193 = vadd.f32 0.0, %v1192
        %1194 = vmatmul.bf16.gmra.mxu0 %v1084
        %v1195 = vpop.f32.mrf.mxu0
        %v1196 = vadd.f32 0.0, %v1195
        %v1197 = vpop.f32.mrf.mxu0
        %v1198 = vadd.f32 0.0, %v1197
        %1199 = vmatmul.bf16.gmra.mxu0 %v1087
        %v1200 = vpop.f32.mrf.mxu0
        %v1201 = vadd.f32 0.0, %v1200
        %v1202 = vpop.f32.mrf.mxu0
        %v1203 = vadd.f32 0.0, %v1202
        %1204 = vdwg.mxu0
        %v1205 = vmax.f32 %v1099, 0.0
        %v1206 = vmax.f32 %v1128, 0.0
        %v1207 = vmax.f32 %v1157, 0.0
        %v1208 = vmax.f32 %v1186, 0.0
        %v1209 = vmax.f32 %v1101, 0.0
        %v1210 = vmax.f32 %v1130, 0.0
        %v1211 = vmax.f32 %v1159, 0.0
        %v1212 = vmax.f32 %v1188, 0.0
        %v1213 = vmax.f32 %v1104, 0.0
        %v1214 = vmax.f32 %v1133, 0.0
        %v1215 = vmax.f32 %v1162, 0.0
        %v1216 = vmax.f32 %v1191, 0.0
        %v1217 = vmax.f32 %v1106, 0.0
        %v1218 = vmax.f32 %v1135, 0.0
        %v1219 = vmax.f32 %v1164, 0.0
        %v1220 = vmax.f32 %v1193, 0.0
        %v1221 = vmax.f32 %v1109, 0.0
        %v1222 = vmax.f32 %v1138, 0.0
        %v1223 = vmax.f32 %v1167, 0.0
        %v1224 = vmax.f32 %v1196, 0.0
        %v1225 = vmax.f32 %v1111, 0.0
        %v1226 = vmax.f32 %v1140, 0.0
        %v1227 = vmax.f32 %v1169, 0.0
        %v1228 = vmax.f32 %v1198, 0.0
        %v1229 = vmax.f32 %v1114, 0.0
        %v1230 = vmax.f32 %v1143, 0.0
        %v1231 = vmax.f32 %v1172, 0.0
        %v1232 = vmax.f32 %v1201, 0.0
        %v1233 = vmax.f32 %v1116, 0.0
        %v1234 = vmax.f32 %v1145, 0.0
        %v1235 = vmax.f32 %v1174, 0.0
        %v1236 = vmax.f32 %v1203, 0.0
        %v1237 = vadd.f32 %v1205, 0.0
        %v1238 = vadd.f32 %v1209, 0.0
        %v1239 = vadd.f32 %v1213, 0.0
        %v1240 = vadd.f32 %v1217, 0.0
        %v1241 = vadd.f32 %v1221, 0.0
        %v1242 = vadd.f32 %v1225, 0.0
        %v1243 = vadd.f32 %v1229, 0.0
        %v1244 = vadd.f32 %v1233, 0.0
        %v1245 = vadd.f32 %v1207, 0.0
        %v1246 = vadd.f32 %v1211, 0.0
        %v1247 = vadd.f32 %v1215, 0.0
        %v1248 = vadd.f32 %v1219, 0.0
        %v1249 = vadd.f32 %v1223, 0.0
        %v1250 = vadd.f32 %v1227, 0.0
        %v1251 = vadd.f32 %v1231, 0.0
        %v1252 = vadd.f32 %v1235, 0.0
        %v1253 = vmul.f32 %v1205, %v1205
        %v1254 = vmul.f32 %v1209, %v1209
        %v1255 = vmul.f32 %v1213, %v1213
        %v1256 = vmul.f32 %v1217, %v1217
        %v1257 = vmul.f32 %v1221, %v1221
        %v1258 = vmul.f32 %v1225, %v1225
        %v1259 = vmul.f32 %v1229, %v1229
        %v1260 = vmul.f32 %v1233, %v1233
        %v1261 = vadd.f32 %v1253, 0.0
        %v1262 = vadd.f32 %v1254, 0.0
        %v1263 = vadd.f32 %v1255, 0.0
        %v1264 = vadd.f32 %v1256, 0.0
        %v1265 = vadd.f32 %v1257, 0.0
        %v1266 = vadd.f32 %v1258, 0.0
        %v1267 = vadd.f32 %v1259, 0.0
        %v1268 = vadd.f32 %v1260, 0.0
        %v1269 = vmul.f32 %v1207, %v1207
        %v1270 = vmul.f32 %v1211, %v1211
        %v1271 = vmul.f32 %v1215, %v1215
        %v1272 = vmul.f32 %v1219, %v1219
        %v1273 = vmul.f32 %v1223, %v1223
        %v1274 = vmul.f32 %v1227, %v1227
        %v1275 = vmul.f32 %v1231, %v1231
        %v1276 = vmul.f32 %v1235, %v1235
        %v1277 = vadd.f32 %v1269, 0.0
        %v1278 = vadd.f32 %v1270, 0.0
        %v1279 = vadd.f32 %v1271, 0.0
        %v1280 = vadd.f32 %v1272, 0.0
        %v1281 = vadd.f32 %v1273, 0.0
        %v1282 = vadd.f32 %v1274, 0.0
        %v1283 = vadd.f32 %v1275, 0.0
        %v1284 = vadd.f32 %v1276, 0.0
        %v1285 = vmul.f32 %v1205, %v1207
        %v1286 = vmul.f32 %v1209, %v1211
        %v1287 = vmul.f32 %v1213, %v1215
        %v1288 = vmul.f32 %v1217, %v1219
        %v1289 = vmul.f32 %v1221, %v1223
        %v1290 = vmul.f32 %v1225, %v1227
        %v1291 = vmul.f32 %v1229, %v1231
        %v1292 = vmul.f32 %v1233, %v1235
        %v1293 = vadd.f32 %v1285, 0.0
        %v1294 = vadd.f32 %v1286, 0.0
        %v1295 = vadd.f32 %v1287, 0.0
        %v1296 = vadd.f32 %v1288, 0.0
        %v1297 = vadd.f32 %v1289, 0.0
        %v1298 = vadd.f32 %v1290, 0.0
        %v1299 = vadd.f32 %v1291, 0.0
        %v1300 = vadd.f32 %v1292, 0.0
        %v1301 = vadd.f32 %v1237, %v1206
        %v1302 = vadd.f32 %v1238, %v1210
        %v1303 = vadd.f32 %v1239, %v1214
        %v1304 = vadd.f32 %v1240, %v1218
        %v1305 = vadd.f32 %v1241, %v1222
        %v1306 = vadd.f32 %v1242, %v1226
        %v1307 = vadd.f32 %v1243, %v1230
        %v1308 = vadd.f32 %v1244, %v1234
        %v1309 = vadd.f32 %v1245, %v1208
        %v1310 = vadd.f32 %v1246, %v1212
        %v1311 = vadd.f32 %v1247, %v1216
        %v1312 = vadd.f32 %v1248, %v1220
        %v1313 = vadd.f32 %v1249, %v1224
        %v1314 = vadd.f32 %v1250, %v1228
        %v1315 = vadd.f32 %v1251, %v1232
        %v1316 = vadd.f32 %v1252, %v1236
        %v1317 = vmul.f32 %v1206, %v1206
        %v1318 = vmul.f32 %v1210, %v1210
        %v1319 = vmul.f32 %v1214, %v1214
        %v1320 = vmul.f32 %v1218, %v1218
        %v1321 = vmul.f32 %v1222, %v1222
        %v1322 = vmul.f32 %v1226, %v1226
        %v1323 = vmul.f32 %v1230, %v1230
        %v1324 = vmul.f32 %v1234, %v1234
        %v1325 = vadd.f32 %v1261, %v1317
        %v1326 = vadd.f32 %v1262, %v1318
        %v1327 = vadd.f32 %v1263, %v1319
        %v1328 = vadd.f32 %v1264, %v1320
        %v1329 = vadd.f32 %v1265, %v1321
        %v1330 = vadd.f32 %v1266, %v1322
        %v1331 = vadd.f32 %v1267, %v1323
        %v1332 = vadd.f32 %v1268, %v1324
        %v1333 = vmul.f32 %v1208, %v1208
        %v1334 = vmul.f32 %v1212, %v1212
        %v1335 = vmul.f32 %v1216, %v1216
        %v1336 = vmul.f32 %v1220, %v1220
        %v1337 = vmul.f32 %v1224, %v1224
        %v1338 = vmul.f32 %v1228, %v1228
        %v1339 = vmul.f32 %v1232, %v1232
        %v1340 = vmul.f32 %v1236, %v1236
        %v1341 = vadd.f32 %v1277, %v1333
        %v1342 = vadd.f32 %v1278, %v1334
        %v1343 = vadd.f32 %v1279, %v1335
        %v1344 = vadd.f32 %v1280, %v1336
        %v1345 = vadd.f32 %v1281, %v1337
        %v1346 = vadd.f32 %v1282, %v1338
        %v1347 = vadd.f32 %v1283, %v1339
        %v1348 = vadd.f32 %v1284, %v1340
        %v1349 = vmul.f32 %v1206, %v1208
        %v1350 = vmul.f32 %v1210, %v1212
        %v1351 = vmul.f32 %v1214, %v1216
        %v1352 = vmul.f32 %v1218, %v1220
        %v1353 = vmul.f32 %v1222, %v1224
        %v1354 = vmul.f32 %v1226, %v1228
        %v1355 = vmul.f32 %v1230, %v1232
        %v1356 = vmul.f32 %v1234, %v1236
        %v1357 = vadd.f32 %v1293, %v1349
        %v1358 = vadd.f32 %v1294, %v1350
        %v1359 = vadd.f32 %v1295, %v1351
        %v1360 = vadd.f32 %v1296, %v1352
        %v1361 = vadd.f32 %v1297, %v1353
        %v1362 = vadd.f32 %v1298, %v1354
        %v1363 = vadd.f32 %v1299, %v1355
        %v1364 = vadd.f32 %v1300, %v1356
        %v1365 = vld [vmem:[%s263 + $0x40] sm:$0xff]
        %v1366 = vld [vmem:[%s263 + $0x48] sm:$0xff]
        %v1367 = vld [vmem:[%s263 + $0x50] sm:$0xff]
        %v1368 = vld [vmem:[%s263 + $0x58] sm:$0xff]
        %v1369 = vld [vmem:[%s263 + $0x60] sm:$0xff]
        %v1370 = vld [vmem:[%s263 + $0x68] sm:$0xff]
        %v1371 = vld [vmem:[%s263 + $0x70] sm:$0xff]
        %v1372 = vld [vmem:[%s263 + $0x78] sm:$0xff]
        %v1373 = vadd.f32 %v1365, %v1301
        %v1374 = vadd.f32 %v1366, %v1302
        %v1375 = vadd.f32 %v1367, %v1303
        %v1376 = vadd.f32 %v1368, %v1304
        %v1377 = vadd.f32 %v1369, %v1305
        %v1378 = vadd.f32 %v1370, %v1306
        %v1379 = vadd.f32 %v1371, %v1307
        %v1380 = vadd.f32 %v1372, %v1308
        %1381 = vst [vmem:[%s263 + $0x40] sm:$0xff] %v1373
        %1382 = vst [vmem:[%s263 + $0x48] sm:$0xff] %v1374
        %1383 = vst [vmem:[%s263 + $0x50] sm:$0xff] %v1375
        %1384 = vst [vmem:[%s263 + $0x58] sm:$0xff] %v1376
        %1385 = vst [vmem:[%s263 + $0x60] sm:$0xff] %v1377
        %1386 = vst [vmem:[%s263 + $0x68] sm:$0xff] %v1378
        %1387 = vst [vmem:[%s263 + $0x70] sm:$0xff] %v1379
        %1388 = vst [vmem:[%s263 + $0x78] sm:$0xff] %v1380
        %v1389 = vld [vmem:[%s263 + $0x240] sm:$0xff]
        %v1390 = vld [vmem:[%s263 + $0x248] sm:$0xff]
        %v1391 = vld [vmem:[%s263 + $0x250] sm:$0xff]
        %v1392 = vld [vmem:[%s263 + $0x258] sm:$0xff]
        %v1393 = vld [vmem:[%s263 + $0x260] sm:$0xff]
        %v1394 = vld [vmem:[%s263 + $0x268] sm:$0xff]
        %v1395 = vld [vmem:[%s263 + $0x270] sm:$0xff]
        %v1396 = vld [vmem:[%s263 + $0x278] sm:$0xff]
        %v1397 = vadd.f32 %v1389, %v1325
        %v1398 = vadd.f32 %v1390, %v1326
        %v1399 = vadd.f32 %v1391, %v1327
        %v1400 = vadd.f32 %v1392, %v1328
        %v1401 = vadd.f32 %v1393, %v1329
        %v1402 = vadd.f32 %v1394, %v1330
        %v1403 = vadd.f32 %v1395, %v1331
        %v1404 = vadd.f32 %v1396, %v1332
        %1405 = vst [vmem:[%s263 + $0x240] sm:$0xff] %v1397
        %1406 = vst [vmem:[%s263 + $0x248] sm:$0xff] %v1398
        %1407 = vst [vmem:[%s263 + $0x250] sm:$0xff] %v1399
        %1408 = vst [vmem:[%s263 + $0x258] sm:$0xff] %v1400
        %1409 = vst [vmem:[%s263 + $0x260] sm:$0xff] %v1401
        %1410 = vst [vmem:[%s263 + $0x268] sm:$0xff] %v1402
        %1411 = vst [vmem:[%s263 + $0x270] sm:$0xff] %v1403
        %1412 = vst [vmem:[%s263 + $0x278] sm:$0xff] %v1404
        %v1413 = vld [vmem:[%s263 + $0x440] sm:$0xff]
        %v1414 = vld [vmem:[%s263 + $0x448] sm:$0xff]
        %v1415 = vld [vmem:[%s263 + $0x450] sm:$0xff]
        %v1416 = vld [vmem:[%s263 + $0x458] sm:$0xff]
        %v1417 = vld [vmem:[%s263 + $0x460] sm:$0xff]
        %v1418 = vld [vmem:[%s263 + $0x468] sm:$0xff]
        %v1419 = vld [vmem:[%s263 + $0x470] sm:$0xff]
        %v1420 = vld [vmem:[%s263 + $0x478] sm:$0xff]
        %v1421 = vadd.f32 %v1413, %v1309
        %v1422 = vadd.f32 %v1414, %v1310
        %v1423 = vadd.f32 %v1415, %v1311
        %v1424 = vadd.f32 %v1416, %v1312
        %v1425 = vadd.f32 %v1417, %v1313
        %v1426 = vadd.f32 %v1418, %v1314
        %v1427 = vadd.f32 %v1419, %v1315
        %v1428 = vadd.f32 %v1420, %v1316
        %1429 = vst [vmem:[%s263 + $0x440] sm:$0xff] %v1421
        %1430 = vst [vmem:[%s263 + $0x448] sm:$0xff] %v1422
        %1431 = vst [vmem:[%s263 + $0x450] sm:$0xff] %v1423
        %1432 = vst [vmem:[%s263 + $0x458] sm:$0xff] %v1424
        %1433 = vst [vmem:[%s263 + $0x460] sm:$0xff] %v1425
        %1434 = vst [vmem:[%s263 + $0x468] sm:$0xff] %v1426
        %1435 = vst [vmem:[%s263 + $0x470] sm:$0xff] %v1427
        %1436 = vst [vmem:[%s263 + $0x478] sm:$0xff] %v1428
        %v1437 = vld [vmem:[%s263 + $0x640] sm:$0xff]
        %v1438 = vld [vmem:[%s263 + $0x648] sm:$0xff]
        %v1439 = vld [vmem:[%s263 + $0x650] sm:$0xff]
        %v1440 = vld [vmem:[%s263 + $0x658] sm:$0xff]
        %v1441 = vld [vmem:[%s263 + $0x660] sm:$0xff]
        %v1442 = vld [vmem:[%s263 + $0x668] sm:$0xff]
        %v1443 = vld [vmem:[%s263 + $0x670] sm:$0xff]
        %v1444 = vld [vmem:[%s263 + $0x678] sm:$0xff]
        %v1445 = vadd.f32 %v1437, %v1341
        %v1446 = vadd.f32 %v1438, %v1342
        %v1447 = vadd.f32 %v1439, %v1343
        %v1448 = vadd.f32 %v1440, %v1344
        %v1449 = vadd.f32 %v1441, %v1345
        %v1450 = vadd.f32 %v1442, %v1346
        %v1451 = vadd.f32 %v1443, %v1347
        %v1452 = vadd.f32 %v1444, %v1348
        %1453 = vst [vmem:[%s263 + $0x640] sm:$0xff] %v1445
        %1454 = vst [vmem:[%s263 + $0x648] sm:$0xff] %v1446
        %1455 = vst [vmem:[%s263 + $0x650] sm:$0xff] %v1447
        %1456 = vst [vmem:[%s263 + $0x658] sm:$0xff] %v1448
        %1457 = vst [vmem:[%s263 + $0x660] sm:$0xff] %v1449
        %1458 = vst [vmem:[%s263 + $0x668] sm:$0xff] %v1450
        %1459 = vst [vmem:[%s263 + $0x670] sm:$0xff] %v1451
        %1460 = vst [vmem:[%s263 + $0x678] sm:$0xff] %v1452
        %v1461 = vld [vmem:[%s263 + $0x840] sm:$0xff]
        %v1462 = vld [vmem:[%s263 + $0x848] sm:$0xff]
        %v1463 = vld [vmem:[%s263 + $0x850] sm:$0xff]
        %v1464 = vld [vmem:[%s263 + $0x858] sm:$0xff]
        %v1465 = vld [vmem:[%s263 + $0x860] sm:$0xff]
        %v1466 = vld [vmem:[%s263 + $0x868] sm:$0xff]
        %v1467 = vld [vmem:[%s263 + $0x870] sm:$0xff]
        %v1468 = vld [vmem:[%s263 + $0x878] sm:$0xff]
        %v1469 = vadd.f32 %v1461, %v1357
        %v1470 = vadd.f32 %v1462, %v1358
        %v1471 = vadd.f32 %v1463, %v1359
        %v1472 = vadd.f32 %v1464, %v1360
        %v1473 = vadd.f32 %v1465, %v1361
        %v1474 = vadd.f32 %v1466, %v1362
        %v1475 = vadd.f32 %v1467, %v1363
        %v1476 = vadd.f32 %v1468, %v1364
        %1477 = vst [vmem:[%s263 + $0x840] sm:$0xff] %v1469
        %1478 = vst [vmem:[%s263 + $0x848] sm:$0xff] %v1470
        %1479 = vst [vmem:[%s263 + $0x850] sm:$0xff] %v1471
        %1480 = vst [vmem:[%s263 + $0x858] sm:$0xff] %v1472
        %1481 = vst [vmem:[%s263 + $0x860] sm:$0xff] %v1473
        %1482 = vst [vmem:[%s263 + $0x868] sm:$0xff] %v1474
        %1483 = vst [vmem:[%s263 + $0x870] sm:$0xff] %v1475
        %1484 = vst [vmem:[%s263 + $0x878] sm:$0xff] %v1476
        %v1485 = vld [vmem:[%s2 + $0x40] sm:$0xf]
        %v1486 = vld [vmem:[%s2 + $0x44] sm:$0xf]
        %v1487 = vld [vmem:[%s2 + $0x48] sm:$0xf]
        %v1488 = vld [vmem:[%s2 + $0x4c] sm:$0xf]
        %v1489 = vld [vmem:[%s2 + $0x50] sm:$0xf]
        %v1490 = vld [vmem:[%s2 + $0x54] sm:$0xf]
        %v1491 = vld [vmem:[%s2 + $0x58] sm:$0xf]
        %v1492 = vld [vmem:[%s2 + $0x5c] sm:$0xf]
        %v1501 = vunpack.c.l.b16 %v1485
        %v1502 = vunpack.c.l.b16 %v1486
        %v1503 = vunpack.c.l.b16 %v1487
        %v1504 = vunpack.c.l.b16 %v1488
        %v1505 = vunpack.c.l.b16 %v1489
        %v1506 = vunpack.c.l.b16 %v1490
        %v1507 = vunpack.c.l.b16 %v1491
        %v1508 = vunpack.c.l.b16 %v1492
        %v1509 = vpack.c.b16 %v1502, %v1501
        %v1510 = vpack.c.b16 %v1504, %v1503
        %v1511 = vpack.c.b16 %v1506, %v1505
        %v1512 = vpack.c.b16 %v1508, %v1507
        %v1514 = vsel %vm631, %v1509, 0
        %v1517 = vsel %vm631, %v1510, 0
        %v1520 = vsel %vm631, %v1511, 0
        %v1523 = vsel %vm631, %v1512, 0
        %1525 = vmatpush.bf16.msra.mxu0 0
        %1526 = vmatpush.bf16.msra.mxu0 0
        %1527 = vmatpush.bf16.msra.mxu0 0
        %1528 = vmatpush.bf16.msra.mxu0 0
        %1529 = vmatpush.bf16.msra.mxu0 0
        %1530 = vmatpush.bf16.msra.mxu0 0
        %1531 = vmatpush.bf16.msra.mxu0 0
        %1532 = vmatpush.bf16.msra.mxu0 %v645
        %1533 = vmatmul.bf16.gmra.mxu0 %v1514
        %v1534 = vpop.f32.mrf.mxu0
        %v1535 = vadd.f32 0.0, %v1534
        %v1536 = vpop.f32.mrf.mxu0
        %v1537 = vadd.f32 0.0, %v1536
        %1538 = vmatmul.bf16.gmra.mxu0 %v1517
        %v1539 = vpop.f32.mrf.mxu0
        %v1540 = vadd.f32 0.0, %v1539
        %v1541 = vpop.f32.mrf.mxu0
        %v1542 = vadd.f32 0.0, %v1541
        %1543 = vmatmul.bf16.gmra.mxu0 %v1520
        %v1544 = vpop.f32.mrf.mxu0
        %v1545 = vadd.f32 0.0, %v1544
        %v1546 = vpop.f32.mrf.mxu0
        %v1547 = vadd.f32 0.0, %v1546
        %1548 = vmatmul.bf16.gmra.mxu0 %v1523
        %v1549 = vpop.f32.mrf.mxu0
        %v1550 = vadd.f32 0.0, %v1549
        %v1551 = vpop.f32.mrf.mxu0
        %v1552 = vadd.f32 0.0, %v1551
        %1553 = vdwg.mxu0
        %1554 = vmatpush.bf16.msra.mxu0 0
        %1555 = vmatpush.bf16.msra.mxu0 0
        %1556 = vmatpush.bf16.msra.mxu0 0
        %1557 = vmatpush.bf16.msra.mxu0 0
        %1558 = vmatpush.bf16.msra.mxu0 0
        %1559 = vmatpush.bf16.msra.mxu0 0
        %1560 = vmatpush.bf16.msra.mxu0 0
        %1561 = vmatpush.bf16.msra.mxu0 %v647
        %1562 = vmatmul.bf16.gmra.mxu0 %v1514
        %v1563 = vpop.f32.mrf.mxu0
        %v1564 = vadd.f32 0.0, %v1563
        %v1565 = vpop.f32.mrf.mxu0
        %v1566 = vadd.f32 0.0, %v1565
        %1567 = vmatmul.bf16.gmra.mxu0 %v1517
        %v1568 = vpop.f32.mrf.mxu0
        %v1569 = vadd.f32 0.0, %v1568
        %v1570 = vpop.f32.mrf.mxu0
        %v1571 = vadd.f32 0.0, %v1570
        %1572 = vmatmul.bf16.gmra.mxu0 %v1520
        %v1573 = vpop.f32.mrf.mxu0
        %v1574 = vadd.f32 0.0, %v1573
        %v1575 = vpop.f32.mrf.mxu0
        %v1576 = vadd.f32 0.0, %v1575
        %1577 = vmatmul.bf16.gmra.mxu0 %v1523
        %v1578 = vpop.f32.mrf.mxu0
        %v1579 = vadd.f32 0.0, %v1578
        %v1580 = vpop.f32.mrf.mxu0
        %v1581 = vadd.f32 0.0, %v1580
        %1582 = vdwg.mxu0
        %1583 = vmatpush.bf16.msra.mxu0 0
        %1584 = vmatpush.bf16.msra.mxu0 0
        %1585 = vmatpush.bf16.msra.mxu0 0
        %1586 = vmatpush.bf16.msra.mxu0 0
        %1587 = vmatpush.bf16.msra.mxu0 0
        %1588 = vmatpush.bf16.msra.mxu0 0
        %1589 = vmatpush.bf16.msra.mxu0 0
        %1590 = vmatpush.bf16.msra.mxu0 %v649
        %1591 = vmatmul.bf16.gmra.mxu0 %v1514
        %v1592 = vpop.f32.mrf.mxu0
        %v1593 = vadd.f32 0.0, %v1592
        %v1594 = vpop.f32.mrf.mxu0
        %v1595 = vadd.f32 0.0, %v1594
        %1596 = vmatmul.bf16.gmra.mxu0 %v1517
        %v1597 = vpop.f32.mrf.mxu0
        %v1598 = vadd.f32 0.0, %v1597
        %v1599 = vpop.f32.mrf.mxu0
        %v1600 = vadd.f32 0.0, %v1599
        %1601 = vmatmul.bf16.gmra.mxu0 %v1520
        %v1602 = vpop.f32.mrf.mxu0
        %v1603 = vadd.f32 0.0, %v1602
        %v1604 = vpop.f32.mrf.mxu0
        %v1605 = vadd.f32 0.0, %v1604
        %1606 = vmatmul.bf16.gmra.mxu0 %v1523
        %v1607 = vpop.f32.mrf.mxu0
        %v1608 = vadd.f32 0.0, %v1607
        %v1609 = vpop.f32.mrf.mxu0
        %v1610 = vadd.f32 0.0, %v1609
        %1611 = vdwg.mxu0
        %1612 = vmatpush.bf16.msra.mxu0 0
        %1613 = vmatpush.bf16.msra.mxu0 0
        %1614 = vmatpush.bf16.msra.mxu0 0
        %1615 = vmatpush.bf16.msra.mxu0 0
        %1616 = vmatpush.bf16.msra.mxu0 0
        %1617 = vmatpush.bf16.msra.mxu0 0
        %1618 = vmatpush.bf16.msra.mxu0 0
        %1619 = vmatpush.bf16.msra.mxu0 %v651
        %1620 = vmatmul.bf16.gmra.mxu0 %v1514
        %v1621 = vpop.f32.mrf.mxu0
        %v1622 = vadd.f32 0.0, %v1621
        %v1623 = vpop.f32.mrf.mxu0
        %v1624 = vadd.f32 0.0, %v1623
        %1625 = vmatmul.bf16.gmra.mxu0 %v1517
        %v1626 = vpop.f32.mrf.mxu0
        %v1627 = vadd.f32 0.0, %v1626
        %v1628 = vpop.f32.mrf.mxu0
        %v1629 = vadd.f32 0.0, %v1628
        %1630 = vmatmul.bf16.gmra.mxu0 %v1520
        %v1631 = vpop.f32.mrf.mxu0
        %v1632 = vadd.f32 0.0, %v1631
        %v1633 = vpop.f32.mrf.mxu0
        %v1634 = vadd.f32 0.0, %v1633
        %1635 = vmatmul.bf16.gmra.mxu0 %v1523
        %v1636 = vpop.f32.mrf.mxu0
        %v1637 = vadd.f32 0.0, %v1636
        %v1638 = vpop.f32.mrf.mxu0
        %v1639 = vadd.f32 0.0, %v1638
        %1640 = vdwg.mxu0
        %v1641 = vmax.f32 %v1535, 0.0
        %v1642 = vmax.f32 %v1564, 0.0
        %v1643 = vmax.f32 %v1593, 0.0
        %v1644 = vmax.f32 %v1622, 0.0
        %v1645 = vmax.f32 %v1537, 0.0
        %v1646 = vmax.f32 %v1566, 0.0
        %v1647 = vmax.f32 %v1595, 0.0
        %v1648 = vmax.f32 %v1624, 0.0
        %v1649 = vmax.f32 %v1540, 0.0
        %v1650 = vmax.f32 %v1569, 0.0
        %v1651 = vmax.f32 %v1598, 0.0
        %v1652 = vmax.f32 %v1627, 0.0
        %v1653 = vmax.f32 %v1542, 0.0
        %v1654 = vmax.f32 %v1571, 0.0
        %v1655 = vmax.f32 %v1600, 0.0
        %v1656 = vmax.f32 %v1629, 0.0
        %v1657 = vmax.f32 %v1545, 0.0
        %v1658 = vmax.f32 %v1574, 0.0
        %v1659 = vmax.f32 %v1603, 0.0
        %v1660 = vmax.f32 %v1632, 0.0
        %v1661 = vmax.f32 %v1547, 0.0
        %v1662 = vmax.f32 %v1576, 0.0
        %v1663 = vmax.f32 %v1605, 0.0
        %v1664 = vmax.f32 %v1634, 0.0
        %v1665 = vmax.f32 %v1550, 0.0
        %v1666 = vmax.f32 %v1579, 0.0
        %v1667 = vmax.f32 %v1608, 0.0
        %v1668 = vmax.f32 %v1637, 0.0
        %v1669 = vmax.f32 %v1552, 0.0
        %v1670 = vmax.f32 %v1581, 0.0
        %v1671 = vmax.f32 %v1610, 0.0
        %v1672 = vmax.f32 %v1639, 0.0
        %v1673 = vadd.f32 %v1641, 0.0
        %v1674 = vadd.f32 %v1645, 0.0
        %v1675 = vadd.f32 %v1649, 0.0
        %v1676 = vadd.f32 %v1653, 0.0
        %v1677 = vadd.f32 %v1657, 0.0
        %v1678 = vadd.f32 %v1661, 0.0
        %v1679 = vadd.f32 %v1665, 0.0
        %v1680 = vadd.f32 %v1669, 0.0
        %v1681 = vadd.f32 %v1643, 0.0
        %v1682 = vadd.f32 %v1647, 0.0
        %v1683 = vadd.f32 %v1651, 0.0
        %v1684 = vadd.f32 %v1655, 0.0
        %v1685 = vadd.f32 %v1659, 0.0
        %v1686 = vadd.f32 %v1663, 0.0
        %v1687 = vadd.f32 %v1667, 0.0
        %v1688 = vadd.f32 %v1671, 0.0
        %v1689 = vmul.f32 %v1641, %v1641
        %v1690 = vmul.f32 %v1645, %v1645
        %v1691 = vmul.f32 %v1649, %v1649
        %v1692 = vmul.f32 %v1653, %v1653
        %v1693 = vmul.f32 %v1657, %v1657
        %v1694 = vmul.f32 %v1661, %v1661
        %v1695 = vmul.f32 %v1665, %v1665
        %v1696 = vmul.f32 %v1669, %v1669
        %v1697 = vadd.f32 %v1689, 0.0
        %v1698 = vadd.f32 %v1690, 0.0
        %v1699 = vadd.f32 %v1691, 0.0
        %v1700 = vadd.f32 %v1692, 0.0
        %v1701 = vadd.f32 %v1693, 0.0
        %v1702 = vadd.f32 %v1694, 0.0
        %v1703 = vadd.f32 %v1695, 0.0
        %v1704 = vadd.f32 %v1696, 0.0
        %v1705 = vmul.f32 %v1643, %v1643
        %v1706 = vmul.f32 %v1647, %v1647
        %v1707 = vmul.f32 %v1651, %v1651
        %v1708 = vmul.f32 %v1655, %v1655
        %v1709 = vmul.f32 %v1659, %v1659
        %v1710 = vmul.f32 %v1663, %v1663
        %v1711 = vmul.f32 %v1667, %v1667
        %v1712 = vmul.f32 %v1671, %v1671
        %v1713 = vadd.f32 %v1705, 0.0
        %v1714 = vadd.f32 %v1706, 0.0
        %v1715 = vadd.f32 %v1707, 0.0
        %v1716 = vadd.f32 %v1708, 0.0
        %v1717 = vadd.f32 %v1709, 0.0
        %v1718 = vadd.f32 %v1710, 0.0
        %v1719 = vadd.f32 %v1711, 0.0
        %v1720 = vadd.f32 %v1712, 0.0
        %v1721 = vmul.f32 %v1641, %v1643
        %v1722 = vmul.f32 %v1645, %v1647
        %v1723 = vmul.f32 %v1649, %v1651
        %v1724 = vmul.f32 %v1653, %v1655
        %v1725 = vmul.f32 %v1657, %v1659
        %v1726 = vmul.f32 %v1661, %v1663
        %v1727 = vmul.f32 %v1665, %v1667
        %v1728 = vmul.f32 %v1669, %v1671
        %v1729 = vadd.f32 %v1721, 0.0
        %v1730 = vadd.f32 %v1722, 0.0
        %v1731 = vadd.f32 %v1723, 0.0
        %v1732 = vadd.f32 %v1724, 0.0
        %v1733 = vadd.f32 %v1725, 0.0
        %v1734 = vadd.f32 %v1726, 0.0
        %v1735 = vadd.f32 %v1727, 0.0
        %v1736 = vadd.f32 %v1728, 0.0
        %v1737 = vadd.f32 %v1673, %v1642
        %v1738 = vadd.f32 %v1674, %v1646
        %v1739 = vadd.f32 %v1675, %v1650
        %v1740 = vadd.f32 %v1676, %v1654
        %v1741 = vadd.f32 %v1677, %v1658
        %v1742 = vadd.f32 %v1678, %v1662
        %v1743 = vadd.f32 %v1679, %v1666
        %v1744 = vadd.f32 %v1680, %v1670
        %v1745 = vadd.f32 %v1681, %v1644
        %v1746 = vadd.f32 %v1682, %v1648
        %v1747 = vadd.f32 %v1683, %v1652
        %v1748 = vadd.f32 %v1684, %v1656
        %v1749 = vadd.f32 %v1685, %v1660
        %v1750 = vadd.f32 %v1686, %v1664
        %v1751 = vadd.f32 %v1687, %v1668
        %v1752 = vadd.f32 %v1688, %v1672
        %v1753 = vmul.f32 %v1642, %v1642
        %v1754 = vmul.f32 %v1646, %v1646
        %v1755 = vmul.f32 %v1650, %v1650
        %v1756 = vmul.f32 %v1654, %v1654
        %v1757 = vmul.f32 %v1658, %v1658
        %v1758 = vmul.f32 %v1662, %v1662
        %v1759 = vmul.f32 %v1666, %v1666
        %v1760 = vmul.f32 %v1670, %v1670
        %v1761 = vadd.f32 %v1697, %v1753
        %v1762 = vadd.f32 %v1698, %v1754
        %v1763 = vadd.f32 %v1699, %v1755
        %v1764 = vadd.f32 %v1700, %v1756
        %v1765 = vadd.f32 %v1701, %v1757
        %v1766 = vadd.f32 %v1702, %v1758
        %v1767 = vadd.f32 %v1703, %v1759
        %v1768 = vadd.f32 %v1704, %v1760
        %v1769 = vmul.f32 %v1644, %v1644
        %v1770 = vmul.f32 %v1648, %v1648
        %v1771 = vmul.f32 %v1652, %v1652
        %v1772 = vmul.f32 %v1656, %v1656
        %v1773 = vmul.f32 %v1660, %v1660
        %v1774 = vmul.f32 %v1664, %v1664
        %v1775 = vmul.f32 %v1668, %v1668
        %v1776 = vmul.f32 %v1672, %v1672
        %v1777 = vadd.f32 %v1713, %v1769
        %v1778 = vadd.f32 %v1714, %v1770
        %v1779 = vadd.f32 %v1715, %v1771
        %v1780 = vadd.f32 %v1716, %v1772
        %v1781 = vadd.f32 %v1717, %v1773
        %v1782 = vadd.f32 %v1718, %v1774
        %v1783 = vadd.f32 %v1719, %v1775
        %v1784 = vadd.f32 %v1720, %v1776
        %v1785 = vmul.f32 %v1642, %v1644
        %v1786 = vmul.f32 %v1646, %v1648
        %v1787 = vmul.f32 %v1650, %v1652
        %v1788 = vmul.f32 %v1654, %v1656
        %v1789 = vmul.f32 %v1658, %v1660
        %v1790 = vmul.f32 %v1662, %v1664
        %v1791 = vmul.f32 %v1666, %v1668
        %v1792 = vmul.f32 %v1670, %v1672
        %v1793 = vadd.f32 %v1729, %v1785
        %v1794 = vadd.f32 %v1730, %v1786
        %v1795 = vadd.f32 %v1731, %v1787
        %v1796 = vadd.f32 %v1732, %v1788
        %v1797 = vadd.f32 %v1733, %v1789
        %v1798 = vadd.f32 %v1734, %v1790
        %v1799 = vadd.f32 %v1735, %v1791
        %v1800 = vadd.f32 %v1736, %v1792
        %v1801 = vld [vmem:[%s263 + $0x80] sm:$0xff]
        %v1802 = vld [vmem:[%s263 + $0x88] sm:$0xff]
        %v1803 = vld [vmem:[%s263 + $0x90] sm:$0xff]
        %v1804 = vld [vmem:[%s263 + $0x98] sm:$0xff]
        %v1805 = vld [vmem:[%s263 + $0xa0] sm:$0xff]
        %v1806 = vld [vmem:[%s263 + $0xa8] sm:$0xff]
        %v1807 = vld [vmem:[%s263 + $0xb0] sm:$0xff]
        %v1808 = vld [vmem:[%s263 + $0xb8] sm:$0xff]
        %v1809 = vadd.f32 %v1801, %v1737
        %v1810 = vadd.f32 %v1802, %v1738
        %v1811 = vadd.f32 %v1803, %v1739
        %v1812 = vadd.f32 %v1804, %v1740
        %v1813 = vadd.f32 %v1805, %v1741
        %v1814 = vadd.f32 %v1806, %v1742
        %v1815 = vadd.f32 %v1807, %v1743
        %v1816 = vadd.f32 %v1808, %v1744
        %1817 = vst [vmem:[%s263 + $0x80] sm:$0xff] %v1809
        %1818 = vst [vmem:[%s263 + $0x88] sm:$0xff] %v1810
        %1819 = vst [vmem:[%s263 + $0x90] sm:$0xff] %v1811
        %1820 = vst [vmem:[%s263 + $0x98] sm:$0xff] %v1812
        %1821 = vst [vmem:[%s263 + $0xa0] sm:$0xff] %v1813
        %1822 = vst [vmem:[%s263 + $0xa8] sm:$0xff] %v1814
        %1823 = vst [vmem:[%s263 + $0xb0] sm:$0xff] %v1815
        %1824 = vst [vmem:[%s263 + $0xb8] sm:$0xff] %v1816
        %v1825 = vld [vmem:[%s263 + $0x280] sm:$0xff]
        %v1826 = vld [vmem:[%s263 + $0x288] sm:$0xff]
        %v1827 = vld [vmem:[%s263 + $0x290] sm:$0xff]
        %v1828 = vld [vmem:[%s263 + $0x298] sm:$0xff]
        %v1829 = vld [vmem:[%s263 + $0x2a0] sm:$0xff]
        %v1830 = vld [vmem:[%s263 + $0x2a8] sm:$0xff]
        %v1831 = vld [vmem:[%s263 + $0x2b0] sm:$0xff]
        %v1832 = vld [vmem:[%s263 + $0x2b8] sm:$0xff]
        %v1833 = vadd.f32 %v1825, %v1761
        %v1834 = vadd.f32 %v1826, %v1762
        %v1835 = vadd.f32 %v1827, %v1763
        %v1836 = vadd.f32 %v1828, %v1764
        %v1837 = vadd.f32 %v1829, %v1765
        %v1838 = vadd.f32 %v1830, %v1766
        %v1839 = vadd.f32 %v1831, %v1767
        %v1840 = vadd.f32 %v1832, %v1768
        %1841 = vst [vmem:[%s263 + $0x280] sm:$0xff] %v1833
        %1842 = vst [vmem:[%s263 + $0x288] sm:$0xff] %v1834
        %1843 = vst [vmem:[%s263 + $0x290] sm:$0xff] %v1835
        %1844 = vst [vmem:[%s263 + $0x298] sm:$0xff] %v1836
        %1845 = vst [vmem:[%s263 + $0x2a0] sm:$0xff] %v1837
        %1846 = vst [vmem:[%s263 + $0x2a8] sm:$0xff] %v1838
        %1847 = vst [vmem:[%s263 + $0x2b0] sm:$0xff] %v1839
        %1848 = vst [vmem:[%s263 + $0x2b8] sm:$0xff] %v1840
        %v1849 = vld [vmem:[%s263 + $0x480] sm:$0xff]
        %v1850 = vld [vmem:[%s263 + $0x488] sm:$0xff]
        %v1851 = vld [vmem:[%s263 + $0x490] sm:$0xff]
        %v1852 = vld [vmem:[%s263 + $0x498] sm:$0xff]
        %v1853 = vld [vmem:[%s263 + $0x4a0] sm:$0xff]
        %v1854 = vld [vmem:[%s263 + $0x4a8] sm:$0xff]
        %v1855 = vld [vmem:[%s263 + $0x4b0] sm:$0xff]
        %v1856 = vld [vmem:[%s263 + $0x4b8] sm:$0xff]
        %v1857 = vadd.f32 %v1849, %v1745
        %v1858 = vadd.f32 %v1850, %v1746
        %v1859 = vadd.f32 %v1851, %v1747
        %v1860 = vadd.f32 %v1852, %v1748
        %v1861 = vadd.f32 %v1853, %v1749
        %v1862 = vadd.f32 %v1854, %v1750
        %v1863 = vadd.f32 %v1855, %v1751
        %v1864 = vadd.f32 %v1856, %v1752
        %1865 = vst [vmem:[%s263 + $0x480] sm:$0xff] %v1857
        %1866 = vst [vmem:[%s263 + $0x488] sm:$0xff] %v1858
        %1867 = vst [vmem:[%s263 + $0x490] sm:$0xff] %v1859
        %1868 = vst [vmem:[%s263 + $0x498] sm:$0xff] %v1860
        %1869 = vst [vmem:[%s263 + $0x4a0] sm:$0xff] %v1861
        %1870 = vst [vmem:[%s263 + $0x4a8] sm:$0xff] %v1862
        %1871 = vst [vmem:[%s263 + $0x4b0] sm:$0xff] %v1863
        %1872 = vst [vmem:[%s263 + $0x4b8] sm:$0xff] %v1864
        %v1873 = vld [vmem:[%s263 + $0x680] sm:$0xff]
        %v1874 = vld [vmem:[%s263 + $0x688] sm:$0xff]
        %v1875 = vld [vmem:[%s263 + $0x690] sm:$0xff]
        %v1876 = vld [vmem:[%s263 + $0x698] sm:$0xff]
        %v1877 = vld [vmem:[%s263 + $0x6a0] sm:$0xff]
        %v1878 = vld [vmem:[%s263 + $0x6a8] sm:$0xff]
        %v1879 = vld [vmem:[%s263 + $0x6b0] sm:$0xff]
        %v1880 = vld [vmem:[%s263 + $0x6b8] sm:$0xff]
        %v1881 = vadd.f32 %v1873, %v1777
        %v1882 = vadd.f32 %v1874, %v1778
        %v1883 = vadd.f32 %v1875, %v1779
        %v1884 = vadd.f32 %v1876, %v1780
        %v1885 = vadd.f32 %v1877, %v1781
        %v1886 = vadd.f32 %v1878, %v1782
        %v1887 = vadd.f32 %v1879, %v1783
        %v1888 = vadd.f32 %v1880, %v1784
        %1889 = vst [vmem:[%s263 + $0x680] sm:$0xff] %v1881
        %1890 = vst [vmem:[%s263 + $0x688] sm:$0xff] %v1882
        %1891 = vst [vmem:[%s263 + $0x690] sm:$0xff] %v1883
        %1892 = vst [vmem:[%s263 + $0x698] sm:$0xff] %v1884
        %1893 = vst [vmem:[%s263 + $0x6a0] sm:$0xff] %v1885
        %1894 = vst [vmem:[%s263 + $0x6a8] sm:$0xff] %v1886
        %1895 = vst [vmem:[%s263 + $0x6b0] sm:$0xff] %v1887
        %1896 = vst [vmem:[%s263 + $0x6b8] sm:$0xff] %v1888
        %v1897 = vld [vmem:[%s263 + $0x880] sm:$0xff]
        %v1898 = vld [vmem:[%s263 + $0x888] sm:$0xff]
        %v1899 = vld [vmem:[%s263 + $0x890] sm:$0xff]
        %v1900 = vld [vmem:[%s263 + $0x898] sm:$0xff]
        %v1901 = vld [vmem:[%s263 + $0x8a0] sm:$0xff]
        %v1902 = vld [vmem:[%s263 + $0x8a8] sm:$0xff]
        %v1903 = vld [vmem:[%s263 + $0x8b0] sm:$0xff]
        %v1904 = vld [vmem:[%s263 + $0x8b8] sm:$0xff]
        %v1905 = vadd.f32 %v1897, %v1793
        %v1906 = vadd.f32 %v1898, %v1794
        %v1907 = vadd.f32 %v1899, %v1795
        %v1908 = vadd.f32 %v1900, %v1796
        %v1909 = vadd.f32 %v1901, %v1797
        %v1910 = vadd.f32 %v1902, %v1798
        %v1911 = vadd.f32 %v1903, %v1799
        %v1912 = vadd.f32 %v1904, %v1800
        %1913 = vst [vmem:[%s263 + $0x880] sm:$0xff] %v1905
        %1914 = vst [vmem:[%s263 + $0x888] sm:$0xff] %v1906
        %1915 = vst [vmem:[%s263 + $0x890] sm:$0xff] %v1907
        %1916 = vst [vmem:[%s263 + $0x898] sm:$0xff] %v1908
        %1917 = vst [vmem:[%s263 + $0x8a0] sm:$0xff] %v1909
        %1918 = vst [vmem:[%s263 + $0x8a8] sm:$0xff] %v1910
        %1919 = vst [vmem:[%s263 + $0x8b0] sm:$0xff] %v1911
        %1920 = vst [vmem:[%s263 + $0x8b8] sm:$0xff] %v1912
        %v1921 = vld [vmem:[%s2 + $0x60] sm:$0xf]
        %v1922 = vld [vmem:[%s2 + $0x64] sm:$0xf]
        %v1923 = vld [vmem:[%s2 + $0x68] sm:$0xf]
        %v1924 = vld [vmem:[%s2 + $0x6c] sm:$0xf]
        %v1925 = vld [vmem:[%s2 + $0x70] sm:$0xf]
        %v1926 = vld [vmem:[%s2 + $0x74] sm:$0xf]
        %v1927 = vld [vmem:[%s2 + $0x78] sm:$0xf]
        %v1928 = vld [vmem:[%s2 + $0x7c] sm:$0xf]
        %v1937 = vunpack.c.l.b16 %v1921
        %v1938 = vunpack.c.l.b16 %v1922
        %v1939 = vunpack.c.l.b16 %v1923
        %v1940 = vunpack.c.l.b16 %v1924
        %v1941 = vunpack.c.l.b16 %v1925
        %v1942 = vunpack.c.l.b16 %v1926
        %v1943 = vunpack.c.l.b16 %v1927
        %v1944 = vunpack.c.l.b16 %v1928
        %v1945 = vpack.c.b16 %v1938, %v1937
        %v1946 = vpack.c.b16 %v1940, %v1939
        %v1947 = vpack.c.b16 %v1942, %v1941
        %v1948 = vpack.c.b16 %v1944, %v1943
        %v1950 = vsel %vm631, %v1945, 0
        %v1953 = vsel %vm631, %v1946, 0
        %v1956 = vsel %vm631, %v1947, 0
        %v1959 = vsel %vm631, %v1948, 0
        %1961 = vmatpush.bf16.msra.mxu0 0
        %1962 = vmatpush.bf16.msra.mxu0 0
        %1963 = vmatpush.bf16.msra.mxu0 0
        %1964 = vmatpush.bf16.msra.mxu0 0
        %1965 = vmatpush.bf16.msra.mxu0 0
        %1966 = vmatpush.bf16.msra.mxu0 0
        %1967 = vmatpush.bf16.msra.mxu0 0
        %1968 = vmatpush.bf16.msra.mxu0 %v645
        %1969 = vmatmul.bf16.gmra.mxu0 %v1950
        %v1970 = vpop.f32.mrf.mxu0
        %v1971 = vadd.f32 0.0, %v1970
        %v1972 = vpop.f32.mrf.mxu0
        %v1973 = vadd.f32 0.0, %v1972
        %1974 = vmatmul.bf16.gmra.mxu0 %v1953
        %v1975 = vpop.f32.mrf.mxu0
        %v1976 = vadd.f32 0.0, %v1975
        %v1977 = vpop.f32.mrf.mxu0
        %v1978 = vadd.f32 0.0, %v1977
        %1979 = vmatmul.bf16.gmra.mxu0 %v1956
        %v1980 = vpop.f32.mrf.mxu0
        %v1981 = vadd.f32 0.0, %v1980
        %v1982 = vpop.f32.mrf.mxu0
        %v1983 = vadd.f32 0.0, %v1982
        %1984 = vmatmul.bf16.gmra.mxu0 %v1959
        %v1985 = vpop.f32.mrf.mxu0
        %v1986 = vadd.f32 0.0, %v1985
        %v1987 = vpop.f32.mrf.mxu0
        %v1988 = vadd.f32 0.0, %v1987
        %1989 = vdwg.mxu0
        %1990 = vmatpush.bf16.msra.mxu0 0
        %1991 = vmatpush.bf16.msra.mxu0 0
        %1992 = vmatpush.bf16.msra.mxu0 0
        %1993 = vmatpush.bf16.msra.mxu0 0
        %1994 = vmatpush.bf16.msra.mxu0 0
        %1995 = vmatpush.bf16.msra.mxu0 0
        %1996 = vmatpush.bf16.msra.mxu0 0
        %1997 = vmatpush.bf16.msra.mxu0 %v647
        %1998 = vmatmul.bf16.gmra.mxu0 %v1950
        %v1999 = vpop.f32.mrf.mxu0
        %v2000 = vadd.f32 0.0, %v1999
        %v2001 = vpop.f32.mrf.mxu0
        %v2002 = vadd.f32 0.0, %v2001
        %2003 = vmatmul.bf16.gmra.mxu0 %v1953
        %v2004 = vpop.f32.mrf.mxu0
        %v2005 = vadd.f32 0.0, %v2004
        %v2006 = vpop.f32.mrf.mxu0
        %v2007 = vadd.f32 0.0, %v2006
        %2008 = vmatmul.bf16.gmra.mxu0 %v1956
        %v2009 = vpop.f32.mrf.mxu0
        %v2010 = vadd.f32 0.0, %v2009
        %v2011 = vpop.f32.mrf.mxu0
        %v2012 = vadd.f32 0.0, %v2011
        %2013 = vmatmul.bf16.gmra.mxu0 %v1959
        %v2014 = vpop.f32.mrf.mxu0
        %v2015 = vadd.f32 0.0, %v2014
        %v2016 = vpop.f32.mrf.mxu0
        %v2017 = vadd.f32 0.0, %v2016
        %2018 = vdwg.mxu0
        %2019 = vmatpush.bf16.msra.mxu0 0
        %2020 = vmatpush.bf16.msra.mxu0 0
        %2021 = vmatpush.bf16.msra.mxu0 0
        %2022 = vmatpush.bf16.msra.mxu0 0
        %2023 = vmatpush.bf16.msra.mxu0 0
        %2024 = vmatpush.bf16.msra.mxu0 0
        %2025 = vmatpush.bf16.msra.mxu0 0
        %2026 = vmatpush.bf16.msra.mxu0 %v649
        %2027 = vmatmul.bf16.gmra.mxu0 %v1950
        %v2028 = vpop.f32.mrf.mxu0
        %v2029 = vadd.f32 0.0, %v2028
        %v2030 = vpop.f32.mrf.mxu0
        %v2031 = vadd.f32 0.0, %v2030
        %2032 = vmatmul.bf16.gmra.mxu0 %v1953
        %v2033 = vpop.f32.mrf.mxu0
        %v2034 = vadd.f32 0.0, %v2033
        %v2035 = vpop.f32.mrf.mxu0
        %v2036 = vadd.f32 0.0, %v2035
        %2037 = vmatmul.bf16.gmra.mxu0 %v1956
        %v2038 = vpop.f32.mrf.mxu0
        %v2039 = vadd.f32 0.0, %v2038
        %v2040 = vpop.f32.mrf.mxu0
        %v2041 = vadd.f32 0.0, %v2040
        %2042 = vmatmul.bf16.gmra.mxu0 %v1959
        %v2043 = vpop.f32.mrf.mxu0
        %v2044 = vadd.f32 0.0, %v2043
        %v2045 = vpop.f32.mrf.mxu0
        %v2046 = vadd.f32 0.0, %v2045
        %2047 = vdwg.mxu0
        %2048 = vmatpush.bf16.msra.mxu0 0
        %2049 = vmatpush.bf16.msra.mxu0 0
        %2050 = vmatpush.bf16.msra.mxu0 0
        %2051 = vmatpush.bf16.msra.mxu0 0
        %2052 = vmatpush.bf16.msra.mxu0 0
        %2053 = vmatpush.bf16.msra.mxu0 0
        %2054 = vmatpush.bf16.msra.mxu0 0
        %2055 = vmatpush.bf16.msra.mxu0 %v651
        %2056 = vmatmul.bf16.gmra.mxu0 %v1950
        %v2057 = vpop.f32.mrf.mxu0
        %v2058 = vadd.f32 0.0, %v2057
        %v2059 = vpop.f32.mrf.mxu0
        %v2060 = vadd.f32 0.0, %v2059
        %2061 = vmatmul.bf16.gmra.mxu0 %v1953
        %v2062 = vpop.f32.mrf.mxu0
        %v2063 = vadd.f32 0.0, %v2062
        %v2064 = vpop.f32.mrf.mxu0
        %v2065 = vadd.f32 0.0, %v2064
        %2066 = vmatmul.bf16.gmra.mxu0 %v1956
        %v2067 = vpop.f32.mrf.mxu0
        %v2068 = vadd.f32 0.0, %v2067
        %v2069 = vpop.f32.mrf.mxu0
        %v2070 = vadd.f32 0.0, %v2069
        %2071 = vmatmul.bf16.gmra.mxu0 %v1959
        %v2072 = vpop.f32.mrf.mxu0
        %v2073 = vadd.f32 0.0, %v2072
        %v2074 = vpop.f32.mrf.mxu0
        %v2075 = vadd.f32 0.0, %v2074
        %2076 = vdwg.mxu0
        %v2077 = vmax.f32 %v1971, 0.0
        %v2078 = vmax.f32 %v2000, 0.0
        %v2079 = vmax.f32 %v2029, 0.0
        %v2080 = vmax.f32 %v2058, 0.0
        %v2081 = vmax.f32 %v1973, 0.0
        %v2082 = vmax.f32 %v2002, 0.0
        %v2083 = vmax.f32 %v2031, 0.0
        %v2084 = vmax.f32 %v2060, 0.0
        %v2085 = vmax.f32 %v1976, 0.0
        %v2086 = vmax.f32 %v2005, 0.0
        %v2087 = vmax.f32 %v2034, 0.0
        %v2088 = vmax.f32 %v2063, 0.0
        %v2089 = vmax.f32 %v1978, 0.0
        %v2090 = vmax.f32 %v2007, 0.0
        %v2091 = vmax.f32 %v2036, 0.0
        %v2092 = vmax.f32 %v2065, 0.0
        %v2093 = vmax.f32 %v1981, 0.0
        %v2094 = vmax.f32 %v2010, 0.0
        %v2095 = vmax.f32 %v2039, 0.0
        %v2096 = vmax.f32 %v2068, 0.0
        %v2097 = vmax.f32 %v1983, 0.0
        %v2098 = vmax.f32 %v2012, 0.0
        %v2099 = vmax.f32 %v2041, 0.0
        %v2100 = vmax.f32 %v2070, 0.0
        %v2101 = vmax.f32 %v1986, 0.0
        %v2102 = vmax.f32 %v2015, 0.0
        %v2103 = vmax.f32 %v2044, 0.0
        %v2104 = vmax.f32 %v2073, 0.0
        %v2105 = vmax.f32 %v1988, 0.0
        %v2106 = vmax.f32 %v2017, 0.0
        %v2107 = vmax.f32 %v2046, 0.0
        %v2108 = vmax.f32 %v2075, 0.0
        %v2109 = vadd.f32 %v2077, 0.0
        %v2110 = vadd.f32 %v2081, 0.0
        %v2111 = vadd.f32 %v2085, 0.0
        %v2112 = vadd.f32 %v2089, 0.0
        %v2113 = vadd.f32 %v2093, 0.0
        %v2114 = vadd.f32 %v2097, 0.0
        %v2115 = vadd.f32 %v2101, 0.0
        %v2116 = vadd.f32 %v2105, 0.0
        %v2117 = vadd.f32 %v2079, 0.0
        %v2118 = vadd.f32 %v2083, 0.0
        %v2119 = vadd.f32 %v2087, 0.0
        %v2120 = vadd.f32 %v2091, 0.0
        %v2121 = vadd.f32 %v2095, 0.0
        %v2122 = vadd.f32 %v2099, 0.0
        %v2123 = vadd.f32 %v2103, 0.0
        %v2124 = vadd.f32 %v2107, 0.0
        %v2125 = vmul.f32 %v2077, %v2077
        %v2126 = vmul.f32 %v2081, %v2081
        %v2127 = vmul.f32 %v2085, %v2085
        %v2128 = vmul.f32 %v2089, %v2089
        %v2129 = vmul.f32 %v2093, %v2093
        %v2130 = vmul.f32 %v2097, %v2097
        %v2131 = vmul.f32 %v2101, %v2101
        %v2132 = vmul.f32 %v2105, %v2105
        %v2133 = vadd.f32 %v2125, 0.0
        %v2134 = vadd.f32 %v2126, 0.0
        %v2135 = vadd.f32 %v2127, 0.0
        %v2136 = vadd.f32 %v2128, 0.0
        %v2137 = vadd.f32 %v2129, 0.0
        %v2138 = vadd.f32 %v2130, 0.0
        %v2139 = vadd.f32 %v2131, 0.0
        %v2140 = vadd.f32 %v2132, 0.0
        %v2141 = vmul.f32 %v2079, %v2079
        %v2142 = vmul.f32 %v2083, %v2083
        %v2143 = vmul.f32 %v2087, %v2087
        %v2144 = vmul.f32 %v2091, %v2091
        %v2145 = vmul.f32 %v2095, %v2095
        %v2146 = vmul.f32 %v2099, %v2099
        %v2147 = vmul.f32 %v2103, %v2103
        %v2148 = vmul.f32 %v2107, %v2107
        %v2149 = vadd.f32 %v2141, 0.0
        %v2150 = vadd.f32 %v2142, 0.0
        %v2151 = vadd.f32 %v2143, 0.0
        %v2152 = vadd.f32 %v2144, 0.0
        %v2153 = vadd.f32 %v2145, 0.0
        %v2154 = vadd.f32 %v2146, 0.0
        %v2155 = vadd.f32 %v2147, 0.0
        %v2156 = vadd.f32 %v2148, 0.0
        %v2157 = vmul.f32 %v2077, %v2079
        %v2158 = vmul.f32 %v2081, %v2083
        %v2159 = vmul.f32 %v2085, %v2087
        %v2160 = vmul.f32 %v2089, %v2091
        %v2161 = vmul.f32 %v2093, %v2095
        %v2162 = vmul.f32 %v2097, %v2099
        %v2163 = vmul.f32 %v2101, %v2103
        %v2164 = vmul.f32 %v2105, %v2107
        %v2165 = vadd.f32 %v2157, 0.0
        %v2166 = vadd.f32 %v2158, 0.0
        %v2167 = vadd.f32 %v2159, 0.0
        %v2168 = vadd.f32 %v2160, 0.0
        %v2169 = vadd.f32 %v2161, 0.0
        %v2170 = vadd.f32 %v2162, 0.0
        %v2171 = vadd.f32 %v2163, 0.0
        %v2172 = vadd.f32 %v2164, 0.0
        %v2173 = vadd.f32 %v2109, %v2078
        %v2174 = vadd.f32 %v2110, %v2082
        %v2175 = vadd.f32 %v2111, %v2086
        %v2176 = vadd.f32 %v2112, %v2090
        %v2177 = vadd.f32 %v2113, %v2094
        %v2178 = vadd.f32 %v2114, %v2098
        %v2179 = vadd.f32 %v2115, %v2102
        %v2180 = vadd.f32 %v2116, %v2106
        %v2181 = vadd.f32 %v2117, %v2080
        %v2182 = vadd.f32 %v2118, %v2084
        %v2183 = vadd.f32 %v2119, %v2088
        %v2184 = vadd.f32 %v2120, %v2092
        %v2185 = vadd.f32 %v2121, %v2096
        %v2186 = vadd.f32 %v2122, %v2100
        %v2187 = vadd.f32 %v2123, %v2104
        %v2188 = vadd.f32 %v2124, %v2108
        %v2189 = vmul.f32 %v2078, %v2078
        %v2190 = vmul.f32 %v2082, %v2082
        %v2191 = vmul.f32 %v2086, %v2086
        %v2192 = vmul.f32 %v2090, %v2090
        %v2193 = vmul.f32 %v2094, %v2094
        %v2194 = vmul.f32 %v2098, %v2098
        %v2195 = vmul.f32 %v2102, %v2102
        %v2196 = vmul.f32 %v2106, %v2106
        %v2197 = vadd.f32 %v2133, %v2189
        %v2198 = vadd.f32 %v2134, %v2190
        %v2199 = vadd.f32 %v2135, %v2191
        %v2200 = vadd.f32 %v2136, %v2192
        %v2201 = vadd.f32 %v2137, %v2193
        %v2202 = vadd.f32 %v2138, %v2194
        %v2203 = vadd.f32 %v2139, %v2195
        %v2204 = vadd.f32 %v2140, %v2196
        %v2205 = vmul.f32 %v2080, %v2080
        %v2206 = vmul.f32 %v2084, %v2084
        %v2207 = vmul.f32 %v2088, %v2088
        %v2208 = vmul.f32 %v2092, %v2092
        %v2209 = vmul.f32 %v2096, %v2096
        %v2210 = vmul.f32 %v2100, %v2100
        %v2211 = vmul.f32 %v2104, %v2104
        %v2212 = vmul.f32 %v2108, %v2108
        %v2213 = vadd.f32 %v2149, %v2205
        %v2214 = vadd.f32 %v2150, %v2206
        %v2215 = vadd.f32 %v2151, %v2207
        %v2216 = vadd.f32 %v2152, %v2208
        %v2217 = vadd.f32 %v2153, %v2209
        %v2218 = vadd.f32 %v2154, %v2210
        %v2219 = vadd.f32 %v2155, %v2211
        %v2220 = vadd.f32 %v2156, %v2212
        %v2221 = vmul.f32 %v2078, %v2080
        %v2222 = vmul.f32 %v2082, %v2084
        %v2223 = vmul.f32 %v2086, %v2088
        %v2224 = vmul.f32 %v2090, %v2092
        %v2225 = vmul.f32 %v2094, %v2096
        %v2226 = vmul.f32 %v2098, %v2100
        %v2227 = vmul.f32 %v2102, %v2104
        %v2228 = vmul.f32 %v2106, %v2108
        %v2229 = vadd.f32 %v2165, %v2221
        %v2230 = vadd.f32 %v2166, %v2222
        %v2231 = vadd.f32 %v2167, %v2223
        %v2232 = vadd.f32 %v2168, %v2224
        %v2233 = vadd.f32 %v2169, %v2225
        %v2234 = vadd.f32 %v2170, %v2226
        %v2235 = vadd.f32 %v2171, %v2227
        %v2236 = vadd.f32 %v2172, %v2228
        %v2237 = vld [vmem:[%s263 + $0xc0] sm:$0xff]
        %v2238 = vld [vmem:[%s263 + $0xc8] sm:$0xff]
        %v2239 = vld [vmem:[%s263 + $0xd0] sm:$0xff]
        %v2240 = vld [vmem:[%s263 + $0xd8] sm:$0xff]
        %v2241 = vld [vmem:[%s263 + $0xe0] sm:$0xff]
        %v2242 = vld [vmem:[%s263 + $0xe8] sm:$0xff]
        %v2243 = vld [vmem:[%s263 + $0xf0] sm:$0xff]
        %v2244 = vld [vmem:[%s263 + $0xf8] sm:$0xff]
        %v2245 = vadd.f32 %v2237, %v2173
        %v2246 = vadd.f32 %v2238, %v2174
        %v2247 = vadd.f32 %v2239, %v2175
        %v2248 = vadd.f32 %v2240, %v2176
        %v2249 = vadd.f32 %v2241, %v2177
        %v2250 = vadd.f32 %v2242, %v2178
        %v2251 = vadd.f32 %v2243, %v2179
        %v2252 = vadd.f32 %v2244, %v2180
        %2253 = vst [vmem:[%s263 + $0xc0] sm:$0xff] %v2245
        %2254 = vst [vmem:[%s263 + $0xc8] sm:$0xff] %v2246
        %2255 = vst [vmem:[%s263 + $0xd0] sm:$0xff] %v2247
        %2256 = vst [vmem:[%s263 + $0xd8] sm:$0xff] %v2248
        %2257 = vst [vmem:[%s263 + $0xe0] sm:$0xff] %v2249
        %2258 = vst [vmem:[%s263 + $0xe8] sm:$0xff] %v2250
        %2259 = vst [vmem:[%s263 + $0xf0] sm:$0xff] %v2251
        %2260 = vst [vmem:[%s263 + $0xf8] sm:$0xff] %v2252
        %v2261 = vld [vmem:[%s263 + $0x2c0] sm:$0xff]
        %v2262 = vld [vmem:[%s263 + $0x2c8] sm:$0xff]
        %v2263 = vld [vmem:[%s263 + $0x2d0] sm:$0xff]
        %v2264 = vld [vmem:[%s263 + $0x2d8] sm:$0xff]
        %v2265 = vld [vmem:[%s263 + $0x2e0] sm:$0xff]
        %v2266 = vld [vmem:[%s263 + $0x2e8] sm:$0xff]
        %v2267 = vld [vmem:[%s263 + $0x2f0] sm:$0xff]
        %v2268 = vld [vmem:[%s263 + $0x2f8] sm:$0xff]
        %v2269 = vadd.f32 %v2261, %v2197
        %v2270 = vadd.f32 %v2262, %v2198
        %v2271 = vadd.f32 %v2263, %v2199
        %v2272 = vadd.f32 %v2264, %v2200
        %v2273 = vadd.f32 %v2265, %v2201
        %v2274 = vadd.f32 %v2266, %v2202
        %v2275 = vadd.f32 %v2267, %v2203
        %v2276 = vadd.f32 %v2268, %v2204
        %2277 = vst [vmem:[%s263 + $0x2c0] sm:$0xff] %v2269
        %2278 = vst [vmem:[%s263 + $0x2c8] sm:$0xff] %v2270
        %2279 = vst [vmem:[%s263 + $0x2d0] sm:$0xff] %v2271
        %2280 = vst [vmem:[%s263 + $0x2d8] sm:$0xff] %v2272
        %2281 = vst [vmem:[%s263 + $0x2e0] sm:$0xff] %v2273
        %2282 = vst [vmem:[%s263 + $0x2e8] sm:$0xff] %v2274
        %2283 = vst [vmem:[%s263 + $0x2f0] sm:$0xff] %v2275
        %2284 = vst [vmem:[%s263 + $0x2f8] sm:$0xff] %v2276
        %v2285 = vld [vmem:[%s263 + $0x4c0] sm:$0xff]
        %v2286 = vld [vmem:[%s263 + $0x4c8] sm:$0xff]
        %v2287 = vld [vmem:[%s263 + $0x4d0] sm:$0xff]
        %v2288 = vld [vmem:[%s263 + $0x4d8] sm:$0xff]
        %v2289 = vld [vmem:[%s263 + $0x4e0] sm:$0xff]
        %v2290 = vld [vmem:[%s263 + $0x4e8] sm:$0xff]
        %v2291 = vld [vmem:[%s263 + $0x4f0] sm:$0xff]
        %v2292 = vld [vmem:[%s263 + $0x4f8] sm:$0xff]
        %v2293 = vadd.f32 %v2285, %v2181
        %v2294 = vadd.f32 %v2286, %v2182
        %v2295 = vadd.f32 %v2287, %v2183
        %v2296 = vadd.f32 %v2288, %v2184
        %v2297 = vadd.f32 %v2289, %v2185
        %v2298 = vadd.f32 %v2290, %v2186
        %v2299 = vadd.f32 %v2291, %v2187
        %v2300 = vadd.f32 %v2292, %v2188
        %2301 = vst [vmem:[%s263 + $0x4c0] sm:$0xff] %v2293
        %2302 = vst [vmem:[%s263 + $0x4c8] sm:$0xff] %v2294
        %2303 = vst [vmem:[%s263 + $0x4d0] sm:$0xff] %v2295
        %2304 = vst [vmem:[%s263 + $0x4d8] sm:$0xff] %v2296
        %2305 = vst [vmem:[%s263 + $0x4e0] sm:$0xff] %v2297
        %2306 = vst [vmem:[%s263 + $0x4e8] sm:$0xff] %v2298
        %2307 = vst [vmem:[%s263 + $0x4f0] sm:$0xff] %v2299
        %2308 = vst [vmem:[%s263 + $0x4f8] sm:$0xff] %v2300
        %v2309 = vld [vmem:[%s263 + $0x6c0] sm:$0xff]
        %v2310 = vld [vmem:[%s263 + $0x6c8] sm:$0xff]
        %v2311 = vld [vmem:[%s263 + $0x6d0] sm:$0xff]
        %v2312 = vld [vmem:[%s263 + $0x6d8] sm:$0xff]
        %v2313 = vld [vmem:[%s263 + $0x6e0] sm:$0xff]
        %v2314 = vld [vmem:[%s263 + $0x6e8] sm:$0xff]
        %v2315 = vld [vmem:[%s263 + $0x6f0] sm:$0xff]
        %v2316 = vld [vmem:[%s263 + $0x6f8] sm:$0xff]
        %v2317 = vadd.f32 %v2309, %v2213
        %v2318 = vadd.f32 %v2310, %v2214
        %v2319 = vadd.f32 %v2311, %v2215
        %v2320 = vadd.f32 %v2312, %v2216
        %v2321 = vadd.f32 %v2313, %v2217
        %v2322 = vadd.f32 %v2314, %v2218
        %v2323 = vadd.f32 %v2315, %v2219
        %v2324 = vadd.f32 %v2316, %v2220
        %2325 = vst [vmem:[%s263 + $0x6c0] sm:$0xff] %v2317
        %2326 = vst [vmem:[%s263 + $0x6c8] sm:$0xff] %v2318
        %2327 = vst [vmem:[%s263 + $0x6d0] sm:$0xff] %v2319
        %2328 = vst [vmem:[%s263 + $0x6d8] sm:$0xff] %v2320
        %2329 = vst [vmem:[%s263 + $0x6e0] sm:$0xff] %v2321
        %2330 = vst [vmem:[%s263 + $0x6e8] sm:$0xff] %v2322
        %2331 = vst [vmem:[%s263 + $0x6f0] sm:$0xff] %v2323
        %2332 = vst [vmem:[%s263 + $0x6f8] sm:$0xff] %v2324
        %v2333 = vld [vmem:[%s263 + $0x8c0] sm:$0xff]
        %v2334 = vld [vmem:[%s263 + $0x8c8] sm:$0xff]
        %v2335 = vld [vmem:[%s263 + $0x8d0] sm:$0xff]
        %v2336 = vld [vmem:[%s263 + $0x8d8] sm:$0xff]
        %v2337 = vld [vmem:[%s263 + $0x8e0] sm:$0xff]
        %v2338 = vld [vmem:[%s263 + $0x8e8] sm:$0xff]
        %v2339 = vld [vmem:[%s263 + $0x8f0] sm:$0xff]
        %v2340 = vld [vmem:[%s263 + $0x8f8] sm:$0xff]
        %v2341 = vadd.f32 %v2333, %v2229
        %v2342 = vadd.f32 %v2334, %v2230
        %v2343 = vadd.f32 %v2335, %v2231
        %v2344 = vadd.f32 %v2336, %v2232
        %v2345 = vadd.f32 %v2337, %v2233
        %v2346 = vadd.f32 %v2338, %v2234
        %v2347 = vadd.f32 %v2339, %v2235
        %v2348 = vadd.f32 %v2340, %v2236
        %2349 = vst [vmem:[%s263 + $0x8c0] sm:$0xff] %v2341
        %2350 = vst [vmem:[%s263 + $0x8c8] sm:$0xff] %v2342
        %2351 = vst [vmem:[%s263 + $0x8d0] sm:$0xff] %v2343
        %2352 = vst [vmem:[%s263 + $0x8d8] sm:$0xff] %v2344
        %2353 = vst [vmem:[%s263 + $0x8e0] sm:$0xff] %v2345
        %2354 = vst [vmem:[%s263 + $0x8e8] sm:$0xff] %v2346
        %2355 = vst [vmem:[%s263 + $0x8f0] sm:$0xff] %v2347
        %2356 = vst [vmem:[%s263 + $0x8f8] sm:$0xff] %v2348
        %v2357 = vld [vmem:[%s2 + $0x80] sm:$0xf]
        %v2358 = vld [vmem:[%s2 + $0x84] sm:$0xf]
        %v2359 = vld [vmem:[%s2 + $0x88] sm:$0xf]
        %v2360 = vld [vmem:[%s2 + $0x8c] sm:$0xf]
        %v2361 = vld [vmem:[%s2 + $0x90] sm:$0xf]
        %v2362 = vld [vmem:[%s2 + $0x94] sm:$0xf]
        %v2363 = vld [vmem:[%s2 + $0x98] sm:$0xf]
        %v2364 = vld [vmem:[%s2 + $0x9c] sm:$0xf]
        %v2373 = vunpack.c.l.b16 %v2357
        %v2374 = vunpack.c.l.b16 %v2358
        %v2375 = vunpack.c.l.b16 %v2359
        %v2376 = vunpack.c.l.b16 %v2360
        %v2377 = vunpack.c.l.b16 %v2361
        %v2378 = vunpack.c.l.b16 %v2362
        %v2379 = vunpack.c.l.b16 %v2363
        %v2380 = vunpack.c.l.b16 %v2364
        %v2381 = vpack.c.b16 %v2374, %v2373
        %v2382 = vpack.c.b16 %v2376, %v2375
        %v2383 = vpack.c.b16 %v2378, %v2377
        %v2384 = vpack.c.b16 %v2380, %v2379
        %v2386 = vsel %vm631, %v2381, 0
        %v2389 = vsel %vm631, %v2382, 0
        %v2392 = vsel %vm631, %v2383, 0
        %v2395 = vsel %vm631, %v2384, 0
        %2397 = vmatpush.bf16.msra.mxu0 0
        %2398 = vmatpush.bf16.msra.mxu0 0
        %2399 = vmatpush.bf16.msra.mxu0 0
        %2400 = vmatpush.bf16.msra.mxu0 0
        %2401 = vmatpush.bf16.msra.mxu0 0
        %2402 = vmatpush.bf16.msra.mxu0 0
        %2403 = vmatpush.bf16.msra.mxu0 0
        %2404 = vmatpush.bf16.msra.mxu0 %v645
        %2405 = vmatmul.bf16.gmra.mxu0 %v2386
        %v2406 = vpop.f32.mrf.mxu0
        %v2407 = vadd.f32 0.0, %v2406
        %v2408 = vpop.f32.mrf.mxu0
        %v2409 = vadd.f32 0.0, %v2408
        %2410 = vmatmul.bf16.gmra.mxu0 %v2389
        %v2411 = vpop.f32.mrf.mxu0
        %v2412 = vadd.f32 0.0, %v2411
        %v2413 = vpop.f32.mrf.mxu0
        %v2414 = vadd.f32 0.0, %v2413
        %2415 = vmatmul.bf16.gmra.mxu0 %v2392
        %v2416 = vpop.f32.mrf.mxu0
        %v2417 = vadd.f32 0.0, %v2416
        %v2418 = vpop.f32.mrf.mxu0
        %v2419 = vadd.f32 0.0, %v2418
        %2420 = vmatmul.bf16.gmra.mxu0 %v2395
        %v2421 = vpop.f32.mrf.mxu0
        %v2422 = vadd.f32 0.0, %v2421
        %v2423 = vpop.f32.mrf.mxu0
        %v2424 = vadd.f32 0.0, %v2423
        %2425 = vdwg.mxu0
        %2426 = vmatpush.bf16.msra.mxu0 0
        %2427 = vmatpush.bf16.msra.mxu0 0
        %2428 = vmatpush.bf16.msra.mxu0 0
        %2429 = vmatpush.bf16.msra.mxu0 0
        %2430 = vmatpush.bf16.msra.mxu0 0
        %2431 = vmatpush.bf16.msra.mxu0 0
        %2432 = vmatpush.bf16.msra.mxu0 0
        %2433 = vmatpush.bf16.msra.mxu0 %v647
        %2434 = vmatmul.bf16.gmra.mxu0 %v2386
        %v2435 = vpop.f32.mrf.mxu0
        %v2436 = vadd.f32 0.0, %v2435
        %v2437 = vpop.f32.mrf.mxu0
        %v2438 = vadd.f32 0.0, %v2437
        %2439 = vmatmul.bf16.gmra.mxu0 %v2389
        %v2440 = vpop.f32.mrf.mxu0
        %v2441 = vadd.f32 0.0, %v2440
        %v2442 = vpop.f32.mrf.mxu0
        %v2443 = vadd.f32 0.0, %v2442
        %2444 = vmatmul.bf16.gmra.mxu0 %v2392
        %v2445 = vpop.f32.mrf.mxu0
        %v2446 = vadd.f32 0.0, %v2445
        %v2447 = vpop.f32.mrf.mxu0
        %v2448 = vadd.f32 0.0, %v2447
        %2449 = vmatmul.bf16.gmra.mxu0 %v2395
        %v2450 = vpop.f32.mrf.mxu0
        %v2451 = vadd.f32 0.0, %v2450
        %v2452 = vpop.f32.mrf.mxu0
        %v2453 = vadd.f32 0.0, %v2452
        %2454 = vdwg.mxu0
        %2455 = vmatpush.bf16.msra.mxu0 0
        %2456 = vmatpush.bf16.msra.mxu0 0
        %2457 = vmatpush.bf16.msra.mxu0 0
        %2458 = vmatpush.bf16.msra.mxu0 0
        %2459 = vmatpush.bf16.msra.mxu0 0
        %2460 = vmatpush.bf16.msra.mxu0 0
        %2461 = vmatpush.bf16.msra.mxu0 0
        %2462 = vmatpush.bf16.msra.mxu0 %v649
        %2463 = vmatmul.bf16.gmra.mxu0 %v2386
        %v2464 = vpop.f32.mrf.mxu0
        %v2465 = vadd.f32 0.0, %v2464
        %v2466 = vpop.f32.mrf.mxu0
        %v2467 = vadd.f32 0.0, %v2466
        %2468 = vmatmul.bf16.gmra.mxu0 %v2389
        %v2469 = vpop.f32.mrf.mxu0
        %v2470 = vadd.f32 0.0, %v2469
        %v2471 = vpop.f32.mrf.mxu0
        %v2472 = vadd.f32 0.0, %v2471
        %2473 = vmatmul.bf16.gmra.mxu0 %v2392
        %v2474 = vpop.f32.mrf.mxu0
        %v2475 = vadd.f32 0.0, %v2474
        %v2476 = vpop.f32.mrf.mxu0
        %v2477 = vadd.f32 0.0, %v2476
        %2478 = vmatmul.bf16.gmra.mxu0 %v2395
        %v2479 = vpop.f32.mrf.mxu0
        %v2480 = vadd.f32 0.0, %v2479
        %v2481 = vpop.f32.mrf.mxu0
        %v2482 = vadd.f32 0.0, %v2481
        %2483 = vdwg.mxu0
        %2484 = vmatpush.bf16.msra.mxu0 0
        %2485 = vmatpush.bf16.msra.mxu0 0
        %2486 = vmatpush.bf16.msra.mxu0 0
        %2487 = vmatpush.bf16.msra.mxu0 0
        %2488 = vmatpush.bf16.msra.mxu0 0
        %2489 = vmatpush.bf16.msra.mxu0 0
        %2490 = vmatpush.bf16.msra.mxu0 0
        %2491 = vmatpush.bf16.msra.mxu0 %v651
        %2492 = vmatmul.bf16.gmra.mxu0 %v2386
        %v2493 = vpop.f32.mrf.mxu0
        %v2494 = vadd.f32 0.0, %v2493
        %v2495 = vpop.f32.mrf.mxu0
        %v2496 = vadd.f32 0.0, %v2495
        %2497 = vmatmul.bf16.gmra.mxu0 %v2389
        %v2498 = vpop.f32.mrf.mxu0
        %v2499 = vadd.f32 0.0, %v2498
        %v2500 = vpop.f32.mrf.mxu0
        %v2501 = vadd.f32 0.0, %v2500
        %2502 = vmatmul.bf16.gmra.mxu0 %v2392
        %v2503 = vpop.f32.mrf.mxu0
        %v2504 = vadd.f32 0.0, %v2503
        %v2505 = vpop.f32.mrf.mxu0
        %v2506 = vadd.f32 0.0, %v2505
        %2507 = vmatmul.bf16.gmra.mxu0 %v2395
        %v2508 = vpop.f32.mrf.mxu0
        %v2509 = vadd.f32 0.0, %v2508
        %v2510 = vpop.f32.mrf.mxu0
        %v2511 = vadd.f32 0.0, %v2510
        %2512 = vdwg.mxu0
        %v2513 = vmax.f32 %v2407, 0.0
        %v2514 = vmax.f32 %v2436, 0.0
        %v2515 = vmax.f32 %v2465, 0.0
        %v2516 = vmax.f32 %v2494, 0.0
        %v2517 = vmax.f32 %v2409, 0.0
        %v2518 = vmax.f32 %v2438, 0.0
        %v2519 = vmax.f32 %v2467, 0.0
        %v2520 = vmax.f32 %v2496, 0.0
        %v2521 = vmax.f32 %v2412, 0.0
        %v2522 = vmax.f32 %v2441, 0.0
        %v2523 = vmax.f32 %v2470, 0.0
        %v2524 = vmax.f32 %v2499, 0.0
        %v2525 = vmax.f32 %v2414, 0.0
        %v2526 = vmax.f32 %v2443, 0.0
        %v2527 = vmax.f32 %v2472, 0.0
        %v2528 = vmax.f32 %v2501, 0.0
        %v2529 = vmax.f32 %v2417, 0.0
        %v2530 = vmax.f32 %v2446, 0.0
        %v2531 = vmax.f32 %v2475, 0.0
        %v2532 = vmax.f32 %v2504, 0.0
        %v2533 = vmax.f32 %v2419, 0.0
        %v2534 = vmax.f32 %v2448, 0.0
        %v2535 = vmax.f32 %v2477, 0.0
        %v2536 = vmax.f32 %v2506, 0.0
        %v2537 = vmax.f32 %v2422, 0.0
        %v2538 = vmax.f32 %v2451, 0.0
        %v2539 = vmax.f32 %v2480, 0.0
        %v2540 = vmax.f32 %v2509, 0.0
        %v2541 = vmax.f32 %v2424, 0.0
        %v2542 = vmax.f32 %v2453, 0.0
        %v2543 = vmax.f32 %v2482, 0.0
        %v2544 = vmax.f32 %v2511, 0.0
        %v2545 = vadd.f32 %v2513, 0.0
        %v2546 = vadd.f32 %v2517, 0.0
        %v2547 = vadd.f32 %v2521, 0.0
        %v2548 = vadd.f32 %v2525, 0.0
        %v2549 = vadd.f32 %v2529, 0.0
        %v2550 = vadd.f32 %v2533, 0.0
        %v2551 = vadd.f32 %v2537, 0.0
        %v2552 = vadd.f32 %v2541, 0.0
        %v2553 = vadd.f32 %v2515, 0.0
        %v2554 = vadd.f32 %v2519, 0.0
        %v2555 = vadd.f32 %v2523, 0.0
        %v2556 = vadd.f32 %v2527, 0.0
        %v2557 = vadd.f32 %v2531, 0.0
        %v2558 = vadd.f32 %v2535, 0.0
        %v2559 = vadd.f32 %v2539, 0.0
        %v2560 = vadd.f32 %v2543, 0.0
        %v2561 = vmul.f32 %v2513, %v2513
        %v2562 = vmul.f32 %v2517, %v2517
        %v2563 = vmul.f32 %v2521, %v2521
        %v2564 = vmul.f32 %v2525, %v2525
        %v2565 = vmul.f32 %v2529, %v2529
        %v2566 = vmul.f32 %v2533, %v2533
        %v2567 = vmul.f32 %v2537, %v2537
        %v2568 = vmul.f32 %v2541, %v2541
        %v2569 = vadd.f32 %v2561, 0.0
        %v2570 = vadd.f32 %v2562, 0.0
        %v2571 = vadd.f32 %v2563, 0.0
        %v2572 = vadd.f32 %v2564, 0.0
        %v2573 = vadd.f32 %v2565, 0.0
        %v2574 = vadd.f32 %v2566, 0.0
        %v2575 = vadd.f32 %v2567, 0.0
        %v2576 = vadd.f32 %v2568, 0.0
        %v2577 = vmul.f32 %v2515, %v2515
        %v2578 = vmul.f32 %v2519, %v2519
        %v2579 = vmul.f32 %v2523, %v2523
        %v2580 = vmul.f32 %v2527, %v2527
        %v2581 = vmul.f32 %v2531, %v2531
        %v2582 = vmul.f32 %v2535, %v2535
        %v2583 = vmul.f32 %v2539, %v2539
        %v2584 = vmul.f32 %v2543, %v2543
        %v2585 = vadd.f32 %v2577, 0.0
        %v2586 = vadd.f32 %v2578, 0.0
        %v2587 = vadd.f32 %v2579, 0.0
        %v2588 = vadd.f32 %v2580, 0.0
        %v2589 = vadd.f32 %v2581, 0.0
        %v2590 = vadd.f32 %v2582, 0.0
        %v2591 = vadd.f32 %v2583, 0.0
        %v2592 = vadd.f32 %v2584, 0.0
        %v2593 = vmul.f32 %v2513, %v2515
        %v2594 = vmul.f32 %v2517, %v2519
        %v2595 = vmul.f32 %v2521, %v2523
        %v2596 = vmul.f32 %v2525, %v2527
        %v2597 = vmul.f32 %v2529, %v2531
        %v2598 = vmul.f32 %v2533, %v2535
        %v2599 = vmul.f32 %v2537, %v2539
        %v2600 = vmul.f32 %v2541, %v2543
        %v2601 = vadd.f32 %v2593, 0.0
        %v2602 = vadd.f32 %v2594, 0.0
        %v2603 = vadd.f32 %v2595, 0.0
        %v2604 = vadd.f32 %v2596, 0.0
        %v2605 = vadd.f32 %v2597, 0.0
        %v2606 = vadd.f32 %v2598, 0.0
        %v2607 = vadd.f32 %v2599, 0.0
        %v2608 = vadd.f32 %v2600, 0.0
        %v2609 = vadd.f32 %v2545, %v2514
        %v2610 = vadd.f32 %v2546, %v2518
        %v2611 = vadd.f32 %v2547, %v2522
        %v2612 = vadd.f32 %v2548, %v2526
        %v2613 = vadd.f32 %v2549, %v2530
        %v2614 = vadd.f32 %v2550, %v2534
        %v2615 = vadd.f32 %v2551, %v2538
        %v2616 = vadd.f32 %v2552, %v2542
        %v2617 = vadd.f32 %v2553, %v2516
        %v2618 = vadd.f32 %v2554, %v2520
        %v2619 = vadd.f32 %v2555, %v2524
        %v2620 = vadd.f32 %v2556, %v2528
        %v2621 = vadd.f32 %v2557, %v2532
        %v2622 = vadd.f32 %v2558, %v2536
        %v2623 = vadd.f32 %v2559, %v2540
        %v2624 = vadd.f32 %v2560, %v2544
        %v2625 = vmul.f32 %v2514, %v2514
        %v2626 = vmul.f32 %v2518, %v2518
        %v2627 = vmul.f32 %v2522, %v2522
        %v2628 = vmul.f32 %v2526, %v2526
        %v2629 = vmul.f32 %v2530, %v2530
        %v2630 = vmul.f32 %v2534, %v2534
        %v2631 = vmul.f32 %v2538, %v2538
        %v2632 = vmul.f32 %v2542, %v2542
        %v2633 = vadd.f32 %v2569, %v2625
        %v2634 = vadd.f32 %v2570, %v2626
        %v2635 = vadd.f32 %v2571, %v2627
        %v2636 = vadd.f32 %v2572, %v2628
        %v2637 = vadd.f32 %v2573, %v2629
        %v2638 = vadd.f32 %v2574, %v2630
        %v2639 = vadd.f32 %v2575, %v2631
        %v2640 = vadd.f32 %v2576, %v2632
        %v2641 = vmul.f32 %v2516, %v2516
        %v2642 = vmul.f32 %v2520, %v2520
        %v2643 = vmul.f32 %v2524, %v2524
        %v2644 = vmul.f32 %v2528, %v2528
        %v2645 = vmul.f32 %v2532, %v2532
        %v2646 = vmul.f32 %v2536, %v2536
        %v2647 = vmul.f32 %v2540, %v2540
        %v2648 = vmul.f32 %v2544, %v2544
        %v2649 = vadd.f32 %v2585, %v2641
        %v2650 = vadd.f32 %v2586, %v2642
        %v2651 = vadd.f32 %v2587, %v2643
        %v2652 = vadd.f32 %v2588, %v2644
        %v2653 = vadd.f32 %v2589, %v2645
        %v2654 = vadd.f32 %v2590, %v2646
        %v2655 = vadd.f32 %v2591, %v2647
        %v2656 = vadd.f32 %v2592, %v2648
        %v2657 = vmul.f32 %v2514, %v2516
        %v2658 = vmul.f32 %v2518, %v2520
        %v2659 = vmul.f32 %v2522, %v2524
        %v2660 = vmul.f32 %v2526, %v2528
        %v2661 = vmul.f32 %v2530, %v2532
        %v2662 = vmul.f32 %v2534, %v2536
        %v2663 = vmul.f32 %v2538, %v2540
        %v2664 = vmul.f32 %v2542, %v2544
        %v2665 = vadd.f32 %v2601, %v2657
        %v2666 = vadd.f32 %v2602, %v2658
        %v2667 = vadd.f32 %v2603, %v2659
        %v2668 = vadd.f32 %v2604, %v2660
        %v2669 = vadd.f32 %v2605, %v2661
        %v2670 = vadd.f32 %v2606, %v2662
        %v2671 = vadd.f32 %v2607, %v2663
        %v2672 = vadd.f32 %v2608, %v2664
        %v2673 = vld [vmem:[%s263 + $0x100] sm:$0xff]
        %v2674 = vld [vmem:[%s263 + $0x108] sm:$0xff]
        %v2675 = vld [vmem:[%s263 + $0x110] sm:$0xff]
        %v2676 = vld [vmem:[%s263 + $0x118] sm:$0xff]
        %v2677 = vld [vmem:[%s263 + $0x120] sm:$0xff]
        %v2678 = vld [vmem:[%s263 + $0x128] sm:$0xff]
        %v2679 = vld [vmem:[%s263 + $0x130] sm:$0xff]
        %v2680 = vld [vmem:[%s263 + $0x138] sm:$0xff]
        %v2681 = vadd.f32 %v2673, %v2609
        %v2682 = vadd.f32 %v2674, %v2610
        %v2683 = vadd.f32 %v2675, %v2611
        %v2684 = vadd.f32 %v2676, %v2612
        %v2685 = vadd.f32 %v2677, %v2613
        %v2686 = vadd.f32 %v2678, %v2614
        %v2687 = vadd.f32 %v2679, %v2615
        %v2688 = vadd.f32 %v2680, %v2616
        %2689 = vst [vmem:[%s263 + $0x100] sm:$0xff] %v2681
        %2690 = vst [vmem:[%s263 + $0x108] sm:$0xff] %v2682
        %2691 = vst [vmem:[%s263 + $0x110] sm:$0xff] %v2683
        %2692 = vst [vmem:[%s263 + $0x118] sm:$0xff] %v2684
        %2693 = vst [vmem:[%s263 + $0x120] sm:$0xff] %v2685
        %2694 = vst [vmem:[%s263 + $0x128] sm:$0xff] %v2686
        %2695 = vst [vmem:[%s263 + $0x130] sm:$0xff] %v2687
        %2696 = vst [vmem:[%s263 + $0x138] sm:$0xff] %v2688
        %v2697 = vld [vmem:[%s263 + $0x300] sm:$0xff]
        %v2698 = vld [vmem:[%s263 + $0x308] sm:$0xff]
        %v2699 = vld [vmem:[%s263 + $0x310] sm:$0xff]
        %v2700 = vld [vmem:[%s263 + $0x318] sm:$0xff]
        %v2701 = vld [vmem:[%s263 + $0x320] sm:$0xff]
        %v2702 = vld [vmem:[%s263 + $0x328] sm:$0xff]
        %v2703 = vld [vmem:[%s263 + $0x330] sm:$0xff]
        %v2704 = vld [vmem:[%s263 + $0x338] sm:$0xff]
        %v2705 = vadd.f32 %v2697, %v2633
        %v2706 = vadd.f32 %v2698, %v2634
        %v2707 = vadd.f32 %v2699, %v2635
        %v2708 = vadd.f32 %v2700, %v2636
        %v2709 = vadd.f32 %v2701, %v2637
        %v2710 = vadd.f32 %v2702, %v2638
        %v2711 = vadd.f32 %v2703, %v2639
        %v2712 = vadd.f32 %v2704, %v2640
        %2713 = vst [vmem:[%s263 + $0x300] sm:$0xff] %v2705
        %2714 = vst [vmem:[%s263 + $0x308] sm:$0xff] %v2706
        %2715 = vst [vmem:[%s263 + $0x310] sm:$0xff] %v2707
        %2716 = vst [vmem:[%s263 + $0x318] sm:$0xff] %v2708
        %2717 = vst [vmem:[%s263 + $0x320] sm:$0xff] %v2709
        %2718 = vst [vmem:[%s263 + $0x328] sm:$0xff] %v2710
        %2719 = vst [vmem:[%s263 + $0x330] sm:$0xff] %v2711
        %2720 = vst [vmem:[%s263 + $0x338] sm:$0xff] %v2712
        %v2721 = vld [vmem:[%s263 + $0x500] sm:$0xff]
        %v2722 = vld [vmem:[%s263 + $0x508] sm:$0xff]
        %v2723 = vld [vmem:[%s263 + $0x510] sm:$0xff]
        %v2724 = vld [vmem:[%s263 + $0x518] sm:$0xff]
        %v2725 = vld [vmem:[%s263 + $0x520] sm:$0xff]
        %v2726 = vld [vmem:[%s263 + $0x528] sm:$0xff]
        %v2727 = vld [vmem:[%s263 + $0x530] sm:$0xff]
        %v2728 = vld [vmem:[%s263 + $0x538] sm:$0xff]
        %v2729 = vadd.f32 %v2721, %v2617
        %v2730 = vadd.f32 %v2722, %v2618
        %v2731 = vadd.f32 %v2723, %v2619
        %v2732 = vadd.f32 %v2724, %v2620
        %v2733 = vadd.f32 %v2725, %v2621
        %v2734 = vadd.f32 %v2726, %v2622
        %v2735 = vadd.f32 %v2727, %v2623
        %v2736 = vadd.f32 %v2728, %v2624
        %2737 = vst [vmem:[%s263 + $0x500] sm:$0xff] %v2729
        %2738 = vst [vmem:[%s263 + $0x508] sm:$0xff] %v2730
        %2739 = vst [vmem:[%s263 + $0x510] sm:$0xff] %v2731
        %2740 = vst [vmem:[%s263 + $0x518] sm:$0xff] %v2732
        %2741 = vst [vmem:[%s263 + $0x520] sm:$0xff] %v2733
        %2742 = vst [vmem:[%s263 + $0x528] sm:$0xff] %v2734
        %2743 = vst [vmem:[%s263 + $0x530] sm:$0xff] %v2735
        %2744 = vst [vmem:[%s263 + $0x538] sm:$0xff] %v2736
        %v2745 = vld [vmem:[%s263 + $0x700] sm:$0xff]
        %v2746 = vld [vmem:[%s263 + $0x708] sm:$0xff]
        %v2747 = vld [vmem:[%s263 + $0x710] sm:$0xff]
        %v2748 = vld [vmem:[%s263 + $0x718] sm:$0xff]
        %v2749 = vld [vmem:[%s263 + $0x720] sm:$0xff]
        %v2750 = vld [vmem:[%s263 + $0x728] sm:$0xff]
        %v2751 = vld [vmem:[%s263 + $0x730] sm:$0xff]
        %v2752 = vld [vmem:[%s263 + $0x738] sm:$0xff]
        %v2753 = vadd.f32 %v2745, %v2649
        %v2754 = vadd.f32 %v2746, %v2650
        %v2755 = vadd.f32 %v2747, %v2651
        %v2756 = vadd.f32 %v2748, %v2652
        %v2757 = vadd.f32 %v2749, %v2653
        %v2758 = vadd.f32 %v2750, %v2654
        %v2759 = vadd.f32 %v2751, %v2655
        %v2760 = vadd.f32 %v2752, %v2656
        %2761 = vst [vmem:[%s263 + $0x700] sm:$0xff] %v2753
        %2762 = vst [vmem:[%s263 + $0x708] sm:$0xff] %v2754
        %2763 = vst [vmem:[%s263 + $0x710] sm:$0xff] %v2755
        %2764 = vst [vmem:[%s263 + $0x718] sm:$0xff] %v2756
        %2765 = vst [vmem:[%s263 + $0x720] sm:$0xff] %v2757
        %2766 = vst [vmem:[%s263 + $0x728] sm:$0xff] %v2758
        %2767 = vst [vmem:[%s263 + $0x730] sm:$0xff] %v2759
        %2768 = vst [vmem:[%s263 + $0x738] sm:$0xff] %v2760
        %v2769 = vld [vmem:[%s263 + $0x900] sm:$0xff]
        %v2770 = vld [vmem:[%s263 + $0x908] sm:$0xff]
        %v2771 = vld [vmem:[%s263 + $0x910] sm:$0xff]
        %v2772 = vld [vmem:[%s263 + $0x918] sm:$0xff]
        %v2773 = vld [vmem:[%s263 + $0x920] sm:$0xff]
        %v2774 = vld [vmem:[%s263 + $0x928] sm:$0xff]
        %v2775 = vld [vmem:[%s263 + $0x930] sm:$0xff]
        %v2776 = vld [vmem:[%s263 + $0x938] sm:$0xff]
        %v2777 = vadd.f32 %v2769, %v2665
        %v2778 = vadd.f32 %v2770, %v2666
        %v2779 = vadd.f32 %v2771, %v2667
        %v2780 = vadd.f32 %v2772, %v2668
        %v2781 = vadd.f32 %v2773, %v2669
        %v2782 = vadd.f32 %v2774, %v2670
        %v2783 = vadd.f32 %v2775, %v2671
        %v2784 = vadd.f32 %v2776, %v2672
        %2785 = vst [vmem:[%s263 + $0x900] sm:$0xff] %v2777
        %2786 = vst [vmem:[%s263 + $0x908] sm:$0xff] %v2778
        %2787 = vst [vmem:[%s263 + $0x910] sm:$0xff] %v2779
        %2788 = vst [vmem:[%s263 + $0x918] sm:$0xff] %v2780
        %2789 = vst [vmem:[%s263 + $0x920] sm:$0xff] %v2781
        %2790 = vst [vmem:[%s263 + $0x928] sm:$0xff] %v2782
        %2791 = vst [vmem:[%s263 + $0x930] sm:$0xff] %v2783
        %2792 = vst [vmem:[%s263 + $0x938] sm:$0xff] %v2784
        %v2793 = vld [vmem:[%s2 + $0xa0] sm:$0xf]
        %v2794 = vld [vmem:[%s2 + $0xa4] sm:$0xf]
        %v2795 = vld [vmem:[%s2 + $0xa8] sm:$0xf]
        %v2796 = vld [vmem:[%s2 + $0xac] sm:$0xf]
        %v2797 = vld [vmem:[%s2 + $0xb0] sm:$0xf]
        %v2798 = vld [vmem:[%s2 + $0xb4] sm:$0xf]
        %v2799 = vld [vmem:[%s2 + $0xb8] sm:$0xf]
        %v2800 = vld [vmem:[%s2 + $0xbc] sm:$0xf]
        %v2809 = vunpack.c.l.b16 %v2793
        %v2810 = vunpack.c.l.b16 %v2794
        %v2811 = vunpack.c.l.b16 %v2795
        %v2812 = vunpack.c.l.b16 %v2796
        %v2813 = vunpack.c.l.b16 %v2797
        %v2814 = vunpack.c.l.b16 %v2798
        %v2815 = vunpack.c.l.b16 %v2799
        %v2816 = vunpack.c.l.b16 %v2800
        %v2817 = vpack.c.b16 %v2810, %v2809
        %v2818 = vpack.c.b16 %v2812, %v2811
        %v2819 = vpack.c.b16 %v2814, %v2813
        %v2820 = vpack.c.b16 %v2816, %v2815
        %v2822 = vsel %vm631, %v2817, 0
        %v2825 = vsel %vm631, %v2818, 0
        %v2828 = vsel %vm631, %v2819, 0
        %v2831 = vsel %vm631, %v2820, 0
        %2833 = vmatpush.bf16.msra.mxu0 0
        %2834 = vmatpush.bf16.msra.mxu0 0
        %2835 = vmatpush.bf16.msra.mxu0 0
        %2836 = vmatpush.bf16.msra.mxu0 0
        %2837 = vmatpush.bf16.msra.mxu0 0
        %2838 = vmatpush.bf16.msra.mxu0 0
        %2839 = vmatpush.bf16.msra.mxu0 0
        %2840 = vmatpush.bf16.msra.mxu0 %v645
        %2841 = vmatmul.bf16.gmra.mxu0 %v2822
        %v2842 = vpop.f32.mrf.mxu0
        %v2843 = vadd.f32 0.0, %v2842
        %v2844 = vpop.f32.mrf.mxu0
        %v2845 = vadd.f32 0.0, %v2844
        %2846 = vmatmul.bf16.gmra.mxu0 %v2825
        %v2847 = vpop.f32.mrf.mxu0
        %v2848 = vadd.f32 0.0, %v2847
        %v2849 = vpop.f32.mrf.mxu0
        %v2850 = vadd.f32 0.0, %v2849
        %2851 = vmatmul.bf16.gmra.mxu0 %v2828
        %v2852 = vpop.f32.mrf.mxu0
        %v2853 = vadd.f32 0.0, %v2852
        %v2854 = vpop.f32.mrf.mxu0
        %v2855 = vadd.f32 0.0, %v2854
        %2856 = vmatmul.bf16.gmra.mxu0 %v2831
        %v2857 = vpop.f32.mrf.mxu0
        %v2858 = vadd.f32 0.0, %v2857
        %v2859 = vpop.f32.mrf.mxu0
        %v2860 = vadd.f32 0.0, %v2859
        %2861 = vdwg.mxu0
        %2862 = vmatpush.bf16.msra.mxu0 0
        %2863 = vmatpush.bf16.msra.mxu0 0
        %2864 = vmatpush.bf16.msra.mxu0 0
        %2865 = vmatpush.bf16.msra.mxu0 0
        %2866 = vmatpush.bf16.msra.mxu0 0
        %2867 = vmatpush.bf16.msra.mxu0 0
        %2868 = vmatpush.bf16.msra.mxu0 0
        %2869 = vmatpush.bf16.msra.mxu0 %v647
        %2870 = vmatmul.bf16.gmra.mxu0 %v2822
        %v2871 = vpop.f32.mrf.mxu0
        %v2872 = vadd.f32 0.0, %v2871
        %v2873 = vpop.f32.mrf.mxu0
        %v2874 = vadd.f32 0.0, %v2873
        %2875 = vmatmul.bf16.gmra.mxu0 %v2825
        %v2876 = vpop.f32.mrf.mxu0
        %v2877 = vadd.f32 0.0, %v2876
        %v2878 = vpop.f32.mrf.mxu0
        %v2879 = vadd.f32 0.0, %v2878
        %2880 = vmatmul.bf16.gmra.mxu0 %v2828
        %v2881 = vpop.f32.mrf.mxu0
        %v2882 = vadd.f32 0.0, %v2881
        %v2883 = vpop.f32.mrf.mxu0
        %v2884 = vadd.f32 0.0, %v2883
        %2885 = vmatmul.bf16.gmra.mxu0 %v2831
        %v2886 = vpop.f32.mrf.mxu0
        %v2887 = vadd.f32 0.0, %v2886
        %v2888 = vpop.f32.mrf.mxu0
        %v2889 = vadd.f32 0.0, %v2888
        %2890 = vdwg.mxu0
        %2891 = vmatpush.bf16.msra.mxu0 0
        %2892 = vmatpush.bf16.msra.mxu0 0
        %2893 = vmatpush.bf16.msra.mxu0 0
        %2894 = vmatpush.bf16.msra.mxu0 0
        %2895 = vmatpush.bf16.msra.mxu0 0
        %2896 = vmatpush.bf16.msra.mxu0 0
        %2897 = vmatpush.bf16.msra.mxu0 0
        %2898 = vmatpush.bf16.msra.mxu0 %v649
        %2899 = vmatmul.bf16.gmra.mxu0 %v2822
        %v2900 = vpop.f32.mrf.mxu0
        %v2901 = vadd.f32 0.0, %v2900
        %v2902 = vpop.f32.mrf.mxu0
        %v2903 = vadd.f32 0.0, %v2902
        %2904 = vmatmul.bf16.gmra.mxu0 %v2825
        %v2905 = vpop.f32.mrf.mxu0
        %v2906 = vadd.f32 0.0, %v2905
        %v2907 = vpop.f32.mrf.mxu0
        %v2908 = vadd.f32 0.0, %v2907
        %2909 = vmatmul.bf16.gmra.mxu0 %v2828
        %v2910 = vpop.f32.mrf.mxu0
        %v2911 = vadd.f32 0.0, %v2910
        %v2912 = vpop.f32.mrf.mxu0
        %v2913 = vadd.f32 0.0, %v2912
        %2914 = vmatmul.bf16.gmra.mxu0 %v2831
        %v2915 = vpop.f32.mrf.mxu0
        %v2916 = vadd.f32 0.0, %v2915
        %v2917 = vpop.f32.mrf.mxu0
        %v2918 = vadd.f32 0.0, %v2917
        %2919 = vdwg.mxu0
        %2920 = vmatpush.bf16.msra.mxu0 0
        %2921 = vmatpush.bf16.msra.mxu0 0
        %2922 = vmatpush.bf16.msra.mxu0 0
        %2923 = vmatpush.bf16.msra.mxu0 0
        %2924 = vmatpush.bf16.msra.mxu0 0
        %2925 = vmatpush.bf16.msra.mxu0 0
        %2926 = vmatpush.bf16.msra.mxu0 0
        %2927 = vmatpush.bf16.msra.mxu0 %v651
        %2928 = vmatmul.bf16.gmra.mxu0 %v2822
        %v2929 = vpop.f32.mrf.mxu0
        %v2930 = vadd.f32 0.0, %v2929
        %v2931 = vpop.f32.mrf.mxu0
        %v2932 = vadd.f32 0.0, %v2931
        %2933 = vmatmul.bf16.gmra.mxu0 %v2825
        %v2934 = vpop.f32.mrf.mxu0
        %v2935 = vadd.f32 0.0, %v2934
        %v2936 = vpop.f32.mrf.mxu0
        %v2937 = vadd.f32 0.0, %v2936
        %2938 = vmatmul.bf16.gmra.mxu0 %v2828
        %v2939 = vpop.f32.mrf.mxu0
        %v2940 = vadd.f32 0.0, %v2939
        %v2941 = vpop.f32.mrf.mxu0
        %v2942 = vadd.f32 0.0, %v2941
        %2943 = vmatmul.bf16.gmra.mxu0 %v2831
        %v2944 = vpop.f32.mrf.mxu0
        %v2945 = vadd.f32 0.0, %v2944
        %v2946 = vpop.f32.mrf.mxu0
        %v2947 = vadd.f32 0.0, %v2946
        %2948 = vdwg.mxu0
        %v2949 = vmax.f32 %v2843, 0.0
        %v2950 = vmax.f32 %v2872, 0.0
        %v2951 = vmax.f32 %v2901, 0.0
        %v2952 = vmax.f32 %v2930, 0.0
        %v2953 = vmax.f32 %v2845, 0.0
        %v2954 = vmax.f32 %v2874, 0.0
        %v2955 = vmax.f32 %v2903, 0.0
        %v2956 = vmax.f32 %v2932, 0.0
        %v2957 = vmax.f32 %v2848, 0.0
        %v2958 = vmax.f32 %v2877, 0.0
        %v2959 = vmax.f32 %v2906, 0.0
        %v2960 = vmax.f32 %v2935, 0.0
        %v2961 = vmax.f32 %v2850, 0.0
        %v2962 = vmax.f32 %v2879, 0.0
        %v2963 = vmax.f32 %v2908, 0.0
        %v2964 = vmax.f32 %v2937, 0.0
        %v2965 = vmax.f32 %v2853, 0.0
        %v2966 = vmax.f32 %v2882, 0.0
        %v2967 = vmax.f32 %v2911, 0.0
        %v2968 = vmax.f32 %v2940, 0.0
        %v2969 = vmax.f32 %v2855, 0.0
        %v2970 = vmax.f32 %v2884, 0.0
        %v2971 = vmax.f32 %v2913, 0.0
        %v2972 = vmax.f32 %v2942, 0.0
        %v2973 = vmax.f32 %v2858, 0.0
        %v2974 = vmax.f32 %v2887, 0.0
        %v2975 = vmax.f32 %v2916, 0.0
        %v2976 = vmax.f32 %v2945, 0.0
        %v2977 = vmax.f32 %v2860, 0.0
        %v2978 = vmax.f32 %v2889, 0.0
        %v2979 = vmax.f32 %v2918, 0.0
        %v2980 = vmax.f32 %v2947, 0.0
        %v2981 = vadd.f32 %v2949, 0.0
        %v2982 = vadd.f32 %v2953, 0.0
        %v2983 = vadd.f32 %v2957, 0.0
        %v2984 = vadd.f32 %v2961, 0.0
        %v2985 = vadd.f32 %v2965, 0.0
        %v2986 = vadd.f32 %v2969, 0.0
        %v2987 = vadd.f32 %v2973, 0.0
        %v2988 = vadd.f32 %v2977, 0.0
        %v2989 = vadd.f32 %v2951, 0.0
        %v2990 = vadd.f32 %v2955, 0.0
        %v2991 = vadd.f32 %v2959, 0.0
        %v2992 = vadd.f32 %v2963, 0.0
        %v2993 = vadd.f32 %v2967, 0.0
        %v2994 = vadd.f32 %v2971, 0.0
        %v2995 = vadd.f32 %v2975, 0.0
        %v2996 = vadd.f32 %v2979, 0.0
        %v2997 = vmul.f32 %v2949, %v2949
        %v2998 = vmul.f32 %v2953, %v2953
        %v2999 = vmul.f32 %v2957, %v2957
        %v3000 = vmul.f32 %v2961, %v2961
        %v3001 = vmul.f32 %v2965, %v2965
        %v3002 = vmul.f32 %v2969, %v2969
        %v3003 = vmul.f32 %v2973, %v2973
        %v3004 = vmul.f32 %v2977, %v2977
        %v3005 = vadd.f32 %v2997, 0.0
        %v3006 = vadd.f32 %v2998, 0.0
        %v3007 = vadd.f32 %v2999, 0.0
        %v3008 = vadd.f32 %v3000, 0.0
        %v3009 = vadd.f32 %v3001, 0.0
        %v3010 = vadd.f32 %v3002, 0.0
        %v3011 = vadd.f32 %v3003, 0.0
        %v3012 = vadd.f32 %v3004, 0.0
        %v3013 = vmul.f32 %v2951, %v2951
        %v3014 = vmul.f32 %v2955, %v2955
        %v3015 = vmul.f32 %v2959, %v2959
        %v3016 = vmul.f32 %v2963, %v2963
        %v3017 = vmul.f32 %v2967, %v2967
        %v3018 = vmul.f32 %v2971, %v2971
        %v3019 = vmul.f32 %v2975, %v2975
        %v3020 = vmul.f32 %v2979, %v2979
        %v3021 = vadd.f32 %v3013, 0.0
        %v3022 = vadd.f32 %v3014, 0.0
        %v3023 = vadd.f32 %v3015, 0.0
        %v3024 = vadd.f32 %v3016, 0.0
        %v3025 = vadd.f32 %v3017, 0.0
        %v3026 = vadd.f32 %v3018, 0.0
        %v3027 = vadd.f32 %v3019, 0.0
        %v3028 = vadd.f32 %v3020, 0.0
        %v3029 = vmul.f32 %v2949, %v2951
        %v3030 = vmul.f32 %v2953, %v2955
        %v3031 = vmul.f32 %v2957, %v2959
        %v3032 = vmul.f32 %v2961, %v2963
        %v3033 = vmul.f32 %v2965, %v2967
        %v3034 = vmul.f32 %v2969, %v2971
        %v3035 = vmul.f32 %v2973, %v2975
        %v3036 = vmul.f32 %v2977, %v2979
        %v3037 = vadd.f32 %v3029, 0.0
        %v3038 = vadd.f32 %v3030, 0.0
        %v3039 = vadd.f32 %v3031, 0.0
        %v3040 = vadd.f32 %v3032, 0.0
        %v3041 = vadd.f32 %v3033, 0.0
        %v3042 = vadd.f32 %v3034, 0.0
        %v3043 = vadd.f32 %v3035, 0.0
        %v3044 = vadd.f32 %v3036, 0.0
        %v3045 = vadd.f32 %v2981, %v2950
        %v3046 = vadd.f32 %v2982, %v2954
        %v3047 = vadd.f32 %v2983, %v2958
        %v3048 = vadd.f32 %v2984, %v2962
        %v3049 = vadd.f32 %v2985, %v2966
        %v3050 = vadd.f32 %v2986, %v2970
        %v3051 = vadd.f32 %v2987, %v2974
        %v3052 = vadd.f32 %v2988, %v2978
        %v3053 = vadd.f32 %v2989, %v2952
        %v3054 = vadd.f32 %v2990, %v2956
        %v3055 = vadd.f32 %v2991, %v2960
        %v3056 = vadd.f32 %v2992, %v2964
        %v3057 = vadd.f32 %v2993, %v2968
        %v3058 = vadd.f32 %v2994, %v2972
        %v3059 = vadd.f32 %v2995, %v2976
        %v3060 = vadd.f32 %v2996, %v2980
        %v3061 = vmul.f32 %v2950, %v2950
        %v3062 = vmul.f32 %v2954, %v2954
        %v3063 = vmul.f32 %v2958, %v2958
        %v3064 = vmul.f32 %v2962, %v2962
        %v3065 = vmul.f32 %v2966, %v2966
        %v3066 = vmul.f32 %v2970, %v2970
        %v3067 = vmul.f32 %v2974, %v2974
        %v3068 = vmul.f32 %v2978, %v2978
        %v3069 = vadd.f32 %v3005, %v3061
        %v3070 = vadd.f32 %v3006, %v3062
        %v3071 = vadd.f32 %v3007, %v3063
        %v3072 = vadd.f32 %v3008, %v3064
        %v3073 = vadd.f32 %v3009, %v3065
        %v3074 = vadd.f32 %v3010, %v3066
        %v3075 = vadd.f32 %v3011, %v3067
        %v3076 = vadd.f32 %v3012, %v3068
        %v3077 = vmul.f32 %v2952, %v2952
        %v3078 = vmul.f32 %v2956, %v2956
        %v3079 = vmul.f32 %v2960, %v2960
        %v3080 = vmul.f32 %v2964, %v2964
        %v3081 = vmul.f32 %v2968, %v2968
        %v3082 = vmul.f32 %v2972, %v2972
        %v3083 = vmul.f32 %v2976, %v2976
        %v3084 = vmul.f32 %v2980, %v2980
        %v3085 = vadd.f32 %v3021, %v3077
        %v3086 = vadd.f32 %v3022, %v3078
        %v3087 = vadd.f32 %v3023, %v3079
        %v3088 = vadd.f32 %v3024, %v3080
        %v3089 = vadd.f32 %v3025, %v3081
        %v3090 = vadd.f32 %v3026, %v3082
        %v3091 = vadd.f32 %v3027, %v3083
        %v3092 = vadd.f32 %v3028, %v3084
        %v3093 = vmul.f32 %v2950, %v2952
        %v3094 = vmul.f32 %v2954, %v2956
        %v3095 = vmul.f32 %v2958, %v2960
        %v3096 = vmul.f32 %v2962, %v2964
        %v3097 = vmul.f32 %v2966, %v2968
        %v3098 = vmul.f32 %v2970, %v2972
        %v3099 = vmul.f32 %v2974, %v2976
        %v3100 = vmul.f32 %v2978, %v2980
        %v3101 = vadd.f32 %v3037, %v3093
        %v3102 = vadd.f32 %v3038, %v3094
        %v3103 = vadd.f32 %v3039, %v3095
        %v3104 = vadd.f32 %v3040, %v3096
        %v3105 = vadd.f32 %v3041, %v3097
        %v3106 = vadd.f32 %v3042, %v3098
        %v3107 = vadd.f32 %v3043, %v3099
        %v3108 = vadd.f32 %v3044, %v3100
        %v3109 = vld [vmem:[%s263 + $0x140] sm:$0xff]
        %v3110 = vld [vmem:[%s263 + $0x148] sm:$0xff]
        %v3111 = vld [vmem:[%s263 + $0x150] sm:$0xff]
        %v3112 = vld [vmem:[%s263 + $0x158] sm:$0xff]
        %v3113 = vld [vmem:[%s263 + $0x160] sm:$0xff]
        %v3114 = vld [vmem:[%s263 + $0x168] sm:$0xff]
        %v3115 = vld [vmem:[%s263 + $0x170] sm:$0xff]
        %v3116 = vld [vmem:[%s263 + $0x178] sm:$0xff]
        %v3117 = vadd.f32 %v3109, %v3045
        %v3118 = vadd.f32 %v3110, %v3046
        %v3119 = vadd.f32 %v3111, %v3047
        %v3120 = vadd.f32 %v3112, %v3048
        %v3121 = vadd.f32 %v3113, %v3049
        %v3122 = vadd.f32 %v3114, %v3050
        %v3123 = vadd.f32 %v3115, %v3051
        %v3124 = vadd.f32 %v3116, %v3052
        %3125 = vst [vmem:[%s263 + $0x140] sm:$0xff] %v3117
        %3126 = vst [vmem:[%s263 + $0x148] sm:$0xff] %v3118
        %3127 = vst [vmem:[%s263 + $0x150] sm:$0xff] %v3119
        %3128 = vst [vmem:[%s263 + $0x158] sm:$0xff] %v3120
        %3129 = vst [vmem:[%s263 + $0x160] sm:$0xff] %v3121
        %3130 = vst [vmem:[%s263 + $0x168] sm:$0xff] %v3122
        %3131 = vst [vmem:[%s263 + $0x170] sm:$0xff] %v3123
        %3132 = vst [vmem:[%s263 + $0x178] sm:$0xff] %v3124
        %v3133 = vld [vmem:[%s263 + $0x340] sm:$0xff]
        %v3134 = vld [vmem:[%s263 + $0x348] sm:$0xff]
        %v3135 = vld [vmem:[%s263 + $0x350] sm:$0xff]
        %v3136 = vld [vmem:[%s263 + $0x358] sm:$0xff]
        %v3137 = vld [vmem:[%s263 + $0x360] sm:$0xff]
        %v3138 = vld [vmem:[%s263 + $0x368] sm:$0xff]
        %v3139 = vld [vmem:[%s263 + $0x370] sm:$0xff]
        %v3140 = vld [vmem:[%s263 + $0x378] sm:$0xff]
        %v3141 = vadd.f32 %v3133, %v3069
        %v3142 = vadd.f32 %v3134, %v3070
        %v3143 = vadd.f32 %v3135, %v3071
        %v3144 = vadd.f32 %v3136, %v3072
        %v3145 = vadd.f32 %v3137, %v3073
        %v3146 = vadd.f32 %v3138, %v3074
        %v3147 = vadd.f32 %v3139, %v3075
        %v3148 = vadd.f32 %v3140, %v3076
        %3149 = vst [vmem:[%s263 + $0x340] sm:$0xff] %v3141
        %3150 = vst [vmem:[%s263 + $0x348] sm:$0xff] %v3142
        %3151 = vst [vmem:[%s263 + $0x350] sm:$0xff] %v3143
        %3152 = vst [vmem:[%s263 + $0x358] sm:$0xff] %v3144
        %3153 = vst [vmem:[%s263 + $0x360] sm:$0xff] %v3145
        %3154 = vst [vmem:[%s263 + $0x368] sm:$0xff] %v3146
        %3155 = vst [vmem:[%s263 + $0x370] sm:$0xff] %v3147
        %3156 = vst [vmem:[%s263 + $0x378] sm:$0xff] %v3148
        %v3157 = vld [vmem:[%s263 + $0x540] sm:$0xff]
        %v3158 = vld [vmem:[%s263 + $0x548] sm:$0xff]
        %v3159 = vld [vmem:[%s263 + $0x550] sm:$0xff]
        %v3160 = vld [vmem:[%s263 + $0x558] sm:$0xff]
        %v3161 = vld [vmem:[%s263 + $0x560] sm:$0xff]
        %v3162 = vld [vmem:[%s263 + $0x568] sm:$0xff]
        %v3163 = vld [vmem:[%s263 + $0x570] sm:$0xff]
        %v3164 = vld [vmem:[%s263 + $0x578] sm:$0xff]
        %v3165 = vadd.f32 %v3157, %v3053
        %v3166 = vadd.f32 %v3158, %v3054
        %v3167 = vadd.f32 %v3159, %v3055
        %v3168 = vadd.f32 %v3160, %v3056
        %v3169 = vadd.f32 %v3161, %v3057
        %v3170 = vadd.f32 %v3162, %v3058
        %v3171 = vadd.f32 %v3163, %v3059
        %v3172 = vadd.f32 %v3164, %v3060
        %3173 = vst [vmem:[%s263 + $0x540] sm:$0xff] %v3165
        %3174 = vst [vmem:[%s263 + $0x548] sm:$0xff] %v3166
        %3175 = vst [vmem:[%s263 + $0x550] sm:$0xff] %v3167
        %3176 = vst [vmem:[%s263 + $0x558] sm:$0xff] %v3168
        %3177 = vst [vmem:[%s263 + $0x560] sm:$0xff] %v3169
        %3178 = vst [vmem:[%s263 + $0x568] sm:$0xff] %v3170
        %3179 = vst [vmem:[%s263 + $0x570] sm:$0xff] %v3171
        %3180 = vst [vmem:[%s263 + $0x578] sm:$0xff] %v3172
        %v3181 = vld [vmem:[%s263 + $0x740] sm:$0xff]
        %v3182 = vld [vmem:[%s263 + $0x748] sm:$0xff]
        %v3183 = vld [vmem:[%s263 + $0x750] sm:$0xff]
        %v3184 = vld [vmem:[%s263 + $0x758] sm:$0xff]
        %v3185 = vld [vmem:[%s263 + $0x760] sm:$0xff]
        %v3186 = vld [vmem:[%s263 + $0x768] sm:$0xff]
        %v3187 = vld [vmem:[%s263 + $0x770] sm:$0xff]
        %v3188 = vld [vmem:[%s263 + $0x778] sm:$0xff]
        %v3189 = vadd.f32 %v3181, %v3085
        %v3190 = vadd.f32 %v3182, %v3086
        %v3191 = vadd.f32 %v3183, %v3087
        %v3192 = vadd.f32 %v3184, %v3088
        %v3193 = vadd.f32 %v3185, %v3089
        %v3194 = vadd.f32 %v3186, %v3090
        %v3195 = vadd.f32 %v3187, %v3091
        %v3196 = vadd.f32 %v3188, %v3092
        %3197 = vst [vmem:[%s263 + $0x740] sm:$0xff] %v3189
        %3198 = vst [vmem:[%s263 + $0x748] sm:$0xff] %v3190
        %3199 = vst [vmem:[%s263 + $0x750] sm:$0xff] %v3191
        %3200 = vst [vmem:[%s263 + $0x758] sm:$0xff] %v3192
        %3201 = vst [vmem:[%s263 + $0x760] sm:$0xff] %v3193
        %3202 = vst [vmem:[%s263 + $0x768] sm:$0xff] %v3194
        %3203 = vst [vmem:[%s263 + $0x770] sm:$0xff] %v3195
        %3204 = vst [vmem:[%s263 + $0x778] sm:$0xff] %v3196
        %v3205 = vld [vmem:[%s263 + $0x940] sm:$0xff]
        %v3206 = vld [vmem:[%s263 + $0x948] sm:$0xff]
        %v3207 = vld [vmem:[%s263 + $0x950] sm:$0xff]
        %v3208 = vld [vmem:[%s263 + $0x958] sm:$0xff]
        %v3209 = vld [vmem:[%s263 + $0x960] sm:$0xff]
        %v3210 = vld [vmem:[%s263 + $0x968] sm:$0xff]
        %v3211 = vld [vmem:[%s263 + $0x970] sm:$0xff]
        %v3212 = vld [vmem:[%s263 + $0x978] sm:$0xff]
        %v3213 = vadd.f32 %v3205, %v3101
        %v3214 = vadd.f32 %v3206, %v3102
        %v3215 = vadd.f32 %v3207, %v3103
        %v3216 = vadd.f32 %v3208, %v3104
        %v3217 = vadd.f32 %v3209, %v3105
        %v3218 = vadd.f32 %v3210, %v3106
        %v3219 = vadd.f32 %v3211, %v3107
        %v3220 = vadd.f32 %v3212, %v3108
        %3221 = vst [vmem:[%s263 + $0x940] sm:$0xff] %v3213
        %3222 = vst [vmem:[%s263 + $0x948] sm:$0xff] %v3214
        %3223 = vst [vmem:[%s263 + $0x950] sm:$0xff] %v3215
        %3224 = vst [vmem:[%s263 + $0x958] sm:$0xff] %v3216
        %3225 = vst [vmem:[%s263 + $0x960] sm:$0xff] %v3217
        %3226 = vst [vmem:[%s263 + $0x968] sm:$0xff] %v3218
        %3227 = vst [vmem:[%s263 + $0x970] sm:$0xff] %v3219
        %3228 = vst [vmem:[%s263 + $0x978] sm:$0xff] %v3220
        %v3229 = vld [vmem:[%s2 + $0xc0] sm:$0xf]
        %v3230 = vld [vmem:[%s2 + $0xc4] sm:$0xf]
        %v3231 = vld [vmem:[%s2 + $0xc8] sm:$0xf]
        %v3232 = vld [vmem:[%s2 + $0xcc] sm:$0xf]
        %v3233 = vld [vmem:[%s2 + $0xd0] sm:$0xf]
        %v3234 = vld [vmem:[%s2 + $0xd4] sm:$0xf]
        %v3235 = vld [vmem:[%s2 + $0xd8] sm:$0xf]
        %v3236 = vld [vmem:[%s2 + $0xdc] sm:$0xf]
        %v3245 = vunpack.c.l.b16 %v3229
        %v3246 = vunpack.c.l.b16 %v3230
        %v3247 = vunpack.c.l.b16 %v3231
        %v3248 = vunpack.c.l.b16 %v3232
        %v3249 = vunpack.c.l.b16 %v3233
        %v3250 = vunpack.c.l.b16 %v3234
        %v3251 = vunpack.c.l.b16 %v3235
        %v3252 = vunpack.c.l.b16 %v3236
        %v3253 = vpack.c.b16 %v3246, %v3245
        %v3254 = vpack.c.b16 %v3248, %v3247
        %v3255 = vpack.c.b16 %v3250, %v3249
        %v3256 = vpack.c.b16 %v3252, %v3251
        %v3258 = vsel %vm631, %v3253, 0
        %v3261 = vsel %vm631, %v3254, 0
        %v3264 = vsel %vm631, %v3255, 0
        %v3267 = vsel %vm631, %v3256, 0
        %3269 = vmatpush.bf16.msra.mxu0 0
        %3270 = vmatpush.bf16.msra.mxu0 0
        %3271 = vmatpush.bf16.msra.mxu0 0
        %3272 = vmatpush.bf16.msra.mxu0 0
        %3273 = vmatpush.bf16.msra.mxu0 0
        %3274 = vmatpush.bf16.msra.mxu0 0
        %3275 = vmatpush.bf16.msra.mxu0 0
        %3276 = vmatpush.bf16.msra.mxu0 %v645
        %3277 = vmatmul.bf16.gmra.mxu0 %v3258
        %v3278 = vpop.f32.mrf.mxu0
        %v3279 = vadd.f32 0.0, %v3278
        %v3280 = vpop.f32.mrf.mxu0
        %v3281 = vadd.f32 0.0, %v3280
        %3282 = vmatmul.bf16.gmra.mxu0 %v3261
        %v3283 = vpop.f32.mrf.mxu0
        %v3284 = vadd.f32 0.0, %v3283
        %v3285 = vpop.f32.mrf.mxu0
        %v3286 = vadd.f32 0.0, %v3285
        %3287 = vmatmul.bf16.gmra.mxu0 %v3264
        %v3288 = vpop.f32.mrf.mxu0
        %v3289 = vadd.f32 0.0, %v3288
        %v3290 = vpop.f32.mrf.mxu0
        %v3291 = vadd.f32 0.0, %v3290
        %3292 = vmatmul.bf16.gmra.mxu0 %v3267
        %v3293 = vpop.f32.mrf.mxu0
        %v3294 = vadd.f32 0.0, %v3293
        %v3295 = vpop.f32.mrf.mxu0
        %v3296 = vadd.f32 0.0, %v3295
        %3297 = vdwg.mxu0
        %3298 = vmatpush.bf16.msra.mxu0 0
        %3299 = vmatpush.bf16.msra.mxu0 0
        %3300 = vmatpush.bf16.msra.mxu0 0
        %3301 = vmatpush.bf16.msra.mxu0 0
        %3302 = vmatpush.bf16.msra.mxu0 0
        %3303 = vmatpush.bf16.msra.mxu0 0
        %3304 = vmatpush.bf16.msra.mxu0 0
        %3305 = vmatpush.bf16.msra.mxu0 %v647
        %3306 = vmatmul.bf16.gmra.mxu0 %v3258
        %v3307 = vpop.f32.mrf.mxu0
        %v3308 = vadd.f32 0.0, %v3307
        %v3309 = vpop.f32.mrf.mxu0
        %v3310 = vadd.f32 0.0, %v3309
        %3311 = vmatmul.bf16.gmra.mxu0 %v3261
        %v3312 = vpop.f32.mrf.mxu0
        %v3313 = vadd.f32 0.0, %v3312
        %v3314 = vpop.f32.mrf.mxu0
        %v3315 = vadd.f32 0.0, %v3314
        %3316 = vmatmul.bf16.gmra.mxu0 %v3264
        %v3317 = vpop.f32.mrf.mxu0
        %v3318 = vadd.f32 0.0, %v3317
        %v3319 = vpop.f32.mrf.mxu0
        %v3320 = vadd.f32 0.0, %v3319
        %3321 = vmatmul.bf16.gmra.mxu0 %v3267
        %v3322 = vpop.f32.mrf.mxu0
        %v3323 = vadd.f32 0.0, %v3322
        %v3324 = vpop.f32.mrf.mxu0
        %v3325 = vadd.f32 0.0, %v3324
        %3326 = vdwg.mxu0
        %3327 = vmatpush.bf16.msra.mxu0 0
        %3328 = vmatpush.bf16.msra.mxu0 0
        %3329 = vmatpush.bf16.msra.mxu0 0
        %3330 = vmatpush.bf16.msra.mxu0 0
        %3331 = vmatpush.bf16.msra.mxu0 0
        %3332 = vmatpush.bf16.msra.mxu0 0
        %3333 = vmatpush.bf16.msra.mxu0 0
        %3334 = vmatpush.bf16.msra.mxu0 %v649
        %3335 = vmatmul.bf16.gmra.mxu0 %v3258
        %v3336 = vpop.f32.mrf.mxu0
        %v3337 = vadd.f32 0.0, %v3336
        %v3338 = vpop.f32.mrf.mxu0
        %v3339 = vadd.f32 0.0, %v3338
        %3340 = vmatmul.bf16.gmra.mxu0 %v3261
        %v3341 = vpop.f32.mrf.mxu0
        %v3342 = vadd.f32 0.0, %v3341
        %v3343 = vpop.f32.mrf.mxu0
        %v3344 = vadd.f32 0.0, %v3343
        %3345 = vmatmul.bf16.gmra.mxu0 %v3264
        %v3346 = vpop.f32.mrf.mxu0
        %v3347 = vadd.f32 0.0, %v3346
        %v3348 = vpop.f32.mrf.mxu0
        %v3349 = vadd.f32 0.0, %v3348
        %3350 = vmatmul.bf16.gmra.mxu0 %v3267
        %v3351 = vpop.f32.mrf.mxu0
        %v3352 = vadd.f32 0.0, %v3351
        %v3353 = vpop.f32.mrf.mxu0
        %v3354 = vadd.f32 0.0, %v3353
        %3355 = vdwg.mxu0
        %3356 = vmatpush.bf16.msra.mxu0 0
        %3357 = vmatpush.bf16.msra.mxu0 0
        %3358 = vmatpush.bf16.msra.mxu0 0
        %3359 = vmatpush.bf16.msra.mxu0 0
        %3360 = vmatpush.bf16.msra.mxu0 0
        %3361 = vmatpush.bf16.msra.mxu0 0
        %3362 = vmatpush.bf16.msra.mxu0 0
        %3363 = vmatpush.bf16.msra.mxu0 %v651
        %3364 = vmatmul.bf16.gmra.mxu0 %v3258
        %v3365 = vpop.f32.mrf.mxu0
        %v3366 = vadd.f32 0.0, %v3365
        %v3367 = vpop.f32.mrf.mxu0
        %v3368 = vadd.f32 0.0, %v3367
        %3369 = vmatmul.bf16.gmra.mxu0 %v3261
        %v3370 = vpop.f32.mrf.mxu0
        %v3371 = vadd.f32 0.0, %v3370
        %v3372 = vpop.f32.mrf.mxu0
        %v3373 = vadd.f32 0.0, %v3372
        %3374 = vmatmul.bf16.gmra.mxu0 %v3264
        %v3375 = vpop.f32.mrf.mxu0
        %v3376 = vadd.f32 0.0, %v3375
        %v3377 = vpop.f32.mrf.mxu0
        %v3378 = vadd.f32 0.0, %v3377
        %3379 = vmatmul.bf16.gmra.mxu0 %v3267
        %v3380 = vpop.f32.mrf.mxu0
        %v3381 = vadd.f32 0.0, %v3380
        %v3382 = vpop.f32.mrf.mxu0
        %v3383 = vadd.f32 0.0, %v3382
        %3384 = vdwg.mxu0
        %v3385 = vmax.f32 %v3279, 0.0
        %v3386 = vmax.f32 %v3308, 0.0
        %v3387 = vmax.f32 %v3337, 0.0
        %v3388 = vmax.f32 %v3366, 0.0
        %v3389 = vmax.f32 %v3281, 0.0
        %v3390 = vmax.f32 %v3310, 0.0
        %v3391 = vmax.f32 %v3339, 0.0
        %v3392 = vmax.f32 %v3368, 0.0
        %v3393 = vmax.f32 %v3284, 0.0
        %v3394 = vmax.f32 %v3313, 0.0
        %v3395 = vmax.f32 %v3342, 0.0
        %v3396 = vmax.f32 %v3371, 0.0
        %v3397 = vmax.f32 %v3286, 0.0
        %v3398 = vmax.f32 %v3315, 0.0
        %v3399 = vmax.f32 %v3344, 0.0
        %v3400 = vmax.f32 %v3373, 0.0
        %v3401 = vmax.f32 %v3289, 0.0
        %v3402 = vmax.f32 %v3318, 0.0
        %v3403 = vmax.f32 %v3347, 0.0
        %v3404 = vmax.f32 %v3376, 0.0
        %v3405 = vmax.f32 %v3291, 0.0
        %v3406 = vmax.f32 %v3320, 0.0
        %v3407 = vmax.f32 %v3349, 0.0
        %v3408 = vmax.f32 %v3378, 0.0
        %v3409 = vmax.f32 %v3294, 0.0
        %v3410 = vmax.f32 %v3323, 0.0
        %v3411 = vmax.f32 %v3352, 0.0
        %v3412 = vmax.f32 %v3381, 0.0
        %v3413 = vmax.f32 %v3296, 0.0
        %v3414 = vmax.f32 %v3325, 0.0
        %v3415 = vmax.f32 %v3354, 0.0
        %v3416 = vmax.f32 %v3383, 0.0
        %v3417 = vadd.f32 %v3385, 0.0
        %v3418 = vadd.f32 %v3389, 0.0
        %v3419 = vadd.f32 %v3393, 0.0
        %v3420 = vadd.f32 %v3397, 0.0
        %v3421 = vadd.f32 %v3401, 0.0
        %v3422 = vadd.f32 %v3405, 0.0
        %v3423 = vadd.f32 %v3409, 0.0
        %v3424 = vadd.f32 %v3413, 0.0
        %v3425 = vadd.f32 %v3387, 0.0
        %v3426 = vadd.f32 %v3391, 0.0
        %v3427 = vadd.f32 %v3395, 0.0
        %v3428 = vadd.f32 %v3399, 0.0
        %v3429 = vadd.f32 %v3403, 0.0
        %v3430 = vadd.f32 %v3407, 0.0
        %v3431 = vadd.f32 %v3411, 0.0
        %v3432 = vadd.f32 %v3415, 0.0
        %v3433 = vmul.f32 %v3385, %v3385
        %v3434 = vmul.f32 %v3389, %v3389
        %v3435 = vmul.f32 %v3393, %v3393
        %v3436 = vmul.f32 %v3397, %v3397
        %v3437 = vmul.f32 %v3401, %v3401
        %v3438 = vmul.f32 %v3405, %v3405
        %v3439 = vmul.f32 %v3409, %v3409
        %v3440 = vmul.f32 %v3413, %v3413
        %v3441 = vadd.f32 %v3433, 0.0
        %v3442 = vadd.f32 %v3434, 0.0
        %v3443 = vadd.f32 %v3435, 0.0
        %v3444 = vadd.f32 %v3436, 0.0
        %v3445 = vadd.f32 %v3437, 0.0
        %v3446 = vadd.f32 %v3438, 0.0
        %v3447 = vadd.f32 %v3439, 0.0
        %v3448 = vadd.f32 %v3440, 0.0
        %v3449 = vmul.f32 %v3387, %v3387
        %v3450 = vmul.f32 %v3391, %v3391
        %v3451 = vmul.f32 %v3395, %v3395
        %v3452 = vmul.f32 %v3399, %v3399
        %v3453 = vmul.f32 %v3403, %v3403
        %v3454 = vmul.f32 %v3407, %v3407
        %v3455 = vmul.f32 %v3411, %v3411
        %v3456 = vmul.f32 %v3415, %v3415
        %v3457 = vadd.f32 %v3449, 0.0
        %v3458 = vadd.f32 %v3450, 0.0
        %v3459 = vadd.f32 %v3451, 0.0
        %v3460 = vadd.f32 %v3452, 0.0
        %v3461 = vadd.f32 %v3453, 0.0
        %v3462 = vadd.f32 %v3454, 0.0
        %v3463 = vadd.f32 %v3455, 0.0
        %v3464 = vadd.f32 %v3456, 0.0
        %v3465 = vmul.f32 %v3385, %v3387
        %v3466 = vmul.f32 %v3389, %v3391
        %v3467 = vmul.f32 %v3393, %v3395
        %v3468 = vmul.f32 %v3397, %v3399
        %v3469 = vmul.f32 %v3401, %v3403
        %v3470 = vmul.f32 %v3405, %v3407
        %v3471 = vmul.f32 %v3409, %v3411
        %v3472 = vmul.f32 %v3413, %v3415
        %v3473 = vadd.f32 %v3465, 0.0
        %v3474 = vadd.f32 %v3466, 0.0
        %v3475 = vadd.f32 %v3467, 0.0
        %v3476 = vadd.f32 %v3468, 0.0
        %v3477 = vadd.f32 %v3469, 0.0
        %v3478 = vadd.f32 %v3470, 0.0
        %v3479 = vadd.f32 %v3471, 0.0
        %v3480 = vadd.f32 %v3472, 0.0
        %v3481 = vadd.f32 %v3417, %v3386
        %v3482 = vadd.f32 %v3418, %v3390
        %v3483 = vadd.f32 %v3419, %v3394
        %v3484 = vadd.f32 %v3420, %v3398
        %v3485 = vadd.f32 %v3421, %v3402
        %v3486 = vadd.f32 %v3422, %v3406
        %v3487 = vadd.f32 %v3423, %v3410
        %v3488 = vadd.f32 %v3424, %v3414
        %v3489 = vadd.f32 %v3425, %v3388
        %v3490 = vadd.f32 %v3426, %v3392
        %v3491 = vadd.f32 %v3427, %v3396
        %v3492 = vadd.f32 %v3428, %v3400
        %v3493 = vadd.f32 %v3429, %v3404
        %v3494 = vadd.f32 %v3430, %v3408
        %v3495 = vadd.f32 %v3431, %v3412
        %v3496 = vadd.f32 %v3432, %v3416
        %v3497 = vmul.f32 %v3386, %v3386
        %v3498 = vmul.f32 %v3390, %v3390
        %v3499 = vmul.f32 %v3394, %v3394
        %v3500 = vmul.f32 %v3398, %v3398
        %v3501 = vmul.f32 %v3402, %v3402
        %v3502 = vmul.f32 %v3406, %v3406
        %v3503 = vmul.f32 %v3410, %v3410
        %v3504 = vmul.f32 %v3414, %v3414
        %v3505 = vadd.f32 %v3441, %v3497
        %v3506 = vadd.f32 %v3442, %v3498
        %v3507 = vadd.f32 %v3443, %v3499
        %v3508 = vadd.f32 %v3444, %v3500
        %v3509 = vadd.f32 %v3445, %v3501
        %v3510 = vadd.f32 %v3446, %v3502
        %v3511 = vadd.f32 %v3447, %v3503
        %v3512 = vadd.f32 %v3448, %v3504
        %v3513 = vmul.f32 %v3388, %v3388
        %v3514 = vmul.f32 %v3392, %v3392
        %v3515 = vmul.f32 %v3396, %v3396
        %v3516 = vmul.f32 %v3400, %v3400
        %v3517 = vmul.f32 %v3404, %v3404
        %v3518 = vmul.f32 %v3408, %v3408
        %v3519 = vmul.f32 %v3412, %v3412
        %v3520 = vmul.f32 %v3416, %v3416
        %v3521 = vadd.f32 %v3457, %v3513
        %v3522 = vadd.f32 %v3458, %v3514
        %v3523 = vadd.f32 %v3459, %v3515
        %v3524 = vadd.f32 %v3460, %v3516
        %v3525 = vadd.f32 %v3461, %v3517
        %v3526 = vadd.f32 %v3462, %v3518
        %v3527 = vadd.f32 %v3463, %v3519
        %v3528 = vadd.f32 %v3464, %v3520
        %v3529 = vmul.f32 %v3386, %v3388
        %v3530 = vmul.f32 %v3390, %v3392
        %v3531 = vmul.f32 %v3394, %v3396
        %v3532 = vmul.f32 %v3398, %v3400
        %v3533 = vmul.f32 %v3402, %v3404
        %v3534 = vmul.f32 %v3406, %v3408
        %v3535 = vmul.f32 %v3410, %v3412
        %v3536 = vmul.f32 %v3414, %v3416
        %v3537 = vadd.f32 %v3473, %v3529
        %v3538 = vadd.f32 %v3474, %v3530
        %v3539 = vadd.f32 %v3475, %v3531
        %v3540 = vadd.f32 %v3476, %v3532
        %v3541 = vadd.f32 %v3477, %v3533
        %v3542 = vadd.f32 %v3478, %v3534
        %v3543 = vadd.f32 %v3479, %v3535
        %v3544 = vadd.f32 %v3480, %v3536
        %v3545 = vld [vmem:[%s263 + $0x180] sm:$0xff]
        %v3546 = vld [vmem:[%s263 + $0x188] sm:$0xff]
        %v3547 = vld [vmem:[%s263 + $0x190] sm:$0xff]
        %v3548 = vld [vmem:[%s263 + $0x198] sm:$0xff]
        %v3549 = vld [vmem:[%s263 + $0x1a0] sm:$0xff]
        %v3550 = vld [vmem:[%s263 + $0x1a8] sm:$0xff]
        %v3551 = vld [vmem:[%s263 + $0x1b0] sm:$0xff]
        %v3552 = vld [vmem:[%s263 + $0x1b8] sm:$0xff]
        %v3553 = vadd.f32 %v3545, %v3481
        %v3554 = vadd.f32 %v3546, %v3482
        %v3555 = vadd.f32 %v3547, %v3483
        %v3556 = vadd.f32 %v3548, %v3484
        %v3557 = vadd.f32 %v3549, %v3485
        %v3558 = vadd.f32 %v3550, %v3486
        %v3559 = vadd.f32 %v3551, %v3487
        %v3560 = vadd.f32 %v3552, %v3488
        %3561 = vst [vmem:[%s263 + $0x180] sm:$0xff] %v3553
        %3562 = vst [vmem:[%s263 + $0x188] sm:$0xff] %v3554
        %3563 = vst [vmem:[%s263 + $0x190] sm:$0xff] %v3555
        %3564 = vst [vmem:[%s263 + $0x198] sm:$0xff] %v3556
        %3565 = vst [vmem:[%s263 + $0x1a0] sm:$0xff] %v3557
        %3566 = vst [vmem:[%s263 + $0x1a8] sm:$0xff] %v3558
        %3567 = vst [vmem:[%s263 + $0x1b0] sm:$0xff] %v3559
        %3568 = vst [vmem:[%s263 + $0x1b8] sm:$0xff] %v3560
        %v3569 = vld [vmem:[%s263 + $0x380] sm:$0xff]
        %v3570 = vld [vmem:[%s263 + $0x388] sm:$0xff]
        %v3571 = vld [vmem:[%s263 + $0x390] sm:$0xff]
        %v3572 = vld [vmem:[%s263 + $0x398] sm:$0xff]
        %v3573 = vld [vmem:[%s263 + $0x3a0] sm:$0xff]
        %v3574 = vld [vmem:[%s263 + $0x3a8] sm:$0xff]
        %v3575 = vld [vmem:[%s263 + $0x3b0] sm:$0xff]
        %v3576 = vld [vmem:[%s263 + $0x3b8] sm:$0xff]
        %v3577 = vadd.f32 %v3569, %v3505
        %v3578 = vadd.f32 %v3570, %v3506
        %v3579 = vadd.f32 %v3571, %v3507
        %v3580 = vadd.f32 %v3572, %v3508
        %v3581 = vadd.f32 %v3573, %v3509
        %v3582 = vadd.f32 %v3574, %v3510
        %v3583 = vadd.f32 %v3575, %v3511
        %v3584 = vadd.f32 %v3576, %v3512
        %3585 = vst [vmem:[%s263 + $0x380] sm:$0xff] %v3577
        %3586 = vst [vmem:[%s263 + $0x388] sm:$0xff] %v3578
        %3587 = vst [vmem:[%s263 + $0x390] sm:$0xff] %v3579
        %3588 = vst [vmem:[%s263 + $0x398] sm:$0xff] %v3580
        %3589 = vst [vmem:[%s263 + $0x3a0] sm:$0xff] %v3581
        %3590 = vst [vmem:[%s263 + $0x3a8] sm:$0xff] %v3582
        %3591 = vst [vmem:[%s263 + $0x3b0] sm:$0xff] %v3583
        %3592 = vst [vmem:[%s263 + $0x3b8] sm:$0xff] %v3584
        %v3593 = vld [vmem:[%s263 + $0x580] sm:$0xff]
        %v3594 = vld [vmem:[%s263 + $0x588] sm:$0xff]
        %v3595 = vld [vmem:[%s263 + $0x590] sm:$0xff]
        %v3596 = vld [vmem:[%s263 + $0x598] sm:$0xff]
        %v3597 = vld [vmem:[%s263 + $0x5a0] sm:$0xff]
        %v3598 = vld [vmem:[%s263 + $0x5a8] sm:$0xff]
        %v3599 = vld [vmem:[%s263 + $0x5b0] sm:$0xff]
        %v3600 = vld [vmem:[%s263 + $0x5b8] sm:$0xff]
        %v3601 = vadd.f32 %v3593, %v3489
        %v3602 = vadd.f32 %v3594, %v3490
        %v3603 = vadd.f32 %v3595, %v3491
        %v3604 = vadd.f32 %v3596, %v3492
        %v3605 = vadd.f32 %v3597, %v3493
        %v3606 = vadd.f32 %v3598, %v3494
        %v3607 = vadd.f32 %v3599, %v3495
        %v3608 = vadd.f32 %v3600, %v3496
        %3609 = vst [vmem:[%s263 + $0x580] sm:$0xff] %v3601
        %3610 = vst [vmem:[%s263 + $0x588] sm:$0xff] %v3602
        %3611 = vst [vmem:[%s263 + $0x590] sm:$0xff] %v3603
        %3612 = vst [vmem:[%s263 + $0x598] sm:$0xff] %v3604
        %3613 = vst [vmem:[%s263 + $0x5a0] sm:$0xff] %v3605
        %3614 = vst [vmem:[%s263 + $0x5a8] sm:$0xff] %v3606
        %3615 = vst [vmem:[%s263 + $0x5b0] sm:$0xff] %v3607
        %3616 = vst [vmem:[%s263 + $0x5b8] sm:$0xff] %v3608
        %v3617 = vld [vmem:[%s263 + $0x780] sm:$0xff]
        %v3618 = vld [vmem:[%s263 + $0x788] sm:$0xff]
        %v3619 = vld [vmem:[%s263 + $0x790] sm:$0xff]
        %v3620 = vld [vmem:[%s263 + $0x798] sm:$0xff]
        %v3621 = vld [vmem:[%s263 + $0x7a0] sm:$0xff]
        %v3622 = vld [vmem:[%s263 + $0x7a8] sm:$0xff]
        %v3623 = vld [vmem:[%s263 + $0x7b0] sm:$0xff]
        %v3624 = vld [vmem:[%s263 + $0x7b8] sm:$0xff]
        %v3625 = vadd.f32 %v3617, %v3521
        %v3626 = vadd.f32 %v3618, %v3522
        %v3627 = vadd.f32 %v3619, %v3523
        %v3628 = vadd.f32 %v3620, %v3524
        %v3629 = vadd.f32 %v3621, %v3525
        %v3630 = vadd.f32 %v3622, %v3526
        %v3631 = vadd.f32 %v3623, %v3527
        %v3632 = vadd.f32 %v3624, %v3528
        %3633 = vst [vmem:[%s263 + $0x780] sm:$0xff] %v3625
        %3634 = vst [vmem:[%s263 + $0x788] sm:$0xff] %v3626
        %3635 = vst [vmem:[%s263 + $0x790] sm:$0xff] %v3627
        %3636 = vst [vmem:[%s263 + $0x798] sm:$0xff] %v3628
        %3637 = vst [vmem:[%s263 + $0x7a0] sm:$0xff] %v3629
        %3638 = vst [vmem:[%s263 + $0x7a8] sm:$0xff] %v3630
        %3639 = vst [vmem:[%s263 + $0x7b0] sm:$0xff] %v3631
        %3640 = vst [vmem:[%s263 + $0x7b8] sm:$0xff] %v3632
        %v3641 = vld [vmem:[%s263 + $0x980] sm:$0xff]
        %v3642 = vld [vmem:[%s263 + $0x988] sm:$0xff]
        %v3643 = vld [vmem:[%s263 + $0x990] sm:$0xff]
        %v3644 = vld [vmem:[%s263 + $0x998] sm:$0xff]
        %v3645 = vld [vmem:[%s263 + $0x9a0] sm:$0xff]
        %v3646 = vld [vmem:[%s263 + $0x9a8] sm:$0xff]
        %v3647 = vld [vmem:[%s263 + $0x9b0] sm:$0xff]
        %v3648 = vld [vmem:[%s263 + $0x9b8] sm:$0xff]
        %v3649 = vadd.f32 %v3641, %v3537
        %v3650 = vadd.f32 %v3642, %v3538
        %v3651 = vadd.f32 %v3643, %v3539
        %v3652 = vadd.f32 %v3644, %v3540
        %v3653 = vadd.f32 %v3645, %v3541
        %v3654 = vadd.f32 %v3646, %v3542
        %v3655 = vadd.f32 %v3647, %v3543
        %v3656 = vadd.f32 %v3648, %v3544
        %3657 = vst [vmem:[%s263 + $0x980] sm:$0xff] %v3649
        %3658 = vst [vmem:[%s263 + $0x988] sm:$0xff] %v3650
        %3659 = vst [vmem:[%s263 + $0x990] sm:$0xff] %v3651
        %3660 = vst [vmem:[%s263 + $0x998] sm:$0xff] %v3652
        %3661 = vst [vmem:[%s263 + $0x9a0] sm:$0xff] %v3653
        %3662 = vst [vmem:[%s263 + $0x9a8] sm:$0xff] %v3654
        %3663 = vst [vmem:[%s263 + $0x9b0] sm:$0xff] %v3655
        %3664 = vst [vmem:[%s263 + $0x9b8] sm:$0xff] %v3656
        %v3665 = vld [vmem:[%s2 + $0xe0] sm:$0xf]
        %v3666 = vld [vmem:[%s2 + $0xe4] sm:$0xf]
        %v3667 = vld [vmem:[%s2 + $0xe8] sm:$0xf]
        %v3668 = vld [vmem:[%s2 + $0xec] sm:$0xf]
        %v3669 = vld [vmem:[%s2 + $0xf0] sm:$0xf]
        %v3670 = vld [vmem:[%s2 + $0xf4] sm:$0xf]
        %v3671 = vld [vmem:[%s2 + $0xf8] sm:$0xf]
        %v3672 = vld [vmem:[%s2 + $0xfc] sm:$0xf]
        %v3681 = vunpack.c.l.b16 %v3665
        %v3682 = vunpack.c.l.b16 %v3666
        %v3683 = vunpack.c.l.b16 %v3667
        %v3684 = vunpack.c.l.b16 %v3668
        %v3685 = vunpack.c.l.b16 %v3669
        %v3686 = vunpack.c.l.b16 %v3670
        %v3687 = vunpack.c.l.b16 %v3671
        %v3688 = vunpack.c.l.b16 %v3672
        %v3689 = vpack.c.b16 %v3682, %v3681
        %v3690 = vpack.c.b16 %v3684, %v3683
        %v3691 = vpack.c.b16 %v3686, %v3685
        %v3692 = vpack.c.b16 %v3688, %v3687
        %v3694 = vsel %vm631, %v3689, 0
        %v3697 = vsel %vm631, %v3690, 0
        %v3700 = vsel %vm631, %v3691, 0
        %v3703 = vsel %vm631, %v3692, 0
        %3705 = vmatpush.bf16.msra.mxu0 0
        %3706 = vmatpush.bf16.msra.mxu0 0
        %3707 = vmatpush.bf16.msra.mxu0 0
        %3708 = vmatpush.bf16.msra.mxu0 0
        %3709 = vmatpush.bf16.msra.mxu0 0
        %3710 = vmatpush.bf16.msra.mxu0 0
        %3711 = vmatpush.bf16.msra.mxu0 0
        %3712 = vmatpush.bf16.msra.mxu0 %v645
        %3713 = vmatmul.bf16.gmra.mxu0 %v3694
        %v3714 = vpop.f32.mrf.mxu0
        %v3715 = vadd.f32 0.0, %v3714
        %v3716 = vpop.f32.mrf.mxu0
        %v3717 = vadd.f32 0.0, %v3716
        %3718 = vmatmul.bf16.gmra.mxu0 %v3697
        %v3719 = vpop.f32.mrf.mxu0
        %v3720 = vadd.f32 0.0, %v3719
        %v3721 = vpop.f32.mrf.mxu0
        %v3722 = vadd.f32 0.0, %v3721
        %3723 = vmatmul.bf16.gmra.mxu0 %v3700
        %v3724 = vpop.f32.mrf.mxu0
        %v3725 = vadd.f32 0.0, %v3724
        %v3726 = vpop.f32.mrf.mxu0
        %v3727 = vadd.f32 0.0, %v3726
        %3728 = vmatmul.bf16.gmra.mxu0 %v3703
        %v3729 = vpop.f32.mrf.mxu0
        %v3730 = vadd.f32 0.0, %v3729
        %v3731 = vpop.f32.mrf.mxu0
        %v3732 = vadd.f32 0.0, %v3731
        %3733 = vdwg.mxu0
        %3734 = vmatpush.bf16.msra.mxu0 0
        %3735 = vmatpush.bf16.msra.mxu0 0
        %3736 = vmatpush.bf16.msra.mxu0 0
        %3737 = vmatpush.bf16.msra.mxu0 0
        %3738 = vmatpush.bf16.msra.mxu0 0
        %3739 = vmatpush.bf16.msra.mxu0 0
        %3740 = vmatpush.bf16.msra.mxu0 0
        %3741 = vmatpush.bf16.msra.mxu0 %v647
        %3742 = vmatmul.bf16.gmra.mxu0 %v3694
        %v3743 = vpop.f32.mrf.mxu0
        %v3744 = vadd.f32 0.0, %v3743
        %v3745 = vpop.f32.mrf.mxu0
        %v3746 = vadd.f32 0.0, %v3745
        %3747 = vmatmul.bf16.gmra.mxu0 %v3697
        %v3748 = vpop.f32.mrf.mxu0
        %v3749 = vadd.f32 0.0, %v3748
        %v3750 = vpop.f32.mrf.mxu0
        %v3751 = vadd.f32 0.0, %v3750
        %3752 = vmatmul.bf16.gmra.mxu0 %v3700
        %v3753 = vpop.f32.mrf.mxu0
        %v3754 = vadd.f32 0.0, %v3753
        %v3755 = vpop.f32.mrf.mxu0
        %v3756 = vadd.f32 0.0, %v3755
        %3757 = vmatmul.bf16.gmra.mxu0 %v3703
        %v3758 = vpop.f32.mrf.mxu0
        %v3759 = vadd.f32 0.0, %v3758
        %v3760 = vpop.f32.mrf.mxu0
        %v3761 = vadd.f32 0.0, %v3760
        %3762 = vdwg.mxu0
        %3763 = vmatpush.bf16.msra.mxu0 0
        %3764 = vmatpush.bf16.msra.mxu0 0
        %3765 = vmatpush.bf16.msra.mxu0 0
        %3766 = vmatpush.bf16.msra.mxu0 0
        %3767 = vmatpush.bf16.msra.mxu0 0
        %3768 = vmatpush.bf16.msra.mxu0 0
        %3769 = vmatpush.bf16.msra.mxu0 0
        %3770 = vmatpush.bf16.msra.mxu0 %v649
        %3771 = vmatmul.bf16.gmra.mxu0 %v3694
        %v3772 = vpop.f32.mrf.mxu0
        %v3773 = vadd.f32 0.0, %v3772
        %v3774 = vpop.f32.mrf.mxu0
        %v3775 = vadd.f32 0.0, %v3774
        %3776 = vmatmul.bf16.gmra.mxu0 %v3697
        %v3777 = vpop.f32.mrf.mxu0
        %v3778 = vadd.f32 0.0, %v3777
        %v3779 = vpop.f32.mrf.mxu0
        %v3780 = vadd.f32 0.0, %v3779
        %3781 = vmatmul.bf16.gmra.mxu0 %v3700
        %v3782 = vpop.f32.mrf.mxu0
        %v3783 = vadd.f32 0.0, %v3782
        %v3784 = vpop.f32.mrf.mxu0
        %v3785 = vadd.f32 0.0, %v3784
        %3786 = vmatmul.bf16.gmra.mxu0 %v3703
        %v3787 = vpop.f32.mrf.mxu0
        %v3788 = vadd.f32 0.0, %v3787
        %v3789 = vpop.f32.mrf.mxu0
        %v3790 = vadd.f32 0.0, %v3789
        %3791 = vdwg.mxu0
        %3792 = vmatpush.bf16.msra.mxu0 0
        %3793 = vmatpush.bf16.msra.mxu0 0
        %3794 = vmatpush.bf16.msra.mxu0 0
        %3795 = vmatpush.bf16.msra.mxu0 0
        %3796 = vmatpush.bf16.msra.mxu0 0
        %3797 = vmatpush.bf16.msra.mxu0 0
        %3798 = vmatpush.bf16.msra.mxu0 0
        %3799 = vmatpush.bf16.msra.mxu0 %v651
        %3800 = vmatmul.bf16.gmra.mxu0 %v3694
        %v3801 = vpop.f32.mrf.mxu0
        %v3802 = vadd.f32 0.0, %v3801
        %v3803 = vpop.f32.mrf.mxu0
        %v3804 = vadd.f32 0.0, %v3803
        %3805 = vmatmul.bf16.gmra.mxu0 %v3697
        %v3806 = vpop.f32.mrf.mxu0
        %v3807 = vadd.f32 0.0, %v3806
        %v3808 = vpop.f32.mrf.mxu0
        %v3809 = vadd.f32 0.0, %v3808
        %3810 = vmatmul.bf16.gmra.mxu0 %v3700
        %v3811 = vpop.f32.mrf.mxu0
        %v3812 = vadd.f32 0.0, %v3811
        %v3813 = vpop.f32.mrf.mxu0
        %v3814 = vadd.f32 0.0, %v3813
        %3815 = vmatmul.bf16.gmra.mxu0 %v3703
        %v3816 = vpop.f32.mrf.mxu0
        %v3817 = vadd.f32 0.0, %v3816
        %v3818 = vpop.f32.mrf.mxu0
        %v3819 = vadd.f32 0.0, %v3818
        %3820 = vdwg.mxu0
        %v3821 = vmax.f32 %v3715, 0.0
        %v3822 = vmax.f32 %v3744, 0.0
        %v3823 = vmax.f32 %v3773, 0.0
        %v3824 = vmax.f32 %v3802, 0.0
        %v3825 = vmax.f32 %v3717, 0.0
        %v3826 = vmax.f32 %v3746, 0.0
        %v3827 = vmax.f32 %v3775, 0.0
        %v3828 = vmax.f32 %v3804, 0.0
        %v3829 = vmax.f32 %v3720, 0.0
        %v3830 = vmax.f32 %v3749, 0.0
        %v3831 = vmax.f32 %v3778, 0.0
        %v3832 = vmax.f32 %v3807, 0.0
        %v3833 = vmax.f32 %v3722, 0.0
        %v3834 = vmax.f32 %v3751, 0.0
        %v3835 = vmax.f32 %v3780, 0.0
        %v3836 = vmax.f32 %v3809, 0.0
        %v3837 = vmax.f32 %v3725, 0.0
        %v3838 = vmax.f32 %v3754, 0.0
        %v3839 = vmax.f32 %v3783, 0.0
        %v3840 = vmax.f32 %v3812, 0.0
        %v3841 = vmax.f32 %v3727, 0.0
        %v3842 = vmax.f32 %v3756, 0.0
        %v3843 = vmax.f32 %v3785, 0.0
        %v3844 = vmax.f32 %v3814, 0.0
        %v3845 = vmax.f32 %v3730, 0.0
        %v3846 = vmax.f32 %v3759, 0.0
        %v3847 = vmax.f32 %v3788, 0.0
        %v3848 = vmax.f32 %v3817, 0.0
        %v3849 = vmax.f32 %v3732, 0.0
        %v3850 = vmax.f32 %v3761, 0.0
        %v3851 = vmax.f32 %v3790, 0.0
        %v3852 = vmax.f32 %v3819, 0.0
        %v3853 = vadd.f32 %v3821, 0.0
        %v3854 = vadd.f32 %v3825, 0.0
        %v3855 = vadd.f32 %v3829, 0.0
        %v3856 = vadd.f32 %v3833, 0.0
        %v3857 = vadd.f32 %v3837, 0.0
        %v3858 = vadd.f32 %v3841, 0.0
        %v3859 = vadd.f32 %v3845, 0.0
        %v3860 = vadd.f32 %v3849, 0.0
        %v3861 = vadd.f32 %v3823, 0.0
        %v3862 = vadd.f32 %v3827, 0.0
        %v3863 = vadd.f32 %v3831, 0.0
        %v3864 = vadd.f32 %v3835, 0.0
        %v3865 = vadd.f32 %v3839, 0.0
        %v3866 = vadd.f32 %v3843, 0.0
        %v3867 = vadd.f32 %v3847, 0.0
        %v3868 = vadd.f32 %v3851, 0.0
        %v3869 = vmul.f32 %v3821, %v3821
        %v3870 = vmul.f32 %v3825, %v3825
        %v3871 = vmul.f32 %v3829, %v3829
        %v3872 = vmul.f32 %v3833, %v3833
        %v3873 = vmul.f32 %v3837, %v3837
        %v3874 = vmul.f32 %v3841, %v3841
        %v3875 = vmul.f32 %v3845, %v3845
        %v3876 = vmul.f32 %v3849, %v3849
        %v3877 = vadd.f32 %v3869, 0.0
        %v3878 = vadd.f32 %v3870, 0.0
        %v3879 = vadd.f32 %v3871, 0.0
        %v3880 = vadd.f32 %v3872, 0.0
        %v3881 = vadd.f32 %v3873, 0.0
        %v3882 = vadd.f32 %v3874, 0.0
        %v3883 = vadd.f32 %v3875, 0.0
        %v3884 = vadd.f32 %v3876, 0.0
        %v3885 = vmul.f32 %v3823, %v3823
        %v3886 = vmul.f32 %v3827, %v3827
        %v3887 = vmul.f32 %v3831, %v3831
        %v3888 = vmul.f32 %v3835, %v3835
        %v3889 = vmul.f32 %v3839, %v3839
        %v3890 = vmul.f32 %v3843, %v3843
        %v3891 = vmul.f32 %v3847, %v3847
        %v3892 = vmul.f32 %v3851, %v3851
        %v3893 = vadd.f32 %v3885, 0.0
        %v3894 = vadd.f32 %v3886, 0.0
        %v3895 = vadd.f32 %v3887, 0.0
        %v3896 = vadd.f32 %v3888, 0.0
        %v3897 = vadd.f32 %v3889, 0.0
        %v3898 = vadd.f32 %v3890, 0.0
        %v3899 = vadd.f32 %v3891, 0.0
        %v3900 = vadd.f32 %v3892, 0.0
        %v3901 = vmul.f32 %v3821, %v3823
        %v3902 = vmul.f32 %v3825, %v3827
        %v3903 = vmul.f32 %v3829, %v3831
        %v3904 = vmul.f32 %v3833, %v3835
        %v3905 = vmul.f32 %v3837, %v3839
        %v3906 = vmul.f32 %v3841, %v3843
        %v3907 = vmul.f32 %v3845, %v3847
        %v3908 = vmul.f32 %v3849, %v3851
        %v3909 = vadd.f32 %v3901, 0.0
        %v3910 = vadd.f32 %v3902, 0.0
        %v3911 = vadd.f32 %v3903, 0.0
        %v3912 = vadd.f32 %v3904, 0.0
        %v3913 = vadd.f32 %v3905, 0.0
        %v3914 = vadd.f32 %v3906, 0.0
        %v3915 = vadd.f32 %v3907, 0.0
        %v3916 = vadd.f32 %v3908, 0.0
        %v3917 = vadd.f32 %v3853, %v3822
        %v3918 = vadd.f32 %v3854, %v3826
        %v3919 = vadd.f32 %v3855, %v3830
        %v3920 = vadd.f32 %v3856, %v3834
        %v3921 = vadd.f32 %v3857, %v3838
        %v3922 = vadd.f32 %v3858, %v3842
        %v3923 = vadd.f32 %v3859, %v3846
        %v3924 = vadd.f32 %v3860, %v3850
        %v3925 = vadd.f32 %v3861, %v3824
        %v3926 = vadd.f32 %v3862, %v3828
        %v3927 = vadd.f32 %v3863, %v3832
        %v3928 = vadd.f32 %v3864, %v3836
        %v3929 = vadd.f32 %v3865, %v3840
        %v3930 = vadd.f32 %v3866, %v3844
        %v3931 = vadd.f32 %v3867, %v3848
        %v3932 = vadd.f32 %v3868, %v3852
        %v3933 = vmul.f32 %v3822, %v3822
        %v3934 = vmul.f32 %v3826, %v3826
        %v3935 = vmul.f32 %v3830, %v3830
        %v3936 = vmul.f32 %v3834, %v3834
        %v3937 = vmul.f32 %v3838, %v3838
        %v3938 = vmul.f32 %v3842, %v3842
        %v3939 = vmul.f32 %v3846, %v3846
        %v3940 = vmul.f32 %v3850, %v3850
        %v3941 = vadd.f32 %v3877, %v3933
        %v3942 = vadd.f32 %v3878, %v3934
        %v3943 = vadd.f32 %v3879, %v3935
        %v3944 = vadd.f32 %v3880, %v3936
        %v3945 = vadd.f32 %v3881, %v3937
        %v3946 = vadd.f32 %v3882, %v3938
        %v3947 = vadd.f32 %v3883, %v3939
        %v3948 = vadd.f32 %v3884, %v3940
        %v3949 = vmul.f32 %v3824, %v3824
        %v3950 = vmul.f32 %v3828, %v3828
        %v3951 = vmul.f32 %v3832, %v3832
        %v3952 = vmul.f32 %v3836, %v3836
        %v3953 = vmul.f32 %v3840, %v3840
        %v3954 = vmul.f32 %v3844, %v3844
        %v3955 = vmul.f32 %v3848, %v3848
        %v3956 = vmul.f32 %v3852, %v3852
        %v3957 = vadd.f32 %v3893, %v3949
        %v3958 = vadd.f32 %v3894, %v3950
        %v3959 = vadd.f32 %v3895, %v3951
        %v3960 = vadd.f32 %v3896, %v3952
        %v3961 = vadd.f32 %v3897, %v3953
        %v3962 = vadd.f32 %v3898, %v3954
        %v3963 = vadd.f32 %v3899, %v3955
        %v3964 = vadd.f32 %v3900, %v3956
        %v3965 = vmul.f32 %v3822, %v3824
        %v3966 = vmul.f32 %v3826, %v3828
        %v3967 = vmul.f32 %v3830, %v3832
        %v3968 = vmul.f32 %v3834, %v3836
        %v3969 = vmul.f32 %v3838, %v3840
        %v3970 = vmul.f32 %v3842, %v3844
        %v3971 = vmul.f32 %v3846, %v3848
        %v3972 = vmul.f32 %v3850, %v3852
        %v3973 = vadd.f32 %v3909, %v3965
        %v3974 = vadd.f32 %v3910, %v3966
        %v3975 = vadd.f32 %v3911, %v3967
        %v3976 = vadd.f32 %v3912, %v3968
        %v3977 = vadd.f32 %v3913, %v3969
        %v3978 = vadd.f32 %v3914, %v3970
        %v3979 = vadd.f32 %v3915, %v3971
        %v3980 = vadd.f32 %v3916, %v3972
        %v3981 = vld [vmem:[%s263 + $0x1c0] sm:$0xff]
        %v3982 = vld [vmem:[%s263 + $0x1c8] sm:$0xff]
        %v3983 = vld [vmem:[%s263 + $0x1d0] sm:$0xff]
        %v3984 = vld [vmem:[%s263 + $0x1d8] sm:$0xff]
        %v3985 = vld [vmem:[%s263 + $0x1e0] sm:$0xff]
        %v3986 = vld [vmem:[%s263 + $0x1e8] sm:$0xff]
        %v3987 = vld [vmem:[%s263 + $0x1f0] sm:$0xff]
        %v3988 = vld [vmem:[%s263 + $0x1f8] sm:$0xff]
        %v3989 = vadd.f32 %v3981, %v3917
        %v3990 = vadd.f32 %v3982, %v3918
        %v3991 = vadd.f32 %v3983, %v3919
        %v3992 = vadd.f32 %v3984, %v3920
        %v3993 = vadd.f32 %v3985, %v3921
        %v3994 = vadd.f32 %v3986, %v3922
        %v3995 = vadd.f32 %v3987, %v3923
        %v3996 = vadd.f32 %v3988, %v3924
        %3997 = vst [vmem:[%s263 + $0x1c0] sm:$0xff] %v3989
        %3998 = vst [vmem:[%s263 + $0x1c8] sm:$0xff] %v3990
        %3999 = vst [vmem:[%s263 + $0x1d0] sm:$0xff] %v3991
        %4000 = vst [vmem:[%s263 + $0x1d8] sm:$0xff] %v3992
        %4001 = vst [vmem:[%s263 + $0x1e0] sm:$0xff] %v3993
        %4002 = vst [vmem:[%s263 + $0x1e8] sm:$0xff] %v3994
        %4003 = vst [vmem:[%s263 + $0x1f0] sm:$0xff] %v3995
        %4004 = vst [vmem:[%s263 + $0x1f8] sm:$0xff] %v3996
        %v4005 = vld [vmem:[%s263 + $0x3c0] sm:$0xff]
        %v4006 = vld [vmem:[%s263 + $0x3c8] sm:$0xff]
        %v4007 = vld [vmem:[%s263 + $0x3d0] sm:$0xff]
        %v4008 = vld [vmem:[%s263 + $0x3d8] sm:$0xff]
        %v4009 = vld [vmem:[%s263 + $0x3e0] sm:$0xff]
        %v4010 = vld [vmem:[%s263 + $0x3e8] sm:$0xff]
        %v4011 = vld [vmem:[%s263 + $0x3f0] sm:$0xff]
        %v4012 = vld [vmem:[%s263 + $0x3f8] sm:$0xff]
        %v4013 = vadd.f32 %v4005, %v3941
        %v4014 = vadd.f32 %v4006, %v3942
        %v4015 = vadd.f32 %v4007, %v3943
        %v4016 = vadd.f32 %v4008, %v3944
        %v4017 = vadd.f32 %v4009, %v3945
        %v4018 = vadd.f32 %v4010, %v3946
        %v4019 = vadd.f32 %v4011, %v3947
        %v4020 = vadd.f32 %v4012, %v3948
        %4021 = vst [vmem:[%s263 + $0x3c0] sm:$0xff] %v4013
        %4022 = vst [vmem:[%s263 + $0x3c8] sm:$0xff] %v4014
        %4023 = vst [vmem:[%s263 + $0x3d0] sm:$0xff] %v4015
        %4024 = vst [vmem:[%s263 + $0x3d8] sm:$0xff] %v4016
        %4025 = vst [vmem:[%s263 + $0x3e0] sm:$0xff] %v4017
        %4026 = vst [vmem:[%s263 + $0x3e8] sm:$0xff] %v4018
        %4027 = vst [vmem:[%s263 + $0x3f0] sm:$0xff] %v4019
        %4028 = vst [vmem:[%s263 + $0x3f8] sm:$0xff] %v4020
        %v4029 = vld [vmem:[%s263 + $0x5c0] sm:$0xff]
        %v4030 = vld [vmem:[%s263 + $0x5c8] sm:$0xff]
        %v4031 = vld [vmem:[%s263 + $0x5d0] sm:$0xff]
        %v4032 = vld [vmem:[%s263 + $0x5d8] sm:$0xff]
        %v4033 = vld [vmem:[%s263 + $0x5e0] sm:$0xff]
        %v4034 = vld [vmem:[%s263 + $0x5e8] sm:$0xff]
        %v4035 = vld [vmem:[%s263 + $0x5f0] sm:$0xff]
        %v4036 = vld [vmem:[%s263 + $0x5f8] sm:$0xff]
        %v4037 = vadd.f32 %v4029, %v3925
        %v4038 = vadd.f32 %v4030, %v3926
        %v4039 = vadd.f32 %v4031, %v3927
        %v4040 = vadd.f32 %v4032, %v3928
        %v4041 = vadd.f32 %v4033, %v3929
        %v4042 = vadd.f32 %v4034, %v3930
        %v4043 = vadd.f32 %v4035, %v3931
        %v4044 = vadd.f32 %v4036, %v3932
        %4045 = vst [vmem:[%s263 + $0x5c0] sm:$0xff] %v4037
        %4046 = vst [vmem:[%s263 + $0x5c8] sm:$0xff] %v4038
        %4047 = vst [vmem:[%s263 + $0x5d0] sm:$0xff] %v4039
        %4048 = vst [vmem:[%s263 + $0x5d8] sm:$0xff] %v4040
        %4049 = vst [vmem:[%s263 + $0x5e0] sm:$0xff] %v4041
        %4050 = vst [vmem:[%s263 + $0x5e8] sm:$0xff] %v4042
        %4051 = vst [vmem:[%s263 + $0x5f0] sm:$0xff] %v4043
        %4052 = vst [vmem:[%s263 + $0x5f8] sm:$0xff] %v4044
        %v4053 = vld [vmem:[%s263 + $0x7c0] sm:$0xff]
        %v4054 = vld [vmem:[%s263 + $0x7c8] sm:$0xff]
        %v4055 = vld [vmem:[%s263 + $0x7d0] sm:$0xff]
        %v4056 = vld [vmem:[%s263 + $0x7d8] sm:$0xff]
        %v4057 = vld [vmem:[%s263 + $0x7e0] sm:$0xff]
        %v4058 = vld [vmem:[%s263 + $0x7e8] sm:$0xff]
        %v4059 = vld [vmem:[%s263 + $0x7f0] sm:$0xff]
        %v4060 = vld [vmem:[%s263 + $0x7f8] sm:$0xff]
        %v4061 = vadd.f32 %v4053, %v3957
        %v4062 = vadd.f32 %v4054, %v3958
        %v4063 = vadd.f32 %v4055, %v3959
        %v4064 = vadd.f32 %v4056, %v3960
        %v4065 = vadd.f32 %v4057, %v3961
        %v4066 = vadd.f32 %v4058, %v3962
        %v4067 = vadd.f32 %v4059, %v3963
        %v4068 = vadd.f32 %v4060, %v3964
        %4069 = vst [vmem:[%s263 + $0x7c0] sm:$0xff] %v4061
        %4070 = vst [vmem:[%s263 + $0x7c8] sm:$0xff] %v4062
        %4071 = vst [vmem:[%s263 + $0x7d0] sm:$0xff] %v4063
        %4072 = vst [vmem:[%s263 + $0x7d8] sm:$0xff] %v4064
        %4073 = vst [vmem:[%s263 + $0x7e0] sm:$0xff] %v4065
        %4074 = vst [vmem:[%s263 + $0x7e8] sm:$0xff] %v4066
        %4075 = vst [vmem:[%s263 + $0x7f0] sm:$0xff] %v4067
        %4076 = vst [vmem:[%s263 + $0x7f8] sm:$0xff] %v4068
        %v4077 = vld [vmem:[%s263 + $0x9c0] sm:$0xff]
        %v4078 = vld [vmem:[%s263 + $0x9c8] sm:$0xff]
        %v4079 = vld [vmem:[%s263 + $0x9d0] sm:$0xff]
        %v4080 = vld [vmem:[%s263 + $0x9d8] sm:$0xff]
        %v4081 = vld [vmem:[%s263 + $0x9e0] sm:$0xff]
        %v4082 = vld [vmem:[%s263 + $0x9e8] sm:$0xff]
        %v4083 = vld [vmem:[%s263 + $0x9f0] sm:$0xff]
        %v4084 = vld [vmem:[%s263 + $0x9f8] sm:$0xff]
        %v4085 = vadd.f32 %v4077, %v3973
        %v4086 = vadd.f32 %v4078, %v3974
        %v4087 = vadd.f32 %v4079, %v3975
        %v4088 = vadd.f32 %v4080, %v3976
        %v4089 = vadd.f32 %v4081, %v3977
        %v4090 = vadd.f32 %v4082, %v3978
        %v4091 = vadd.f32 %v4083, %v3979
        %v4092 = vadd.f32 %v4084, %v3980
        %4093 = vst [vmem:[%s263 + $0x9c0] sm:$0xff] %v4085
        %4094 = vst [vmem:[%s263 + $0x9c8] sm:$0xff] %v4086
        %4095 = vst [vmem:[%s263 + $0x9d0] sm:$0xff] %v4087
        %4096 = vst [vmem:[%s263 + $0x9d8] sm:$0xff] %v4088
        %4097 = vst [vmem:[%s263 + $0x9e0] sm:$0xff] %v4089
        %4098 = vst [vmem:[%s263 + $0x9e8] sm:$0xff] %v4090
        %4099 = vst [vmem:[%s263 + $0x9f0] sm:$0xff] %v4091
        %4100 = vst [vmem:[%s263 + $0x9f8] sm:$0xff] %v4092
        %s4101 = sand.u32 %s133, 1
        %s4102 = scalar_lea.sflag [#allocation4], %s4101
        %s4103 = sand.u32 %s133, 1
        %s4104 = smul.addr %s4103, 2560
        %s4105 = scalar_lea.vmem [#allocation7], %s4104
        // Predicated region
        $region45: #{tpu_custom_call.1} parent=31 // pred_check
          %p4106 = pneg %p143
        $region46: #{tpu_custom_call.1} parent=31 // pred_check_branch
          %4108 = sbr.rel (%p4106) target = $region48
        $region47: #{tpu_custom_call.1} parent=31 // pred_region
          %4110 = vsyncadd %s4102, 0
          %s4111 = smul.addr %s29, 320
          %s4112 = smul.addr %s28, 320
          %s4113 = sadd.s32 %s4111, %s4112
          %s4114 = smul.addr %s4113, 8
          %s4115 = scalar_lea.hbm %s3, %s4114
          %s4116 = sshll.u32 %s4105, 4
          %s4117 = int_to_ptr.vmem [resolvable:$true] %s4116
          %s4118 = sshll.u32 %s4115, 4
          %s4119 = int_to_ptr.hbm [resolvable:$true] %s4118
          %4124 = dma.vmem_to_hbm [thread:$0]  %s4117, 40960, %s4119, %s4102, 128, 128, 8
        $region48: #{tpu_custom_call.1} parent=31 // pred_fallthru
          _
      $region32: #{tpu_custom_call.1} parent=5 // pred_fallthru
        _
      %p4125 = scmp.le.s32.totalorder 2, %s18
      // Predicated region
      $region49: #{tpu_custom_call.1} parent=5 // pred_check
        %p4126 = pneg %p4125
      $region50: #{tpu_custom_call.1} parent=5 // pred_check_branch
        %4128 = sbr.rel (%p4126) target = $region52
      $region51: #{tpu_custom_call.1} parent=5 // pred_region
        %s4129 = ssub.s32 %s18, 2
        // Predicated region
        $region53: #{tpu_custom_call.1} parent=51 // pred_check
          %p4130 = pneg %p149
        $region54: #{tpu_custom_call.1} parent=51 // pred_check_branch
          %4132 = sbr.rel (%p4130) target = $region56
        $region55: #{tpu_custom_call.1} parent=51 // pred_region
          %s4133 = sand.u32 %s134, 1
          %s4134 = scalar_lea.sflag [#allocation4], %s4133
          %s4135 = sand.u32 %s134, 1
          %s4136 = smul.addr %s4135, 2560
          %s4137 = scalar_lea.vmem [#allocation7], %s4136
          %4139 = dma.done %s4134, 40960
        $region56: #{tpu_custom_call.1} parent=51 // pred_fallthru
          _
      $region52: #{tpu_custom_call.1} parent=5 // pred_fallthru
        _
    $region6: #{tpu_custom_call.1} parent=1 // loop_footer
      %s22 = sadd.s32 1, %s18
    $region7: #{tpu_custom_call.1} parent=1 // loop_footer_branch
      %17 = sbr.rel target = $region3
    $region8: #{tpu_custom_call.1} parent=1 // loop_exit
      _
    %4140 = vsyncpa [#allocation3], 1
    %s4141 = scalar_lea.sflag [#allocation3], 1
    %4142 = vsyncpa %s4141, 1
    %4143 = vsyncpa [#allocation6], 1
    %s4144 = scalar_lea.sflag [#allocation6], 1
    %4145 = vsyncpa %s4144, 1
    %4146 = vsyncpa [#allocation4], 1
    %s4147 = scalar_lea.sflag [#allocation4], 1
    %4148 = vsyncpa %s4147, 1

</llo_original>
